<compile_context>
chip_gen: v6e
topology: v6e:2x2x1
jax: 0.10.0
libtpu: 0.0.40
codegen_flags: <defaults>
</compile_context>

<pallas_src>
import math

import jax
import jax.numpy as jnp
from jax.experimental import pallas as pl
from jax.experimental.pallas import tpu as pltpu


def _round_up(x, m):
    return ((x + m - 1) // m) * m


def _pad8(x):
    return _round_up(max(int(x), 1), 8)


def _make_siren_kernel(layer_out_feats, in_features, sine_flags):
    """Kernel body. Activations are transposed: (features, tile_m)."""
    num_layers = len(layer_out_feats)
    first_layer_outer_product = in_features <= 8

    def kernel(x_ref, *refs):
        # refs = w0, w1, ..., w_{L-1}, b_all, o_ref
        o_ref = refs[-1]
        b_all_ref = refs[-2]
        w_refs = refs[:-2]

        h = x_ref[...].astype(jnp.float32)            # (in_f, tile_m)

        for layer in range(num_layers):
            w_ref = w_refs[layer]
            feat = layer_out_feats[layer]
            b = b_all_ref[layer][0:feat, :]           # (feat, 1) f32 (omega folded)

            if layer == 0 and first_layer_outer_product:
                # Tiny-K first layer: VPU outer product (sublane x lane
                # broadcasts), keeps the MXU slot free.
                w = w_ref[...]                        # f32 (feat, in_f), omega folded
                z = w[:, 0:1] * h[0:1, :]
                for c in range(1, in_features):
                    z = z + w[:, c:c + 1] * h[c:c + 1, :]
                z = z + b
            else:
                w = w_ref[...]
                rhs = h if h.dtype == w.dtype else h.astype(w.dtype)
                z = jnp.dot(w, rhs, preferred_element_type=jnp.float32) + b

            if sine_flags[layer]:
                h = jnp.sin(z)                        # omega already folded into w, b
            else:
                h = z

        # Lane-dense store over tile_m.
        o_ref[...] = h.astype(o_ref.dtype)

    return kernel


def _vmem_budget_bytes():
    """Per-generation VMEM budget (half of physical; fallback is v7x-safe)."""
    try:
        phys = int(pltpu.get_tpu_info().vmem_capacity_bytes)
    except Exception:
        phys = 64 * 1024 * 1024                       # v7x has 64 MiB per TC
    return max(phys // 2, 16 * 1024 * 1024)


def siren_forward(coords, params, *, outermost_linear=True,
                  first_omega_0=30.0, hidden_omega_0=30.0,
                  tile_m=2048, matmul_dtype=None,
                  coords_transposed=False, output_transposed=False):
    """Fused SIREN forward pass.

    coords: (N, in_features) f32, or (in_features, N) if coords_transposed.
    params: list of (W, b) in PyTorch layout: W (out_f, in_f), b (out_f,).
            First entry = first sine layer, last entry = final layer.
    Returns (output, coords) mirroring the torch module; output is
    (N, out_features) (or (out_features, N) if output_transposed).
    """
    num_layers = len(params)
    layer_out_feats = [int(W.shape[0]) for (W, _) in params]
    in_f = int(params[0][0].shape[1])
    out_f = layer_out_feats[-1]
    max_feat = max(layer_out_feats)
    widest = max(layer_out_feats + [in_f])
    sine_flags = [True] * (num_layers - 1) + [not outermost_linear]

    if coords_transposed:
        assert coords.shape[0] == in_f
        N = int(coords.shape[1])
        x_t = coords.astype(jnp.float32)
    else:
        assert coords.shape[1] == in_f
        N = int(coords.shape[0])
        x_t = coords.T.astype(jnp.float32)

    # f32 weights for narrow nets (no per-element bf16 cast on the hot VPU
    # path, exact f32 parity); bf16 only where the MXU cost is actually visible.
    if matmul_dtype is None:
        matmul_dtype = jnp.float32 if widest <= 128 else jnp.bfloat16

    # ---- one-time param prep: fold omega, pack biases -----------------------
    flat_w = []
    b_all = jnp.zeros((num_layers, max_feat, 1), jnp.float32)
    for l, (W, b) in enumerate(params):
        omega = first_omega_0 if l == 0 else hidden_omega_0
        scale = omega if sine_flags[l] else 1.0
        Wf = jnp.asarray(W, jnp.float32) * scale
        bf = jnp.asarray(b, jnp.float32).reshape(-1) * scale
        w_dtype = jnp.float32 if l == 0 else matmul_dtype   # first layer stays f32
        flat_w.append(Wf.astype(w_dtype))
        b_all = b_all.at[l, :layer_out_feats[l], 0].set(bf)

    # ---- tile / grid policy (VMEM budget + even grid for v7x) ---------------
    def _padded_2d_bytes(r, c, itemsize):
        return _pad8(r) * _round_up(max(int(c), 1), 128) * int(itemsize)

    w_bytes = sum(_padded_2d_bytes(W.shape[0], W.shape[1], W.dtype.itemsize)
                  for W in flat_w)
    b_bytes = num_layers * _pad8(max_feat) * 128 * 4
    budget = _vmem_budget_bytes()

    # Per-point VMEM: double-buffered in/out tiles + ~4 f32 activation slabs.
    per_point = (2 * _pad8(in_f) + 2 * _pad8(out_f) + 4 * _pad8(widest)) * 4
    usable = budget - w_bytes - b_bytes - (4 << 20)
    cap = max(128, (usable // per_point) // 128 * 128)

    tile_m = max(128, min(int(tile_m), cap, _round_up(N, 128)))
    tile_m = tile_m // 128 * 128

    # Even grid (and >=4 steps when N allows tiles >= 512) so v7x's two
    # TensorCores each get balanced work with writeback overlap.
    min_steps = 1
    if N > 128:
        min_steps = 2
    if N >= 4 * 512:
        min_steps = 4
    grid_n = max(min_steps, -(-N // tile_m))
    if grid_n > 1 and grid_n % 2 == 1:
        grid_n += 1
    tile_m = max(128, _round_up(-(-N // grid_n), 128))
    n_pad = grid_n * tile_m

    if n_pad != N:
        x_t = jnp.pad(x_t, ((0, 0), (0, n_pad - N)))

    # Footprint-derived VMEM limit (never above the per-generation budget).
    act_bytes = 4 * _pad8(widest) * tile_m * 4
    io_bytes = 2 * (_pad8(in_f) + _pad8(out_f)) * tile_m * 4
    footprint = w_bytes + b_bytes + act_bytes + io_bytes
    vmem_limit = int(min(budget, max(16 << 20, 2 * footprint + (4 << 20))))

    # ---- pallas_call ---------------------------------------------------------
    kernel = _make_siren_kernel(layer_out_feats, in_f, sine_flags)

    x_spec = pl.BlockSpec((in_f, tile_m), lambda i: (0, i))
    # Constant index_maps -> resident, single-buffered weight/bias blocks.
    w_specs = [pl.BlockSpec(tuple(W.shape), lambda i: (0, 0),
                            pipeline_mode=pl.Buffered(1)) for W in flat_w]
    b_spec = pl.BlockSpec(tuple(b_all.shape), lambda i: (0, 0, 0),
                          pipeline_mode=pl.Buffered(1))
    out_spec = pl.BlockSpec((out_f, tile_m), lambda i: (0, i))

    out_t = pl.pallas_call(
        kernel,
        out_shape=jax.ShapeDtypeStruct((out_f, n_pad), jnp.float32),
        grid_spec=pltpu.PrefetchScalarGridSpec(
            num_scalar_prefetch=0,
            grid=(grid_n,),
            in_specs=[x_spec] + w_specs + [b_spec],
            out_specs=out_spec,
        ),
        compiler_params=pltpu.CompilerParams(
            dimension_semantics=("parallel",),
            vmem_limit_bytes=vmem_limit),
    )(x_t, *flat_w, b_all)

    out_t = out_t[:, :N]
    if output_transposed:
        return out_t, coords
    return out_t.T, coords


def init_siren_params(key, in_features, hidden_features, hidden_layers,
                      out_features, first_omega_0=30.0, hidden_omega_0=30.0):
    """SIREN init mirroring the torch module (PyTorch W layout (out_f, in_f),
    bias (out_f,), all f32)."""
    params = []

    def linear_init(k, fan_in, fan_out, w_bound):
        kw, kb = jax.random.split(k)
        W = jax.random.uniform(kw, (fan_out, fan_in), jnp.float32,
                               minval=-w_bound, maxval=w_bound)
        b_bound = 1.0 / math.sqrt(fan_in)     # torch nn.Linear default bias init
        b = jax.random.uniform(kb, (fan_out,), jnp.float32,
                               minval=-b_bound, maxval=b_bound)
        return W, b

    keys = jax.random.split(key, hidden_layers + 2)
    params.append(linear_init(keys[0], in_features, hidden_features,
                              1.0 / in_features))
    for i in range(hidden_layers):
        bound = math.sqrt(6.0 / hidden_features) / hidden_omega_0
        params.append(linear_init(keys[1 + i], hidden_features,
                                  hidden_features, bound))
    bound = math.sqrt(6.0 / hidden_features) / hidden_omega_0
    params.append(linear_init(keys[-1], hidden_features, out_features, bound))
    return params


def siren_reference(coords, params, outermost_linear=True,
                    first_omega_0=30.0, hidden_omega_0=30.0):
    """Torch-faithful f32 reference: sin(omega * (x @ W.T + b)) per sine layer."""
    h = coords.astype(jnp.float32)
    L = len(params)
    for l, (W, b) in enumerate(params):
        omega = first_omega_0 if l == 0 else hidden_omega_0
        z = h @ jnp.asarray(W, jnp.float32).T + jnp.asarray(b, jnp.float32).reshape(-1)
        if l < L - 1 or not outermost_linear:
            h = jnp.sin(omega * z)
        else:
            h = z
    return h


if __name__ == "__main__":
    key = jax.random.PRNGKey(0)
    k_coords, k_params = jax.random.split(key)

    in_features = 2
    hidden_features = 32
    hidden_layers = 2
    out_features = 3
    N = 2048   # -> even grid (4 steps of 512): balanced across v7x's 2 TCs

    coords = jax.random.uniform(k_coords, (N, in_features), jnp.float32,
                                minval=-1.0, maxval=1.0)
    params = init_siren_params(k_params, in_features, hidden_features,
                               hidden_layers, out_features)

    out, coords_out = siren_forward(coords, params)
    out = jax.block_until_ready(out)

    ref = siren_reference(coords, params)
    assert out.shape == (N, out_features)
    assert coords_out.shape == coords.shape
    max_err = float(jnp.max(jnp.abs(out - ref)))
    assert max_err < 2e-3, f"mismatch vs torch-faithful reference: {max_err}"

    print("KERNEL_OK")
</pallas_src>

<mosaic_0001>
module attributes {stable_mosaic.version = 11 : i64} {
  func.func @kernel(%arg0: i32, %arg1: memref<2x512xf32, #tpu.memory_space<vmem>>, %arg2: memref<32x2xf32, #tpu.memory_space<vmem>>, %arg3: memref<32x32xf32, #tpu.memory_space<vmem>>, %arg4: memref<32x32xf32, #tpu.memory_space<vmem>>, %arg5: memref<3x32xf32, #tpu.memory_space<vmem>>, %arg6: memref<4x32x1xf32, #tpu.memory_space<vmem>>, %arg7: memref<3x512xf32, #tpu.memory_space<vmem>>) attributes {dimension_semantics = [#tpu.dimension_semantics<parallel>], iteration_bounds = array<i64: 4>, scalar_prefetch = 0 : i64, scratch_operands = 0 : i64, tpu.core_type = #tpu.core_type<tc>, window_params = [{transform_indices = @transform_0, window_bounds = array<i64: 2, 512>}, {pipeline_mode = #tpu.pipeline_mode<synchronous>, transform_indices = @transform_1, window_bounds = array<i64: 32, 2>}, {pipeline_mode = #tpu.pipeline_mode<synchronous>, transform_indices = @transform_2, window_bounds = array<i64: 32, 32>}, {pipeline_mode = #tpu.pipeline_mode<synchronous>, transform_indices = @transform_3, window_bounds = array<i64: 32, 32>}, {pipeline_mode = #tpu.pipeline_mode<synchronous>, transform_indices = @transform_4, window_bounds = array<i64: 3, 32>}, {pipeline_mode = #tpu.pipeline_mode<synchronous>, transform_indices = @transform_5, window_bounds = array<i64: 4, 32, 1>}, {transform_indices = @transform_6, window_bounds = array<i64: 3, 512>}]} {
    %c0 = arith.constant 0 : index
    %c0_0 = arith.constant 0 : index
    %0 = vector.load %arg1[%c0, %c0_0] : memref<2x512xf32, #tpu.memory_space<vmem>>, vector<2x512xf32>
    %c0_1 = arith.constant 0 : index
    %c0_2 = arith.constant 0 : index
    %c0_3 = arith.constant 0 : index
    %1 = vector.load %arg6[%c0_1, %c0_2, %c0_3] : memref<4x32x1xf32, #tpu.memory_space<vmem>>, vector<1x32x1xf32>
    %2 = vector.shape_cast %1 : vector<1x32x1xf32> to vector<32x1xf32>
    %c0_4 = arith.constant 0 : index
    %c0_5 = arith.constant 0 : index
    %3 = vector.load %arg2[%c0_4, %c0_5] : memref<32x2xf32, #tpu.memory_space<vmem>>, vector<32x2xf32>
    %4 = vector.extract_strided_slice %3 {offsets = [0, 0], sizes = [32, 1], strides = [1, 1]} : vector<32x2xf32> to vector<32x1xf32>
    %5 = vector.extract_strided_slice %0 {offsets = [0, 0], sizes = [1, 512], strides = [1, 1]} : vector<2x512xf32> to vector<1x512xf32>
    %6 = vector.broadcast %4 : vector<32x1xf32> to vector<32x512xf32>
    %7 = vector.broadcast %5 : vector<1x512xf32> to vector<32x512xf32>
    %8 = arith.mulf %6, %7 : vector<32x512xf32>
    %9 = vector.extract_strided_slice %3 {offsets = [0, 1], sizes = [32, 1], strides = [1, 1]} : vector<32x2xf32> to vector<32x1xf32>
    %10 = vector.extract_strided_slice %0 {offsets = [1, 0], sizes = [1, 512], strides = [1, 1]} : vector<2x512xf32> to vector<1x512xf32>
    %11 = vector.broadcast %9 : vector<32x1xf32> to vector<32x512xf32>
    %12 = vector.broadcast %10 : vector<1x512xf32> to vector<32x512xf32>
    %13 = arith.mulf %11, %12 : vector<32x512xf32>
    %14 = arith.addf %8, %13 : vector<32x512xf32>
    %15 = vector.broadcast %2 : vector<32x1xf32> to vector<32x512xf32>
    %16 = arith.addf %14, %15 : vector<32x512xf32>
    %17 = math.sin %16 : vector<32x512xf32>
    %c1 = arith.constant 1 : index
    %c0_6 = arith.constant 0 : index
    %c0_7 = arith.constant 0 : index
    %18 = vector.load %arg6[%c1, %c0_6, %c0_7] : memref<4x32x1xf32, #tpu.memory_space<vmem>>, vector<1x32x1xf32>
    %19 = vector.shape_cast %18 : vector<1x32x1xf32> to vector<32x1xf32>
    %c0_8 = arith.constant 0 : index
    %c0_9 = arith.constant 0 : index
    %20 = vector.load %arg3[%c0_8, %c0_9] : memref<32x32xf32, #tpu.memory_space<vmem>>, vector<32x32xf32>
    %cst = arith.constant dense<0.000000e+00> : vector<32x512xf32>
    %21 = tpu.matmul %20, %17, %cst {dimension_numbers = #tpu.dot_dimension_numbers<[1], [0], [0], [1], [0, 0, 1, 1], [], []>} : vector<32x32xf32>, vector<32x512xf32>, vector<32x512xf32> -> vector<32x512xf32>
    %22 = vector.broadcast %19 : vector<32x1xf32> to vector<32x512xf32>
    %23 = arith.addf %21, %22 : vector<32x512xf32>
    %24 = math.sin %23 : vector<32x512xf32>
    %c2 = arith.constant 2 : index
    %c0_10 = arith.constant 0 : index
    %c0_11 = arith.constant 0 : index
    %25 = vector.load %arg6[%c2, %c0_10, %c0_11] : memref<4x32x1xf32, #tpu.memory_space<vmem>>, vector<1x32x1xf32>
    %26 = vector.shape_cast %25 : vector<1x32x1xf32> to vector<32x1xf32>
    %c0_12 = arith.constant 0 : index
    %c0_13 = arith.constant 0 : index
    %27 = vector.load %arg4[%c0_12, %c0_13] : memref<32x32xf32, #tpu.memory_space<vmem>>, vector<32x32xf32>
    %cst_14 = arith.constant dense<0.000000e+00> : vector<32x512xf32>
    %28 = tpu.matmul %27, %24, %cst_14 {dimension_numbers = #tpu.dot_dimension_numbers<[1], [0], [0], [1], [0, 0, 1, 1], [], []>} : vector<32x32xf32>, vector<32x512xf32>, vector<32x512xf32> -> vector<32x512xf32>
    %29 = vector.broadcast %26 : vector<32x1xf32> to vector<32x512xf32>
    %30 = arith.addf %28, %29 : vector<32x512xf32>
    %31 = math.sin %30 : vector<32x512xf32>
    %c3 = arith.constant 3 : index
    %c0_15 = arith.constant 0 : index
    %c0_16 = arith.constant 0 : index
    %32 = vector.load %arg6[%c3, %c0_15, %c0_16] : memref<4x32x1xf32, #tpu.memory_space<vmem>>, vector<1x32x1xf32>
    %33 = vector.shape_cast %32 : vector<1x32x1xf32> to vector<32x1xf32>
    %34 = vector.extract_strided_slice %33 {offsets = [0, 0], sizes = [3, 1], strides = [1, 1]} : vector<32x1xf32> to vector<3x1xf32>
    %c0_17 = arith.constant 0 : index
    %c0_18 = arith.constant 0 : index
    %35 = vector.load %arg5[%c0_17, %c0_18] : memref<3x32xf32, #tpu.memory_space<vmem>>, vector<3x32xf32>
    %cst_19 = arith.constant dense<0.000000e+00> : vector<3x512xf32>
    %36 = tpu.matmul %35, %31, %cst_19 {dimension_numbers = #tpu.dot_dimension_numbers<[1], [0], [0], [1], [0, 0, 1, 1], [], []>} : vector<3x32xf32>, vector<32x512xf32>, vector<3x512xf32> -> vector<3x512xf32>
    %37 = vector.broadcast %34 : vector<3x1xf32> to vector<3x512xf32>
    %38 = arith.addf %36, %37 : vector<3x512xf32>
    %c0_20 = arith.constant 0 : index
    %c0_21 = arith.constant 0 : index
    %39 = vector.load %arg7[%c0_20, %c0_21] : memref<3x512xf32, #tpu.memory_space<vmem>>, vector<3x512xf32>
    tpu.vector_store %arg7[%c0_20, %c0_21], %38 {strides = array<i32>} : memref<3x512xf32, #tpu.memory_space<vmem>>, vector<3x512xf32>,
    return
  }
  func.func @transform_0(%arg0: i32) -> (i32, i32) {
    %c0_i32 = arith.constant 0 : i32
    %c0_i32_0 = arith.constant 0 : i32
    return %c0_i32, %arg0 : i32, i32
  }
  func.func @transform_1(%arg0: i32) -> (i32, i32) {
    %c0_i32 = arith.constant 0 : i32
    %c0_i32_0 = arith.constant 0 : i32
    %c0_i32_1 = arith.constant 0 : i32
    return %c0_i32, %c0_i32_0 : i32, i32
  }
  func.func @transform_2(%arg0: i32) -> (i32, i32) {
    %c0_i32 = arith.constant 0 : i32
    %c0_i32_0 = arith.constant 0 : i32
    %c0_i32_1 = arith.constant 0 : i32
    return %c0_i32, %c0_i32_0 : i32, i32
  }
  func.func @transform_3(%arg0: i32) -> (i32, i32) {
    %c0_i32 = arith.constant 0 : i32
    %c0_i32_0 = arith.constant 0 : i32
    %c0_i32_1 = arith.constant 0 : i32
    return %c0_i32, %c0_i32_0 : i32, i32
  }
  func.func @transform_4(%arg0: i32) -> (i32, i32) {
    %c0_i32 = arith.constant 0 : i32
    %c0_i32_0 = arith.constant 0 : i32
    %c0_i32_1 = arith.constant 0 : i32
    return %c0_i32, %c0_i32_0 : i32, i32
  }
  func.func @transform_5(%arg0: i32) -> (i32, i32, i32) {
    %c0_i32 = arith.constant 0 : i32
    %c0_i32_0 = arith.constant 0 : i32
    %c0_i32_1 = arith.constant 0 : i32
    %c0_i32_2 = arith.constant 0 : i32
    return %c0_i32, %c0_i32_0, %c0_i32_1 : i32, i32, i32
  }
  func.func @transform_6(%arg0: i32) -> (i32, i32) {
    %c0_i32 = arith.constant 0 : i32
    %c0_i32_0 = arith.constant 0 : i32
    return %c0_i32, %arg0 : i32, i32
  }
}

</mosaic_0001>

<llo_original>
// kernel: tpu_custom_call.1
$region0: #{tpu_custom_call.1}
  #allocation0 [shape = 'u32[]', space=smem, size = 0x4, offset = 0x4, fixed_abs, tag = 'smem constant byte address 0x4 - core index']
  #allocation1 [shape = 'u32[144,128]{1,0:T(1,128)}', space=vmem, size = 0x12000, scoped, tag = 'internal scratch']
  %s0 = inlined_call_operand.vmem [shape: f32[2,2048], index: 0, kind: input, shape index: {}]
  %s1 = inlined_call_operand.vmem [shape: f32[32,2], index: 1, kind: input, shape index: {}]
  %s2 = inlined_call_operand.vmem [shape: f32[32,32], index: 2, kind: input, shape index: {}]
  %s3 = inlined_call_operand.vmem [shape: f32[32,32], index: 3, kind: input, shape index: {}]
  %s4 = inlined_call_operand.vmem [shape: f32[3,32], index: 4, kind: input, shape index: {}]
  %s5 = inlined_call_operand.vmem [shape: f32[4,32,1], index: 5, kind: input, shape index: {}]
  %s6 = inlined_call_operand.hbm [shape: f32[3,2048], index: 6, kind: output, shape index: {}]
  %s7 = sld [smem:[#allocation0]]
  $region57: #{tpu_custom_call.1} parent=0
    _
  %s9 = ssub.s32 1, %s7
  %s10 = scalar_select 0, %s9, %s7
  $region1: #{tpu_custom_call.1} parent=0
    #allocation2 [shape = 'u8[16384]{0}', space=vmem, size = 0x4000, scoped, tag = 'output window, operand 0']
    #allocation3 [shape = 's32[2]{0}', space=sflag, size = 0x8, scoped, tag = 'scoped memory for tpu_custom_call.1']
    %11 = vsyncpa [#allocation3], 0
    %s12 = scalar_lea.sflag [#allocation3], 1
    %13 = vsyncpa %s12, 0
    loop: start=0, step=1, limit=6
    $region2: #{tpu_custom_call.1} parent=1 // loop_pre_header
      _
    $region3: #{tpu_custom_call.1} parent=1 // loop_header
      %s15 = sphi 0, %s19
      %p16 = scmp.ge.s32.totalorder %s15, 6
      %s25 = sphi 0, %s27
      %s28 = sphi 0, %s25
      %s29 = sphi 0, %s28
      %s45 = sphi 0, %s29
      %s49 = sphi 0, %s49
      %s51 = sphi 0, %s49
      %s52 = sphi 0, %s51
      %s66 = sphi 0, %s52
      %s70 = sphi 0, %s70
      %s72 = sphi 0, %s70
      %s73 = sphi 0, %s72
      %s87 = sphi 0, %s73
      %s91 = sphi 0, %s91
      %s93 = sphi 0, %s91
      %s94 = sphi 0, %s93
      %s108 = sphi 0, %s94
      %s112 = sphi 0, %s112
      %s114 = sphi 0, %s112
      %s115 = sphi 0, %s114
      %s129 = sphi 0, %s115
      %s133 = sphi 0, %s133
      %s135 = sphi 0, %s133
      %s136 = sphi 0, %s135
      %s150 = sphi 0, %s136
      %s156 = sphi 0, %s158
      %s159 = sphi 0, %s156
      %s160 = sphi 0, %s159
      %s176 = sphi 0, %s160
    $region4: #{tpu_custom_call.1} parent=1 // loop_header_branch
      %18 = sbr.rel (%p16) target = $region8
    $region5: #{tpu_custom_call.1} parent=1 // loop_body
      %s20 = ssub.s32 %s15, 1
      %s21 = ssub.s32 %s15, 2
      %s22 = sadd.s32 %s15, 1
      %s23 = ssub.s32 %s15, %s22
      %p24 = scmp.eq.s32.totalorder %s23, 0
      %s26 = sadd.s32 %s25, 1
      %s27 = scalar_select %p24, %s25, %s26
      %p30 = pneg %p24
      %p31 = scmp.eq.s32.totalorder %s15, 3
      %p32 = por %p30, %p31
      %p33 = scmp.ne.s32.totalorder %s25, %s28
      %p34 = scmp.eq.s32.totalorder %s15, 0
      %p35 = por %p33, %p34
      %p36 = scmp.ne.s32.totalorder %s25, %s28
      %p37 = scmp.eq.s32.totalorder %s20, 3
      %p38 = por %p36, %p37
      %p39 = scmp.ne.s32.totalorder %s28, %s29
      %p40 = scmp.eq.s32.totalorder %s20, 0
      %p41 = por %p39, %p40
      %p42 = scmp.ne.s32.totalorder %s28, %s29
      %p43 = scmp.eq.s32.totalorder %s21, 3
      %p44 = por %p42, %p43
      %p46 = scmp.ne.s32.totalorder %s29, %s45
      %p47 = scmp.eq.s32.totalorder %s21, 0
      %p48 = por %p46, %p47
      %s50 = sadd.s32 %s49, 1
      %p53 = scmp.eq.s32.totalorder %s15, 3
      %p54 = scmp.ne.s32.totalorder %s49, %s51
      %p55 = scmp.eq.s32.totalorder %s15, 0
      %p56 = por %p54, %p55
      %p57 = scmp.ne.s32.totalorder %s49, %s51
      %p58 = scmp.eq.s32.totalorder %s20, 3
      %p59 = por %p57, %p58
      %p60 = scmp.ne.s32.totalorder %s51, %s52
      %p61 = scmp.eq.s32.totalorder %s20, 0
      %p62 = por %p60, %p61
      %p63 = scmp.ne.s32.totalorder %s51, %s52
      %p64 = scmp.eq.s32.totalorder %s21, 3
      %p65 = por %p63, %p64
      %p67 = scmp.ne.s32.totalorder %s52, %s66
      %p68 = scmp.eq.s32.totalorder %s21, 0
      %p69 = por %p67, %p68
      %s71 = sadd.s32 %s70, 1
      %p74 = scmp.eq.s32.totalorder %s15, 3
      %p75 = scmp.ne.s32.totalorder %s70, %s72
      %p76 = scmp.eq.s32.totalorder %s15, 0
      %p77 = por %p75, %p76
      %p78 = scmp.ne.s32.totalorder %s70, %s72
      %p79 = scmp.eq.s32.totalorder %s20, 3
      %p80 = por %p78, %p79
      %p81 = scmp.ne.s32.totalorder %s72, %s73
      %p82 = scmp.eq.s32.totalorder %s20, 0
      %p83 = por %p81, %p82
      %p84 = scmp.ne.s32.totalorder %s72, %s73
      %p85 = scmp.eq.s32.totalorder %s21, 3
      %p86 = por %p84, %p85
      %p88 = scmp.ne.s32.totalorder %s73, %s87
      %p89 = scmp.eq.s32.totalorder %s21, 0
      %p90 = por %p88, %p89
      %s92 = sadd.s32 %s91, 1
      %p95 = scmp.eq.s32.totalorder %s15, 3
      %p96 = scmp.ne.s32.totalorder %s91, %s93
      %p97 = scmp.eq.s32.totalorder %s15, 0
      %p98 = por %p96, %p97
      %p99 = scmp.ne.s32.totalorder %s91, %s93
      %p100 = scmp.eq.s32.totalorder %s20, 3
      %p101 = por %p99, %p100
      %p102 = scmp.ne.s32.totalorder %s93, %s94
      %p103 = scmp.eq.s32.totalorder %s20, 0
      %p104 = por %p102, %p103
      %p105 = scmp.ne.s32.totalorder %s93, %s94
      %p106 = scmp.eq.s32.totalorder %s21, 3
      %p107 = por %p105, %p106
      %p109 = scmp.ne.s32.totalorder %s94, %s108
      %p110 = scmp.eq.s32.totalorder %s21, 0
      %p111 = por %p109, %p110
      %s113 = sadd.s32 %s112, 1
      %p116 = scmp.eq.s32.totalorder %s15, 3
      %p117 = scmp.ne.s32.totalorder %s112, %s114
      %p118 = scmp.eq.s32.totalorder %s15, 0
      %p119 = por %p117, %p118
      %p120 = scmp.ne.s32.totalorder %s112, %s114
      %p121 = scmp.eq.s32.totalorder %s20, 3
      %p122 = por %p120, %p121
      %p123 = scmp.ne.s32.totalorder %s114, %s115
      %p124 = scmp.eq.s32.totalorder %s20, 0
      %p125 = por %p123, %p124
      %p126 = scmp.ne.s32.totalorder %s114, %s115
      %p127 = scmp.eq.s32.totalorder %s21, 3
      %p128 = por %p126, %p127
      %p130 = scmp.ne.s32.totalorder %s115, %s129
      %p131 = scmp.eq.s32.totalorder %s21, 0
      %p132 = por %p130, %p131
      %s134 = sadd.s32 %s133, 1
      %p137 = scmp.eq.s32.totalorder %s15, 3
      %p138 = scmp.ne.s32.totalorder %s133, %s135
      %p139 = scmp.eq.s32.totalorder %s15, 0
      %p140 = por %p138, %p139
      %p141 = scmp.ne.s32.totalorder %s133, %s135
      %p142 = scmp.eq.s32.totalorder %s20, 3
      %p143 = por %p141, %p142
      %p144 = scmp.ne.s32.totalorder %s135, %s136
      %p145 = scmp.eq.s32.totalorder %s20, 0
      %p146 = por %p144, %p145
      %p147 = scmp.ne.s32.totalorder %s135, %s136
      %p148 = scmp.eq.s32.totalorder %s21, 3
      %p149 = por %p147, %p148
      %p151 = scmp.ne.s32.totalorder %s136, %s150
      %p152 = scmp.eq.s32.totalorder %s21, 0
      %p153 = por %p151, %p152
      %s154 = ssub.s32 %s15, %s22
      %p155 = scmp.eq.s32.totalorder %s154, 0
      %s157 = sadd.s32 %s156, 1
      %s158 = scalar_select %p155, %s156, %s157
      %p161 = pneg %p155
      %p162 = scmp.eq.s32.totalorder %s15, 3
      %p163 = por %p161, %p162
      %p164 = scmp.ne.s32.totalorder %s156, %s159
      %p165 = scmp.eq.s32.totalorder %s15, 0
      %p166 = por %p164, %p165
      %p167 = scmp.ne.s32.totalorder %s156, %s159
      %p168 = scmp.eq.s32.totalorder %s20, 3
      %p169 = por %p167, %p168
      %p170 = scmp.ne.s32.totalorder %s159, %s160
      %p171 = scmp.eq.s32.totalorder %s20, 0
      %p172 = por %p170, %p171
      %p173 = scmp.ne.s32.totalorder %s159, %s160
      %p174 = scmp.eq.s32.totalorder %s21, 3
      %p175 = por %p173, %p174
      %p177 = scmp.ne.s32.totalorder %s160, %s176
      %p178 = scmp.eq.s32.totalorder %s21, 0
      %p179 = por %p177, %p178
      %p180 = scmp.le.s32.totalorder 1, %s15
      %p181 = scmp.lt.s32.totalorder %s15, 5
      %p182 = pnand %p180, %p181
      %p183 = pneg %p182
      // Predicated region
      $region9: #{tpu_custom_call.1} parent=5 // pred_check
        _
      $region10: #{tpu_custom_call.1} parent=5 // pred_check_branch
        %185 = sbr.rel (%p182) target = $region12
      $region11: #{tpu_custom_call.1} parent=5 // pred_region
        %s186 = ssub.s32 %s15, 1
        // Predicated region
        $region13: #{tpu_custom_call.1} parent=11 // pred_check
          %p187 = pneg %p62
        $region14: #{tpu_custom_call.1} parent=11 // pred_check_branch
          %189 = sbr.rel (%p187) target = $region16
        $region15: #{tpu_custom_call.1} parent=11 // pred_region
          _
        $region16: #{tpu_custom_call.1} parent=11 // pred_fallthru
          _
        // Predicated region
        $region17: #{tpu_custom_call.1} parent=11 // pred_check
          %p190 = pneg %p83
        $region18: #{tpu_custom_call.1} parent=11 // pred_check_branch
          %192 = sbr.rel (%p190) target = $region20
        $region19: #{tpu_custom_call.1} parent=11 // pred_region
          _
        $region20: #{tpu_custom_call.1} parent=11 // pred_fallthru
          _
        // Predicated region
        $region21: #{tpu_custom_call.1} parent=11 // pred_check
          %p193 = pneg %p104
        $region22: #{tpu_custom_call.1} parent=11 // pred_check_branch
          %195 = sbr.rel (%p193) target = $region24
        $region23: #{tpu_custom_call.1} parent=11 // pred_region
          _
        $region24: #{tpu_custom_call.1} parent=11 // pred_fallthru
          _
        // Predicated region
        $region25: #{tpu_custom_call.1} parent=11 // pred_check
          %p196 = pneg %p125
        $region26: #{tpu_custom_call.1} parent=11 // pred_check_branch
          %198 = sbr.rel (%p196) target = $region28
        $region27: #{tpu_custom_call.1} parent=11 // pred_region
          _
        $region28: #{tpu_custom_call.1} parent=11 // pred_fallthru
          _
        // Predicated region
        $region29: #{tpu_custom_call.1} parent=11 // pred_check
          %p199 = pneg %p146
        $region30: #{tpu_custom_call.1} parent=11 // pred_check_branch
          %201 = sbr.rel (%p199) target = $region32
        $region31: #{tpu_custom_call.1} parent=11 // pred_region
          _
        $region32: #{tpu_custom_call.1} parent=11 // pred_fallthru
          _
      $region12: #{tpu_custom_call.1} parent=5 // pred_fallthru
        _
      %p202 = scmp.lt.s32.totalorder %s15, 4
      // Predicated region
      $region33: #{tpu_custom_call.1} parent=5 // pred_check
        %p203 = pneg %p202
      $region34: #{tpu_custom_call.1} parent=5 // pred_check_branch
        %205 = sbr.rel (%p203) target = $region36
      $region35: #{tpu_custom_call.1} parent=5 // pred_region
        // Predicated region
        $region37: #{tpu_custom_call.1} parent=35 // pred_check
          %p206 = pneg %p35
        $region38: #{tpu_custom_call.1} parent=35 // pred_check_branch
          %208 = sbr.rel (%p206) target = $region40
        $region39: #{tpu_custom_call.1} parent=35 // pred_region
          %s209 = smul.u32 4, %s15
          %p210 = scmp.lt.s32.totalorder %s209, 15
          %s211 = scalar_select %p210, %s209, 15
          %s212 = smul.addr %s211, 2
          %s213 = scalar_lea.vmem %s0, %s212
          %s214 = smul.u32 4, %s15
        $region40: #{tpu_custom_call.1} parent=35 // pred_fallthru
          _
      $region36: #{tpu_custom_call.1} parent=5 // pred_fallthru
        _
      %p215 = scmp.le.s32.totalorder 1, %s15
      %p216 = scmp.lt.s32.totalorder %s15, 5
      %p217 = pnand %p215, %p216
      %p218 = pneg %p217
      // Predicated region
      $region41: #{tpu_custom_call.1} parent=5 // pred_check
        _
      $region42: #{tpu_custom_call.1} parent=5 // pred_check_branch
        %220 = sbr.rel (%p217) target = $region44
      $region43: #{tpu_custom_call.1} parent=5 // pred_region
        %s221 = ssub.s32 %s15, 1
        %s222 = smul.u32 4, %s20
        %p223 = scmp.lt.s32.totalorder %s222, 15
        %s224 = scalar_select %p223, %s222, 15
        %s225 = smul.addr %s224, 2
        %s226 = scalar_lea.vmem %s0, %s225
        %p227 = pneg %p41
        %p228 = pneg %p38
        %p229 = pneg %p62
        %p230 = pneg %p59
        %p231 = pneg %p83
        %p232 = pneg %p80
        %p233 = pneg %p104
        %p234 = pneg %p101
        %p235 = pneg %p125
        %p236 = pneg %p122
        %p237 = pneg %p146
        %p238 = pneg %p143
        %p239 = pneg %p172
        %p240 = pneg %p169
        %s241 = sand.u32 %s159, 1
        %s242 = scalar_lea.sflag [#allocation3], %s241
        %s243 = sand.u32 %s159, 1
        %s244 = smul.addr %s243, 16
        %s245 = scalar_lea.vmem [#allocation2], %s244
        %s246 = smul.u32 4, %s20
        %p247 = scmp.lt.s32.totalorder %s246, 15
        %s248 = scalar_select %p247, %s246, 15
        %s249 = smul.addr %s248, 2
        %s250 = scalar_lea.vmem %s0, %s249
        %s251 = smul.u32 4, %s20
        %s252 = smul.u32 4, %s20
        %v253 = vld [vmem:[%s250] sm:$0xff]
        %v254 = vld [vmem:[%s5] sm:$0xff]
        %v255 = vld [vmem:[%s5 + $0x8] sm:$0xff]
        %v256 = vld [vmem:[%s5 + $0x10] sm:$0xff]
        %v257 = vld [vmem:[%s5 + $0x18] sm:$0xff]
        %v258 = vld [vmem:[%s1] sm:$0xff]
        %v259 = vld [vmem:[%s1 + $0x8] sm:$0xff]
        %v260 = vld [vmem:[%s1 + $0x10] sm:$0xff]
        %v261 = vld [vmem:[%s1 + $0x18] sm:$0xff]
        %263 = vset.pattern.permute.xlu0 0
        %264 = vperm.xlu0 %263, %v258
        %v265 = vpop.permute.xlu0 %264
        %268 = vset.pattern.permute.xlu0 0
        %269 = vperm.xlu0 %268, %v259
        %v270 = vpop.permute.xlu0 %269
        %273 = vset.pattern.permute.xlu0 0
        %274 = vperm.xlu0 %273, %v260
        %v275 = vpop.permute.xlu0 %274
        %278 = vset.pattern.permute.xlu0 0
        %279 = vperm.xlu0 %278, %v261
        %v280 = vpop.permute.xlu0 %279
        %v283 = vlaneseq
        %v284 = vshrl.u32 %v283, 7
        %v285 = vsub.s32 0, %v284
        %v286 = vrot.slane %v253, %v285
        %v287 = vlaneseq
        %v288 = vshrl.u32 %v287, 7
        %v289 = vsub.s32 2, %v288
        %v290 = vrot.slane %v253, %v289
        %v291 = vlaneseq
        %v292 = vshrl.u32 %v291, 7
        %v293 = vsub.s32 4, %v292
        %v294 = vrot.slane %v253, %v293
        %v295 = vlaneseq
        %v296 = vshrl.u32 %v295, 7
        %v297 = vsub.s32 6, %v296
        %v298 = vrot.slane %v253, %v297
        %v303 = vlaneseq
        %v304 = vshrl.u32 %v303, 7
        %v305 = vsub.s32 0, %v304
        %v306 = vrot.slane %v286, %v305
        %v307 = vlaneseq
        %v308 = vshrl.u32 %v307, 7
        %v309 = vsub.s32 0, %v308
        %v310 = vrot.slane %v290, %v309
        %v311 = vlaneseq
        %v312 = vshrl.u32 %v311, 7
        %v313 = vsub.s32 0, %v312
        %v314 = vrot.slane %v294, %v313
        %v315 = vlaneseq
        %v316 = vshrl.u32 %v315, 7
        %v317 = vsub.s32 0, %v316
        %v318 = vrot.slane %v298, %v317
        %v319 = vmul.f32 %v265, %v306
        %v320 = vmul.f32 %v265, %v310
        %v321 = vmul.f32 %v265, %v314
        %v322 = vmul.f32 %v265, %v318
        %v323 = vmul.f32 %v270, %v306
        %v324 = vmul.f32 %v270, %v310
        %v325 = vmul.f32 %v270, %v314
        %v326 = vmul.f32 %v270, %v318
        %v327 = vmul.f32 %v275, %v306
        %v328 = vmul.f32 %v275, %v310
        %v329 = vmul.f32 %v275, %v314
        %v330 = vmul.f32 %v275, %v318
        %v331 = vmul.f32 %v280, %v306
        %v332 = vmul.f32 %v280, %v310
        %v333 = vmul.f32 %v280, %v314
        %v334 = vmul.f32 %v280, %v318
        %335 = vset.pattern.permute.xlu0 1
        %336 = vperm.xlu0 %335, %v258
        %v337 = vpop.permute.xlu0 %336
        %339 = vset.pattern.permute.xlu0 1
        %340 = vperm.xlu0 %339, %v259
        %v341 = vpop.permute.xlu0 %340
        %343 = vset.pattern.permute.xlu0 1
        %344 = vperm.xlu0 %343, %v260
        %v345 = vpop.permute.xlu0 %344
        %347 = vset.pattern.permute.xlu0 1
        %348 = vperm.xlu0 %347, %v261
        %v349 = vpop.permute.xlu0 %348
        %v351 = vlaneseq
        %v352 = vshrl.u32 %v351, 7
        %v353 = vsub.s32 1, %v352
        %v354 = vrot.slane %v253, %v353
        %v355 = vlaneseq
        %v356 = vshrl.u32 %v355, 7
        %v357 = vsub.s32 3, %v356
        %v358 = vrot.slane %v253, %v357
        %v359 = vlaneseq
        %v360 = vshrl.u32 %v359, 7
        %v361 = vsub.s32 5, %v360
        %v362 = vrot.slane %v253, %v361
        %v363 = vlaneseq
        %v364 = vshrl.u32 %v363, 7
        %v365 = vsub.s32 7, %v364
        %v366 = vrot.slane %v253, %v365
        %v371 = vlaneseq
        %v372 = vshrl.u32 %v371, 7
        %v373 = vsub.s32 1, %v372
        %v374 = vrot.slane %v354, %v373
        %v375 = vlaneseq
        %v376 = vshrl.u32 %v375, 7
        %v377 = vsub.s32 1, %v376
        %v378 = vrot.slane %v358, %v377
        %v379 = vlaneseq
        %v380 = vshrl.u32 %v379, 7
        %v381 = vsub.s32 1, %v380
        %v382 = vrot.slane %v362, %v381
        %v383 = vlaneseq
        %v384 = vshrl.u32 %v383, 7
        %v385 = vsub.s32 1, %v384
        %v386 = vrot.slane %v366, %v385
        %v387 = vmul.f32 %v337, %v374
        %v388 = vmul.f32 %v337, %v378
        %v389 = vmul.f32 %v337, %v382
        %v390 = vmul.f32 %v337, %v386
        %v391 = vmul.f32 %v341, %v374
        %v392 = vmul.f32 %v341, %v378
        %v393 = vmul.f32 %v341, %v382
        %v394 = vmul.f32 %v341, %v386
        %v395 = vmul.f32 %v345, %v374
        %v396 = vmul.f32 %v345, %v378
        %v397 = vmul.f32 %v345, %v382
        %v398 = vmul.f32 %v345, %v386
        %v399 = vmul.f32 %v349, %v374
        %v400 = vmul.f32 %v349, %v378
        %v401 = vmul.f32 %v349, %v382
        %v402 = vmul.f32 %v349, %v386
        %v403 = vadd.f32 %v319, %v387
        %v404 = vadd.f32 %v320, %v388
        %v405 = vadd.f32 %v321, %v389
        %v406 = vadd.f32 %v322, %v390
        %v407 = vadd.f32 %v323, %v391
        %v408 = vadd.f32 %v324, %v392
        %v409 = vadd.f32 %v325, %v393
        %v410 = vadd.f32 %v326, %v394
        %v411 = vadd.f32 %v327, %v395
        %v412 = vadd.f32 %v328, %v396
        %v413 = vadd.f32 %v329, %v397
        %v414 = vadd.f32 %v330, %v398
        %v415 = vadd.f32 %v331, %v399
        %v416 = vadd.f32 %v332, %v400
        %v417 = vadd.f32 %v333, %v401
        %v418 = vadd.f32 %v334, %v402
        %420 = vset.pattern.permute.xlu0 0
        %421 = vperm.xlu0 %420, %v254
        %v422 = vpop.permute.xlu0 %421
        %425 = vset.pattern.permute.xlu0 0
        %426 = vperm.xlu0 %425, %v255
        %v427 = vpop.permute.xlu0 %426
        %430 = vset.pattern.permute.xlu0 0
        %431 = vperm.xlu0 %430, %v256
        %v432 = vpop.permute.xlu0 %431
        %435 = vset.pattern.permute.xlu0 0
        %436 = vperm.xlu0 %435, %v257
        %v437 = vpop.permute.xlu0 %436
        %v439 = vadd.f32 %v403, %v422
        %v440 = vadd.f32 %v404, %v422
        %v441 = vadd.f32 %v405, %v422
        %v442 = vadd.f32 %v406, %v422
        %v443 = vadd.f32 %v407, %v427
        %v444 = vadd.f32 %v408, %v427
        %v445 = vadd.f32 %v409, %v427
        %v446 = vadd.f32 %v410, %v427
        %v447 = vadd.f32 %v411, %v432
        %v448 = vadd.f32 %v412, %v432
        %v449 = vadd.f32 %v413, %v432
        %v450 = vadd.f32 %v414, %v432
        %v451 = vadd.f32 %v415, %v437
        %v452 = vadd.f32 %v416, %v437
        %v453 = vadd.f32 %v417, %v437
        %v454 = vadd.f32 %v418, %v437
        %v455 = vand.u32 2147483647, %v439
        %vm456 = vcmp.le.f32.partialorder %v455, 0.7853982
        %vm457 = vcmp.lt.s32.totalorder %v439, 0
        %v458 = vand.u32 %v439, 2139095040
        %v459 = vshrl.u32 %v458, 23
        %v460 = vsub.s32 %v459, 127
        %v461 = vand.u32 2147483647, %v439
        %v462 = vand.u32 %v461, 8388607
        %v463 = vor.u32 %v462, 8388608
        %v464 = vsub.s32 0, %v463
        %v465 = vadd.s32 %v460, 1
        %vm466 = vcmp.gt.s32.totalorder %v465, 0
        %v467 = vsel %vm466, %v465, 0
        %v468 = vshrl.u32 %v467, 5
        %v469 = vand.u32 %v467, 31
        %v470 = vsub.s32 32, %v469
        %v471 = vshrl.u32 683565275, %v470
        %v472 = vshll.u32 683565275, %v469
        %v473 = vshrl.u32 2475754826, %v470
        %v474 = vor.u32 %v472, %v473
        %v475 = vshll.u32 2475754826, %v469
        %v476 = vshrl.u32 2131351028, %v470
        %v477 = vor.u32 %v475, %v476
        %v478 = vshll.u32 2131351028, %v469
        %v479 = vshrl.u32 2102212464, %v470
        %v480 = vor.u32 %v478, %v479
        %v481 = vshll.u32 2102212464, %v469
        %v482 = vshrl.u32 920167782, %v470
        %v483 = vor.u32 %v481, %v482
        %v484 = vshll.u32 920167782, %v469
        %v485 = vshrl.u32 1326507024, %v470
        %v486 = vor.u32 %v484, %v485
        %vm487 = vcmp.lt.s32.totalorder %v468, 1
        %vm488 = vcmp.lt.s32.totalorder %v468, 2
        %vm489 = vcmp.lt.s32.totalorder %v468, 3
        %vm490 = vcmp.lt.s32.totalorder %v468, 4
        %v491 = vsel %vm487, %v471, %v474
        %v492 = vsel %vm490, %v480, 2102212464
        %v493 = vsel %vm489, %v477, %v492
        %v494 = vsel %vm488, %v491, %v493
        %v495 = vsel %vm487, %v474, %v477
        %v496 = vsel %vm490, %v483, 920167782
        %v497 = vsel %vm489, %v480, %v496
        %v498 = vsel %vm488, %v495, %v497
        %v499 = vsel %vm487, %v477, %v480
        %v500 = vsel %vm490, %v486, 1326507024
        %v501 = vsel %vm489, %v483, %v500
        %v502 = vsel %vm488, %v499, %v501
        %v503 = vshll.u32 %v463, 8
        %v504 = vmul.u32.u64.compose %v503, %v502
        %v505 = vextract.low.u32 %v504
        %v506 = vextract.high.u32 %v504
        %v507 = vmul.u32.u64.compose %v503, %v498
        %v508 = vextract.low.u32 %v507
        %v509 = vextract.high.u32 %v507
        %v510 = vmul.u32 %v503, %v494
        %v511 = vadd.s32 %v506, %v508
        %vm512 = vc.u32 %v506, %v508
        %v513 = vadd.s32 %v509, 1
        %v514 = vsel %vm512, %v513, %v509
        %v515 = vadd.s32 %v510, %v514
        %v516 = vadd.s32 %v515, 536870912
        %v517 = vshrl.u32 %v516, 30
        %v518 = vshll.u32 %v517, 30
        %v519 = vsub.s32 %v515, %v518
        %vm520 = vcmp.lt.s32.totalorder %v519, 0
        %v521 = vsub.s32 0, %v519
        %v522 = vsel %vm520, %v521, %v519
        %v523 = vclz %v522
        %v524 = vsub.s32 %v523, 2
        %vm525 = vcmp.gt.s32.totalorder 0, %v524
        %v526 = vsel %vm525, 0, %v524
        %v527 = vsub.s32 32, %v526
        %v528 = vshll.u32 %v519, %v526
        %v529 = vshrl.u32 %v511, %v527
        %v530 = vor.u32 %v528, %v529
        %v531 = vsub.s32 4294967266, %v526
        %v532 = vadd.s32 %v531, 127
        %v533 = vshll.u32 %v532, 23
        %v534 = vor.u32 4788187, %v533
        %v535 = vand.u32 2147483647, %v534
        %v537 = vcvt.s32.f32 %v530
        %v538 = vmul.f32 %v537, %v535
        %v539 = vxor.u32 %v538, 2147483648
        %v540 = vsel %vm457, %v539, %v538
        %v541 = vsub.s32 4, %v517
        %v542 = vsel %vm457, %v541, %v517
        %v543 = vsel %vm456, %v439, %v540
        %v544 = vsel %vm456, 0, %v542
        %v545 = vcosq.f32.pop %v543
        %v546 = vsinq.f32.pop %v543
        %vm547 = vweird.f32 %v439
        %v548 = vadd.s32 %v544, 3
        %v549 = vand.u32 %v548, 3
        %vm550 = vcmp.lt.s32.totalorder %v549, 2
        %vm551 = vcmp.eq.s32.totalorder %v549, 0
        %v552 = vxor.u32 %v546, 2147483648
        %v553 = vsel %vm551, %v545, %v552
        %vm554 = vcmp.eq.s32.totalorder %v549, 2
        %v555 = vxor.u32 %v545, 2147483648
        %v556 = vsel %vm554, %v555, %v546
        %v557 = vsel %vm550, %v553, %v556
        %v558 = vsel %vm547, nan, %v557
        %v559 = vand.u32 2147483647, %v440
        %vm560 = vcmp.le.f32.partialorder %v559, 0.7853982
        %vm561 = vcmp.lt.s32.totalorder %v440, 0
        %v562 = vand.u32 %v440, 2139095040
        %v563 = vshrl.u32 %v562, 23
        %v564 = vsub.s32 %v563, 127
        %v565 = vand.u32 2147483647, %v440
        %v566 = vand.u32 %v565, 8388607
        %v567 = vor.u32 %v566, 8388608
        %v568 = vsub.s32 0, %v567
        %v569 = vadd.s32 %v564, 1
        %vm570 = vcmp.gt.s32.totalorder %v569, 0
        %v571 = vsel %vm570, %v569, 0
        %v572 = vshrl.u32 %v571, 5
        %v573 = vand.u32 %v571, 31
        %v574 = vsub.s32 32, %v573
        %v575 = vshrl.u32 683565275, %v574
        %v576 = vshll.u32 683565275, %v573
        %v577 = vshrl.u32 2475754826, %v574
        %v578 = vor.u32 %v576, %v577
        %v579 = vshll.u32 2475754826, %v573
        %v580 = vshrl.u32 2131351028, %v574
        %v581 = vor.u32 %v579, %v580
        %v582 = vshll.u32 2131351028, %v573
        %v583 = vshrl.u32 2102212464, %v574
        %v584 = vor.u32 %v582, %v583
        %v585 = vshll.u32 2102212464, %v573
        %v586 = vshrl.u32 920167782, %v574
        %v587 = vor.u32 %v585, %v586
        %v588 = vshll.u32 920167782, %v573
        %v589 = vshrl.u32 1326507024, %v574
        %v590 = vor.u32 %v588, %v589
        %vm591 = vcmp.lt.s32.totalorder %v572, 1
        %vm592 = vcmp.lt.s32.totalorder %v572, 2
        %vm593 = vcmp.lt.s32.totalorder %v572, 3
        %vm594 = vcmp.lt.s32.totalorder %v572, 4
        %v595 = vsel %vm591, %v575, %v578
        %v596 = vsel %vm594, %v584, 2102212464
        %v597 = vsel %vm593, %v581, %v596
        %v598 = vsel %vm592, %v595, %v597
        %v599 = vsel %vm591, %v578, %v581
        %v600 = vsel %vm594, %v587, 920167782
        %v601 = vsel %vm593, %v584, %v600
        %v602 = vsel %vm592, %v599, %v601
        %v603 = vsel %vm591, %v581, %v584
        %v604 = vsel %vm594, %v590, 1326507024
        %v605 = vsel %vm593, %v587, %v604
        %v606 = vsel %vm592, %v603, %v605
        %v607 = vshll.u32 %v567, 8
        %v608 = vmul.u32.u64.compose %v607, %v606
        %v609 = vextract.low.u32 %v608
        %v610 = vextract.high.u32 %v608
        %v611 = vmul.u32.u64.compose %v607, %v602
        %v612 = vextract.low.u32 %v611
        %v613 = vextract.high.u32 %v611
        %v614 = vmul.u32 %v607, %v598
        %v615 = vadd.s32 %v610, %v612
        %vm616 = vc.u32 %v610, %v612
        %v617 = vadd.s32 %v613, 1
        %v618 = vsel %vm616, %v617, %v613
        %v619 = vadd.s32 %v614, %v618
        %v620 = vadd.s32 %v619, 536870912
        %v621 = vshrl.u32 %v620, 30
        %v622 = vshll.u32 %v621, 30
        %v623 = vsub.s32 %v619, %v622
        %vm624 = vcmp.lt.s32.totalorder %v623, 0
        %v625 = vsub.s32 0, %v623
        %v626 = vsel %vm624, %v625, %v623
        %v627 = vclz %v626
        %v628 = vsub.s32 %v627, 2
        %vm629 = vcmp.gt.s32.totalorder 0, %v628
        %v630 = vsel %vm629, 0, %v628
        %v631 = vsub.s32 32, %v630
        %v632 = vshll.u32 %v623, %v630
        %v633 = vshrl.u32 %v615, %v631
        %v634 = vor.u32 %v632, %v633
        %v635 = vsub.s32 4294967266, %v630
        %v636 = vadd.s32 %v635, 127
        %v637 = vshll.u32 %v636, 23
        %v638 = vor.u32 4788187, %v637
        %v639 = vand.u32 2147483647, %v638
        %v641 = vcvt.s32.f32 %v634
        %v642 = vmul.f32 %v641, %v639
        %v643 = vxor.u32 %v642, 2147483648
        %v644 = vsel %vm561, %v643, %v642
        %v645 = vsub.s32 4, %v621
        %v646 = vsel %vm561, %v645, %v621
        %v647 = vsel %vm560, %v440, %v644
        %v648 = vsel %vm560, 0, %v646
        %v649 = vcosq.f32.pop %v647
        %v650 = vsinq.f32.pop %v647
        %vm651 = vweird.f32 %v440
        %v652 = vadd.s32 %v648, 3
        %v653 = vand.u32 %v652, 3
        %vm654 = vcmp.lt.s32.totalorder %v653, 2
        %vm655 = vcmp.eq.s32.totalorder %v653, 0
        %v656 = vxor.u32 %v650, 2147483648
        %v657 = vsel %vm655, %v649, %v656
        %vm658 = vcmp.eq.s32.totalorder %v653, 2
        %v659 = vxor.u32 %v649, 2147483648
        %v660 = vsel %vm658, %v659, %v650
        %v661 = vsel %vm654, %v657, %v660
        %v662 = vsel %vm651, nan, %v661
        %v663 = vand.u32 2147483647, %v441
        %vm664 = vcmp.le.f32.partialorder %v663, 0.7853982
        %vm665 = vcmp.lt.s32.totalorder %v441, 0
        %v666 = vand.u32 %v441, 2139095040
        %v667 = vshrl.u32 %v666, 23
        %v668 = vsub.s32 %v667, 127
        %v669 = vand.u32 2147483647, %v441
        %v670 = vand.u32 %v669, 8388607
        %v671 = vor.u32 %v670, 8388608
        %v672 = vsub.s32 0, %v671
        %v673 = vadd.s32 %v668, 1
        %vm674 = vcmp.gt.s32.totalorder %v673, 0
        %v675 = vsel %vm674, %v673, 0
        %v676 = vshrl.u32 %v675, 5
        %v677 = vand.u32 %v675, 31
        %v678 = vsub.s32 32, %v677
        %v679 = vshrl.u32 683565275, %v678
        %v680 = vshll.u32 683565275, %v677
        %v681 = vshrl.u32 2475754826, %v678
        %v682 = vor.u32 %v680, %v681
        %v683 = vshll.u32 2475754826, %v677
        %v684 = vshrl.u32 2131351028, %v678
        %v685 = vor.u32 %v683, %v684
        %v686 = vshll.u32 2131351028, %v677
        %v687 = vshrl.u32 2102212464, %v678
        %v688 = vor.u32 %v686, %v687
        %v689 = vshll.u32 2102212464, %v677
        %v690 = vshrl.u32 920167782, %v678
        %v691 = vor.u32 %v689, %v690
        %v692 = vshll.u32 920167782, %v677
        %v693 = vshrl.u32 1326507024, %v678
        %v694 = vor.u32 %v692, %v693
        %vm695 = vcmp.lt.s32.totalorder %v676, 1
        %vm696 = vcmp.lt.s32.totalorder %v676, 2
        %vm697 = vcmp.lt.s32.totalorder %v676, 3
        %vm698 = vcmp.lt.s32.totalorder %v676, 4
        %v699 = vsel %vm695, %v679, %v682
        %v700 = vsel %vm698, %v688, 2102212464
        %v701 = vsel %vm697, %v685, %v700
        %v702 = vsel %vm696, %v699, %v701
        %v703 = vsel %vm695, %v682, %v685
        %v704 = vsel %vm698, %v691, 920167782
        %v705 = vsel %vm697, %v688, %v704
        %v706 = vsel %vm696, %v703, %v705
        %v707 = vsel %vm695, %v685, %v688
        %v708 = vsel %vm698, %v694, 1326507024
        %v709 = vsel %vm697, %v691, %v708
        %v710 = vsel %vm696, %v707, %v709
        %v711 = vshll.u32 %v671, 8
        %v712 = vmul.u32.u64.compose %v711, %v710
        %v713 = vextract.low.u32 %v712
        %v714 = vextract.high.u32 %v712
        %v715 = vmul.u32.u64.compose %v711, %v706
        %v716 = vextract.low.u32 %v715
        %v717 = vextract.high.u32 %v715
        %v718 = vmul.u32 %v711, %v702
        %v719 = vadd.s32 %v714, %v716
        %vm720 = vc.u32 %v714, %v716
        %v721 = vadd.s32 %v717, 1
        %v722 = vsel %vm720, %v721, %v717
        %v723 = vadd.s32 %v718, %v722
        %v724 = vadd.s32 %v723, 536870912
        %v725 = vshrl.u32 %v724, 30
        %v726 = vshll.u32 %v725, 30
        %v727 = vsub.s32 %v723, %v726
        %vm728 = vcmp.lt.s32.totalorder %v727, 0
        %v729 = vsub.s32 0, %v727
        %v730 = vsel %vm728, %v729, %v727
        %v731 = vclz %v730
        %v732 = vsub.s32 %v731, 2
        %vm733 = vcmp.gt.s32.totalorder 0, %v732
        %v734 = vsel %vm733, 0, %v732
        %v735 = vsub.s32 32, %v734
        %v736 = vshll.u32 %v727, %v734
        %v737 = vshrl.u32 %v719, %v735
        %v738 = vor.u32 %v736, %v737
        %v739 = vsub.s32 4294967266, %v734
        %v740 = vadd.s32 %v739, 127
        %v741 = vshll.u32 %v740, 23
        %v742 = vor.u32 4788187, %v741
        %v743 = vand.u32 2147483647, %v742
        %v745 = vcvt.s32.f32 %v738
        %v746 = vmul.f32 %v745, %v743
        %v747 = vxor.u32 %v746, 2147483648
        %v748 = vsel %vm665, %v747, %v746
        %v749 = vsub.s32 4, %v725
        %v750 = vsel %vm665, %v749, %v725
        %v751 = vsel %vm664, %v441, %v748
        %v752 = vsel %vm664, 0, %v750
        %v753 = vcosq.f32.pop %v751
        %v754 = vsinq.f32.pop %v751
        %vm755 = vweird.f32 %v441
        %v756 = vadd.s32 %v752, 3
        %v757 = vand.u32 %v756, 3
        %vm758 = vcmp.lt.s32.totalorder %v757, 2
        %vm759 = vcmp.eq.s32.totalorder %v757, 0
        %v760 = vxor.u32 %v754, 2147483648
        %v761 = vsel %vm759, %v753, %v760
        %vm762 = vcmp.eq.s32.totalorder %v757, 2
        %v763 = vxor.u32 %v753, 2147483648
        %v764 = vsel %vm762, %v763, %v754
        %v765 = vsel %vm758, %v761, %v764
        %v766 = vsel %vm755, nan, %v765
        %v767 = vand.u32 2147483647, %v442
        %vm768 = vcmp.le.f32.partialorder %v767, 0.7853982
        %vm769 = vcmp.lt.s32.totalorder %v442, 0
        %v770 = vand.u32 %v442, 2139095040
        %v771 = vshrl.u32 %v770, 23
        %v772 = vsub.s32 %v771, 127
        %v773 = vand.u32 2147483647, %v442
        %v774 = vand.u32 %v773, 8388607
        %v775 = vor.u32 %v774, 8388608
        %v776 = vsub.s32 0, %v775
        %v777 = vadd.s32 %v772, 1
        %vm778 = vcmp.gt.s32.totalorder %v777, 0
        %v779 = vsel %vm778, %v777, 0
        %v780 = vshrl.u32 %v779, 5
        %v781 = vand.u32 %v779, 31
        %v782 = vsub.s32 32, %v781
        %v783 = vshrl.u32 683565275, %v782
        %v784 = vshll.u32 683565275, %v781
        %v785 = vshrl.u32 2475754826, %v782
        %v786 = vor.u32 %v784, %v785
        %v787 = vshll.u32 2475754826, %v781
        %v788 = vshrl.u32 2131351028, %v782
        %v789 = vor.u32 %v787, %v788
        %v790 = vshll.u32 2131351028, %v781
        %v791 = vshrl.u32 2102212464, %v782
        %v792 = vor.u32 %v790, %v791
        %v793 = vshll.u32 2102212464, %v781
        %v794 = vshrl.u32 920167782, %v782
        %v795 = vor.u32 %v793, %v794
        %v796 = vshll.u32 920167782, %v781
        %v797 = vshrl.u32 1326507024, %v782
        %v798 = vor.u32 %v796, %v797
        %vm799 = vcmp.lt.s32.totalorder %v780, 1
        %vm800 = vcmp.lt.s32.totalorder %v780, 2
        %vm801 = vcmp.lt.s32.totalorder %v780, 3
        %vm802 = vcmp.lt.s32.totalorder %v780, 4
        %v803 = vsel %vm799, %v783, %v786
        %v804 = vsel %vm802, %v792, 2102212464
        %v805 = vsel %vm801, %v789, %v804
        %v806 = vsel %vm800, %v803, %v805
        %v807 = vsel %vm799, %v786, %v789
        %v808 = vsel %vm802, %v795, 920167782
        %v809 = vsel %vm801, %v792, %v808
        %v810 = vsel %vm800, %v807, %v809
        %v811 = vsel %vm799, %v789, %v792
        %v812 = vsel %vm802, %v798, 1326507024
        %v813 = vsel %vm801, %v795, %v812
        %v814 = vsel %vm800, %v811, %v813
        %v815 = vshll.u32 %v775, 8
        %v816 = vmul.u32.u64.compose %v815, %v814
        %v817 = vextract.low.u32 %v816
        %v818 = vextract.high.u32 %v816
        %v819 = vmul.u32.u64.compose %v815, %v810
        %v820 = vextract.low.u32 %v819
        %v821 = vextract.high.u32 %v819
        %v822 = vmul.u32 %v815, %v806
        %v823 = vadd.s32 %v818, %v820
        %vm824 = vc.u32 %v818, %v820
        %v825 = vadd.s32 %v821, 1
        %v826 = vsel %vm824, %v825, %v821
        %v827 = vadd.s32 %v822, %v826
        %v828 = vadd.s32 %v827, 536870912
        %v829 = vshrl.u32 %v828, 30
        %v830 = vshll.u32 %v829, 30
        %v831 = vsub.s32 %v827, %v830
        %vm832 = vcmp.lt.s32.totalorder %v831, 0
        %v833 = vsub.s32 0, %v831
        %v834 = vsel %vm832, %v833, %v831
        %v835 = vclz %v834
        %v836 = vsub.s32 %v835, 2
        %vm837 = vcmp.gt.s32.totalorder 0, %v836
        %v838 = vsel %vm837, 0, %v836
        %v839 = vsub.s32 32, %v838
        %v840 = vshll.u32 %v831, %v838
        %v841 = vshrl.u32 %v823, %v839
        %v842 = vor.u32 %v840, %v841
        %v843 = vsub.s32 4294967266, %v838
        %v844 = vadd.s32 %v843, 127
        %v845 = vshll.u32 %v844, 23
        %v846 = vor.u32 4788187, %v845
        %v847 = vand.u32 2147483647, %v846
        %v849 = vcvt.s32.f32 %v842
        %v850 = vmul.f32 %v849, %v847
        %v851 = vxor.u32 %v850, 2147483648
        %v852 = vsel %vm769, %v851, %v850
        %v853 = vsub.s32 4, %v829
        %v854 = vsel %vm769, %v853, %v829
        %v855 = vsel %vm768, %v442, %v852
        %v856 = vsel %vm768, 0, %v854
        %v857 = vcosq.f32.pop %v855
        %v858 = vsinq.f32.pop %v855
        %vm859 = vweird.f32 %v442
        %v860 = vadd.s32 %v856, 3
        %v861 = vand.u32 %v860, 3
        %vm862 = vcmp.lt.s32.totalorder %v861, 2
        %vm863 = vcmp.eq.s32.totalorder %v861, 0
        %v864 = vxor.u32 %v858, 2147483648
        %v865 = vsel %vm863, %v857, %v864
        %vm866 = vcmp.eq.s32.totalorder %v861, 2
        %v867 = vxor.u32 %v857, 2147483648
        %v868 = vsel %vm866, %v867, %v858
        %v869 = vsel %vm862, %v865, %v868
        %v870 = vsel %vm859, nan, %v869
        %v871 = vand.u32 2147483647, %v443
        %vm872 = vcmp.le.f32.partialorder %v871, 0.7853982
        %vm873 = vcmp.lt.s32.totalorder %v443, 0
        %v874 = vand.u32 %v443, 2139095040
        %v875 = vshrl.u32 %v874, 23
        %v876 = vsub.s32 %v875, 127
        %v877 = vand.u32 2147483647, %v443
        %v878 = vand.u32 %v877, 8388607
        %v879 = vor.u32 %v878, 8388608
        %v880 = vsub.s32 0, %v879
        %v881 = vadd.s32 %v876, 1
        %vm882 = vcmp.gt.s32.totalorder %v881, 0
        %v883 = vsel %vm882, %v881, 0
        %v884 = vshrl.u32 %v883, 5
        %v885 = vand.u32 %v883, 31
        %v886 = vsub.s32 32, %v885
        %v887 = vshrl.u32 683565275, %v886
        %v888 = vshll.u32 683565275, %v885
        %v889 = vshrl.u32 2475754826, %v886
        %v890 = vor.u32 %v888, %v889
        %v891 = vshll.u32 2475754826, %v885
        %v892 = vshrl.u32 2131351028, %v886
        %v893 = vor.u32 %v891, %v892
        %v894 = vshll.u32 2131351028, %v885
        %v895 = vshrl.u32 2102212464, %v886
        %v896 = vor.u32 %v894, %v895
        %v897 = vshll.u32 2102212464, %v885
        %v898 = vshrl.u32 920167782, %v886
        %v899 = vor.u32 %v897, %v898
        %v900 = vshll.u32 920167782, %v885
        %v901 = vshrl.u32 1326507024, %v886
        %v902 = vor.u32 %v900, %v901
        %vm903 = vcmp.lt.s32.totalorder %v884, 1
        %vm904 = vcmp.lt.s32.totalorder %v884, 2
        %vm905 = vcmp.lt.s32.totalorder %v884, 3
        %vm906 = vcmp.lt.s32.totalorder %v884, 4
        %v907 = vsel %vm903, %v887, %v890
        %v908 = vsel %vm906, %v896, 2102212464
        %v909 = vsel %vm905, %v893, %v908
        %v910 = vsel %vm904, %v907, %v909
        %v911 = vsel %vm903, %v890, %v893
        %v912 = vsel %vm906, %v899, 920167782
        %v913 = vsel %vm905, %v896, %v912
        %v914 = vsel %vm904, %v911, %v913
        %v915 = vsel %vm903, %v893, %v896
        %v916 = vsel %vm906, %v902, 1326507024
        %v917 = vsel %vm905, %v899, %v916
        %v918 = vsel %vm904, %v915, %v917
        %v919 = vshll.u32 %v879, 8
        %v920 = vmul.u32.u64.compose %v919, %v918
        %v921 = vextract.low.u32 %v920
        %v922 = vextract.high.u32 %v920
        %v923 = vmul.u32.u64.compose %v919, %v914
        %v924 = vextract.low.u32 %v923
        %v925 = vextract.high.u32 %v923
        %v926 = vmul.u32 %v919, %v910
        %v927 = vadd.s32 %v922, %v924
        %vm928 = vc.u32 %v922, %v924
        %v929 = vadd.s32 %v925, 1
        %v930 = vsel %vm928, %v929, %v925
        %v931 = vadd.s32 %v926, %v930
        %v932 = vadd.s32 %v931, 536870912
        %v933 = vshrl.u32 %v932, 30
        %v934 = vshll.u32 %v933, 30
        %v935 = vsub.s32 %v931, %v934
        %vm936 = vcmp.lt.s32.totalorder %v935, 0
        %v937 = vsub.s32 0, %v935
        %v938 = vsel %vm936, %v937, %v935
        %v939 = vclz %v938
        %v940 = vsub.s32 %v939, 2
        %vm941 = vcmp.gt.s32.totalorder 0, %v940
        %v942 = vsel %vm941, 0, %v940
        %v943 = vsub.s32 32, %v942
        %v944 = vshll.u32 %v935, %v942
        %v945 = vshrl.u32 %v927, %v943
        %v946 = vor.u32 %v944, %v945
        %v947 = vsub.s32 4294967266, %v942
        %v948 = vadd.s32 %v947, 127
        %v949 = vshll.u32 %v948, 23
        %v950 = vor.u32 4788187, %v949
        %v951 = vand.u32 2147483647, %v950
        %v953 = vcvt.s32.f32 %v946
        %v954 = vmul.f32 %v953, %v951
        %v955 = vxor.u32 %v954, 2147483648
        %v956 = vsel %vm873, %v955, %v954
        %v957 = vsub.s32 4, %v933
        %v958 = vsel %vm873, %v957, %v933
        %v959 = vsel %vm872, %v443, %v956
        %v960 = vsel %vm872, 0, %v958
        %v961 = vcosq.f32.pop %v959
        %v962 = vsinq.f32.pop %v959
        %vm963 = vweird.f32 %v443
        %v964 = vadd.s32 %v960, 3
        %v965 = vand.u32 %v964, 3
        %vm966 = vcmp.lt.s32.totalorder %v965, 2
        %vm967 = vcmp.eq.s32.totalorder %v965, 0
        %v968 = vxor.u32 %v962, 2147483648
        %v969 = vsel %vm967, %v961, %v968
        %vm970 = vcmp.eq.s32.totalorder %v965, 2
        %v971 = vxor.u32 %v961, 2147483648
        %v972 = vsel %vm970, %v971, %v962
        %v973 = vsel %vm966, %v969, %v972
        %v974 = vsel %vm963, nan, %v973
        %v975 = vand.u32 2147483647, %v444
        %vm976 = vcmp.le.f32.partialorder %v975, 0.7853982
        %vm977 = vcmp.lt.s32.totalorder %v444, 0
        %v978 = vand.u32 %v444, 2139095040
        %v979 = vshrl.u32 %v978, 23
        %v980 = vsub.s32 %v979, 127
        %v981 = vand.u32 2147483647, %v444
        %v982 = vand.u32 %v981, 8388607
        %v983 = vor.u32 %v982, 8388608
        %v984 = vsub.s32 0, %v983
        %v985 = vadd.s32 %v980, 1
        %vm986 = vcmp.gt.s32.totalorder %v985, 0
        %v987 = vsel %vm986, %v985, 0
        %v988 = vshrl.u32 %v987, 5
        %v989 = vand.u32 %v987, 31
        %v990 = vsub.s32 32, %v989
        %v991 = vshrl.u32 683565275, %v990
        %v992 = vshll.u32 683565275, %v989
        %v993 = vshrl.u32 2475754826, %v990
        %v994 = vor.u32 %v992, %v993
        %v995 = vshll.u32 2475754826, %v989
        %v996 = vshrl.u32 2131351028, %v990
        %v997 = vor.u32 %v995, %v996
        %v998 = vshll.u32 2131351028, %v989
        %v999 = vshrl.u32 2102212464, %v990
        %v1000 = vor.u32 %v998, %v999
        %v1001 = vshll.u32 2102212464, %v989
        %v1002 = vshrl.u32 920167782, %v990
        %v1003 = vor.u32 %v1001, %v1002
        %v1004 = vshll.u32 920167782, %v989
        %v1005 = vshrl.u32 1326507024, %v990
        %v1006 = vor.u32 %v1004, %v1005
        %vm1007 = vcmp.lt.s32.totalorder %v988, 1
        %vm1008 = vcmp.lt.s32.totalorder %v988, 2
        %vm1009 = vcmp.lt.s32.totalorder %v988, 3
        %vm1010 = vcmp.lt.s32.totalorder %v988, 4
        %v1011 = vsel %vm1007, %v991, %v994
        %v1012 = vsel %vm1010, %v1000, 2102212464
        %v1013 = vsel %vm1009, %v997, %v1012
        %v1014 = vsel %vm1008, %v1011, %v1013
        %v1015 = vsel %vm1007, %v994, %v997
        %v1016 = vsel %vm1010, %v1003, 920167782
        %v1017 = vsel %vm1009, %v1000, %v1016
        %v1018 = vsel %vm1008, %v1015, %v1017
        %v1019 = vsel %vm1007, %v997, %v1000
        %v1020 = vsel %vm1010, %v1006, 1326507024
        %v1021 = vsel %vm1009, %v1003, %v1020
        %v1022 = vsel %vm1008, %v1019, %v1021
        %v1023 = vshll.u32 %v983, 8
        %v1024 = vmul.u32.u64.compose %v1023, %v1022
        %v1025 = vextract.low.u32 %v1024
        %v1026 = vextract.high.u32 %v1024
        %v1027 = vmul.u32.u64.compose %v1023, %v1018
        %v1028 = vextract.low.u32 %v1027
        %v1029 = vextract.high.u32 %v1027
        %v1030 = vmul.u32 %v1023, %v1014
        %v1031 = vadd.s32 %v1026, %v1028
        %vm1032 = vc.u32 %v1026, %v1028
        %v1033 = vadd.s32 %v1029, 1
        %v1034 = vsel %vm1032, %v1033, %v1029
        %v1035 = vadd.s32 %v1030, %v1034
        %v1036 = vadd.s32 %v1035, 536870912
        %v1037 = vshrl.u32 %v1036, 30
        %v1038 = vshll.u32 %v1037, 30
        %v1039 = vsub.s32 %v1035, %v1038
        %vm1040 = vcmp.lt.s32.totalorder %v1039, 0
        %v1041 = vsub.s32 0, %v1039
        %v1042 = vsel %vm1040, %v1041, %v1039
        %v1043 = vclz %v1042
        %v1044 = vsub.s32 %v1043, 2
        %vm1045 = vcmp.gt.s32.totalorder 0, %v1044
        %v1046 = vsel %vm1045, 0, %v1044
        %v1047 = vsub.s32 32, %v1046
        %v1048 = vshll.u32 %v1039, %v1046
        %v1049 = vshrl.u32 %v1031, %v1047
        %v1050 = vor.u32 %v1048, %v1049
        %v1051 = vsub.s32 4294967266, %v1046
        %v1052 = vadd.s32 %v1051, 127
        %v1053 = vshll.u32 %v1052, 23
        %v1054 = vor.u32 4788187, %v1053
        %v1055 = vand.u32 2147483647, %v1054
        %v1057 = vcvt.s32.f32 %v1050
        %v1058 = vmul.f32 %v1057, %v1055
        %v1059 = vxor.u32 %v1058, 2147483648
        %v1060 = vsel %vm977, %v1059, %v1058
        %v1061 = vsub.s32 4, %v1037
        %v1062 = vsel %vm977, %v1061, %v1037
        %v1063 = vsel %vm976, %v444, %v1060
        %v1064 = vsel %vm976, 0, %v1062
        %v1065 = vcosq.f32.pop %v1063
        %v1066 = vsinq.f32.pop %v1063
        %vm1067 = vweird.f32 %v444
        %v1068 = vadd.s32 %v1064, 3
        %v1069 = vand.u32 %v1068, 3
        %vm1070 = vcmp.lt.s32.totalorder %v1069, 2
        %vm1071 = vcmp.eq.s32.totalorder %v1069, 0
        %v1072 = vxor.u32 %v1066, 2147483648
        %v1073 = vsel %vm1071, %v1065, %v1072
        %vm1074 = vcmp.eq.s32.totalorder %v1069, 2
        %v1075 = vxor.u32 %v1065, 2147483648
        %v1076 = vsel %vm1074, %v1075, %v1066
        %v1077 = vsel %vm1070, %v1073, %v1076
        %v1078 = vsel %vm1067, nan, %v1077
        %v1079 = vand.u32 2147483647, %v445
        %vm1080 = vcmp.le.f32.partialorder %v1079, 0.7853982
        %vm1081 = vcmp.lt.s32.totalorder %v445, 0
        %v1082 = vand.u32 %v445, 2139095040
        %v1083 = vshrl.u32 %v1082, 23
        %v1084 = vsub.s32 %v1083, 127
        %v1085 = vand.u32 2147483647, %v445
        %v1086 = vand.u32 %v1085, 8388607
        %v1087 = vor.u32 %v1086, 8388608
        %v1088 = vsub.s32 0, %v1087
        %v1089 = vadd.s32 %v1084, 1
        %vm1090 = vcmp.gt.s32.totalorder %v1089, 0
        %v1091 = vsel %vm1090, %v1089, 0
        %v1092 = vshrl.u32 %v1091, 5
        %v1093 = vand.u32 %v1091, 31
        %v1094 = vsub.s32 32, %v1093
        %v1095 = vshrl.u32 683565275, %v1094
        %v1096 = vshll.u32 683565275, %v1093
        %v1097 = vshrl.u32 2475754826, %v1094
        %v1098 = vor.u32 %v1096, %v1097
        %v1099 = vshll.u32 2475754826, %v1093
        %v1100 = vshrl.u32 2131351028, %v1094
        %v1101 = vor.u32 %v1099, %v1100
        %v1102 = vshll.u32 2131351028, %v1093
        %v1103 = vshrl.u32 2102212464, %v1094
        %v1104 = vor.u32 %v1102, %v1103
        %v1105 = vshll.u32 2102212464, %v1093
        %v1106 = vshrl.u32 920167782, %v1094
        %v1107 = vor.u32 %v1105, %v1106
        %v1108 = vshll.u32 920167782, %v1093
        %v1109 = vshrl.u32 1326507024, %v1094
        %v1110 = vor.u32 %v1108, %v1109
        %vm1111 = vcmp.lt.s32.totalorder %v1092, 1
        %vm1112 = vcmp.lt.s32.totalorder %v1092, 2
        %vm1113 = vcmp.lt.s32.totalorder %v1092, 3
        %vm1114 = vcmp.lt.s32.totalorder %v1092, 4
        %v1115 = vsel %vm1111, %v1095, %v1098
        %v1116 = vsel %vm1114, %v1104, 2102212464
        %v1117 = vsel %vm1113, %v1101, %v1116
        %v1118 = vsel %vm1112, %v1115, %v1117
        %v1119 = vsel %vm1111, %v1098, %v1101
        %v1120 = vsel %vm1114, %v1107, 920167782
        %v1121 = vsel %vm1113, %v1104, %v1120
        %v1122 = vsel %vm1112, %v1119, %v1121
        %v1123 = vsel %vm1111, %v1101, %v1104
        %v1124 = vsel %vm1114, %v1110, 1326507024
        %v1125 = vsel %vm1113, %v1107, %v1124
        %v1126 = vsel %vm1112, %v1123, %v1125
        %v1127 = vshll.u32 %v1087, 8
        %v1128 = vmul.u32.u64.compose %v1127, %v1126
        %v1129 = vextract.low.u32 %v1128
        %v1130 = vextract.high.u32 %v1128
        %v1131 = vmul.u32.u64.compose %v1127, %v1122
        %v1132 = vextract.low.u32 %v1131
        %v1133 = vextract.high.u32 %v1131
        %v1134 = vmul.u32 %v1127, %v1118
        %v1135 = vadd.s32 %v1130, %v1132
        %vm1136 = vc.u32 %v1130, %v1132
        %v1137 = vadd.s32 %v1133, 1
        %v1138 = vsel %vm1136, %v1137, %v1133
        %v1139 = vadd.s32 %v1134, %v1138
        %v1140 = vadd.s32 %v1139, 536870912
        %v1141 = vshrl.u32 %v1140, 30
        %v1142 = vshll.u32 %v1141, 30
        %v1143 = vsub.s32 %v1139, %v1142
        %vm1144 = vcmp.lt.s32.totalorder %v1143, 0
        %v1145 = vsub.s32 0, %v1143
        %v1146 = vsel %vm1144, %v1145, %v1143
        %v1147 = vclz %v1146
        %v1148 = vsub.s32 %v1147, 2
        %vm1149 = vcmp.gt.s32.totalorder 0, %v1148
        %v1150 = vsel %vm1149, 0, %v1148
        %v1151 = vsub.s32 32, %v1150
        %v1152 = vshll.u32 %v1143, %v1150
        %v1153 = vshrl.u32 %v1135, %v1151
        %v1154 = vor.u32 %v1152, %v1153
        %v1155 = vsub.s32 4294967266, %v1150
        %v1156 = vadd.s32 %v1155, 127
        %v1157 = vshll.u32 %v1156, 23
        %v1158 = vor.u32 4788187, %v1157
        %v1159 = vand.u32 2147483647, %v1158
        %v1161 = vcvt.s32.f32 %v1154
        %v1162 = vmul.f32 %v1161, %v1159
        %v1163 = vxor.u32 %v1162, 2147483648
        %v1164 = vsel %vm1081, %v1163, %v1162
        %v1165 = vsub.s32 4, %v1141
        %v1166 = vsel %vm1081, %v1165, %v1141
        %v1167 = vsel %vm1080, %v445, %v1164
        %v1168 = vsel %vm1080, 0, %v1166
        %v1169 = vcosq.f32.pop %v1167
        %v1170 = vsinq.f32.pop %v1167
        %vm1171 = vweird.f32 %v445
        %v1172 = vadd.s32 %v1168, 3
        %v1173 = vand.u32 %v1172, 3
        %vm1174 = vcmp.lt.s32.totalorder %v1173, 2
        %vm1175 = vcmp.eq.s32.totalorder %v1173, 0
        %v1176 = vxor.u32 %v1170, 2147483648
        %v1177 = vsel %vm1175, %v1169, %v1176
        %vm1178 = vcmp.eq.s32.totalorder %v1173, 2
        %v1179 = vxor.u32 %v1169, 2147483648
        %v1180 = vsel %vm1178, %v1179, %v1170
        %v1181 = vsel %vm1174, %v1177, %v1180
        %v1182 = vsel %vm1171, nan, %v1181
        %v1183 = vand.u32 2147483647, %v446
        %vm1184 = vcmp.le.f32.partialorder %v1183, 0.7853982
        %vm1185 = vcmp.lt.s32.totalorder %v446, 0
        %v1186 = vand.u32 %v446, 2139095040
        %v1187 = vshrl.u32 %v1186, 23
        %v1188 = vsub.s32 %v1187, 127
        %v1189 = vand.u32 2147483647, %v446
        %v1190 = vand.u32 %v1189, 8388607
        %v1191 = vor.u32 %v1190, 8388608
        %v1192 = vsub.s32 0, %v1191
        %v1193 = vadd.s32 %v1188, 1
        %vm1194 = vcmp.gt.s32.totalorder %v1193, 0
        %v1195 = vsel %vm1194, %v1193, 0
        %v1196 = vshrl.u32 %v1195, 5
        %v1197 = vand.u32 %v1195, 31
        %v1198 = vsub.s32 32, %v1197
        %v1199 = vshrl.u32 683565275, %v1198
        %v1200 = vshll.u32 683565275, %v1197
        %v1201 = vshrl.u32 2475754826, %v1198
        %v1202 = vor.u32 %v1200, %v1201
        %v1203 = vshll.u32 2475754826, %v1197
        %v1204 = vshrl.u32 2131351028, %v1198
        %v1205 = vor.u32 %v1203, %v1204
        %v1206 = vshll.u32 2131351028, %v1197
        %v1207 = vshrl.u32 2102212464, %v1198
        %v1208 = vor.u32 %v1206, %v1207
        %v1209 = vshll.u32 2102212464, %v1197
        %v1210 = vshrl.u32 920167782, %v1198
        %v1211 = vor.u32 %v1209, %v1210
        %v1212 = vshll.u32 920167782, %v1197
        %v1213 = vshrl.u32 1326507024, %v1198
        %v1214 = vor.u32 %v1212, %v1213
        %vm1215 = vcmp.lt.s32.totalorder %v1196, 1
        %vm1216 = vcmp.lt.s32.totalorder %v1196, 2
        %vm1217 = vcmp.lt.s32.totalorder %v1196, 3
        %vm1218 = vcmp.lt.s32.totalorder %v1196, 4
        %v1219 = vsel %vm1215, %v1199, %v1202
        %v1220 = vsel %vm1218, %v1208, 2102212464
        %v1221 = vsel %vm1217, %v1205, %v1220
        %v1222 = vsel %vm1216, %v1219, %v1221
        %v1223 = vsel %vm1215, %v1202, %v1205
        %v1224 = vsel %vm1218, %v1211, 920167782
        %v1225 = vsel %vm1217, %v1208, %v1224
        %v1226 = vsel %vm1216, %v1223, %v1225
        %v1227 = vsel %vm1215, %v1205, %v1208
        %v1228 = vsel %vm1218, %v1214, 1326507024
        %v1229 = vsel %vm1217, %v1211, %v1228
        %v1230 = vsel %vm1216, %v1227, %v1229
        %v1231 = vshll.u32 %v1191, 8
        %v1232 = vmul.u32.u64.compose %v1231, %v1230
        %v1233 = vextract.low.u32 %v1232
        %v1234 = vextract.high.u32 %v1232
        %v1235 = vmul.u32.u64.compose %v1231, %v1226
        %v1236 = vextract.low.u32 %v1235
        %v1237 = vextract.high.u32 %v1235
        %v1238 = vmul.u32 %v1231, %v1222
        %v1239 = vadd.s32 %v1234, %v1236
        %vm1240 = vc.u32 %v1234, %v1236
        %v1241 = vadd.s32 %v1237, 1
        %v1242 = vsel %vm1240, %v1241, %v1237
        %v1243 = vadd.s32 %v1238, %v1242
        %v1244 = vadd.s32 %v1243, 536870912
        %v1245 = vshrl.u32 %v1244, 30
        %v1246 = vshll.u32 %v1245, 30
        %v1247 = vsub.s32 %v1243, %v1246
        %vm1248 = vcmp.lt.s32.totalorder %v1247, 0
        %v1249 = vsub.s32 0, %v1247
        %v1250 = vsel %vm1248, %v1249, %v1247
        %v1251 = vclz %v1250
        %v1252 = vsub.s32 %v1251, 2
        %vm1253 = vcmp.gt.s32.totalorder 0, %v1252
        %v1254 = vsel %vm1253, 0, %v1252
        %v1255 = vsub.s32 32, %v1254
        %v1256 = vshll.u32 %v1247, %v1254
        %v1257 = vshrl.u32 %v1239, %v1255
        %v1258 = vor.u32 %v1256, %v1257
        %v1259 = vsub.s32 4294967266, %v1254
        %v1260 = vadd.s32 %v1259, 127
        %v1261 = vshll.u32 %v1260, 23
        %v1262 = vor.u32 4788187, %v1261
        %v1263 = vand.u32 2147483647, %v1262
        %v1265 = vcvt.s32.f32 %v1258
        %v1266 = vmul.f32 %v1265, %v1263
        %v1267 = vxor.u32 %v1266, 2147483648
        %v1268 = vsel %vm1185, %v1267, %v1266
        %v1269 = vsub.s32 4, %v1245
        %v1270 = vsel %vm1185, %v1269, %v1245
        %v1271 = vsel %vm1184, %v446, %v1268
        %v1272 = vsel %vm1184, 0, %v1270
        %v1273 = vcosq.f32.pop %v1271
        %v1274 = vsinq.f32.pop %v1271
        %vm1275 = vweird.f32 %v446
        %v1276 = vadd.s32 %v1272, 3
        %v1277 = vand.u32 %v1276, 3
        %vm1278 = vcmp.lt.s32.totalorder %v1277, 2
        %vm1279 = vcmp.eq.s32.totalorder %v1277, 0
        %v1280 = vxor.u32 %v1274, 2147483648
        %v1281 = vsel %vm1279, %v1273, %v1280
        %vm1282 = vcmp.eq.s32.totalorder %v1277, 2
        %v1283 = vxor.u32 %v1273, 2147483648
        %v1284 = vsel %vm1282, %v1283, %v1274
        %v1285 = vsel %vm1278, %v1281, %v1284
        %v1286 = vsel %vm1275, nan, %v1285
        %v1287 = vand.u32 2147483647, %v447
        %vm1288 = vcmp.le.f32.partialorder %v1287, 0.7853982
        %vm1289 = vcmp.lt.s32.totalorder %v447, 0
        %v1290 = vand.u32 %v447, 2139095040
        %v1291 = vshrl.u32 %v1290, 23
        %v1292 = vsub.s32 %v1291, 127
        %v1293 = vand.u32 2147483647, %v447
        %v1294 = vand.u32 %v1293, 8388607
        %v1295 = vor.u32 %v1294, 8388608
        %v1296 = vsub.s32 0, %v1295
        %v1297 = vadd.s32 %v1292, 1
        %vm1298 = vcmp.gt.s32.totalorder %v1297, 0
        %v1299 = vsel %vm1298, %v1297, 0
        %v1300 = vshrl.u32 %v1299, 5
        %v1301 = vand.u32 %v1299, 31
        %v1302 = vsub.s32 32, %v1301
        %v1303 = vshrl.u32 683565275, %v1302
        %v1304 = vshll.u32 683565275, %v1301
        %v1305 = vshrl.u32 2475754826, %v1302
        %v1306 = vor.u32 %v1304, %v1305
        %v1307 = vshll.u32 2475754826, %v1301
        %v1308 = vshrl.u32 2131351028, %v1302
        %v1309 = vor.u32 %v1307, %v1308
        %v1310 = vshll.u32 2131351028, %v1301
        %v1311 = vshrl.u32 2102212464, %v1302
        %v1312 = vor.u32 %v1310, %v1311
        %v1313 = vshll.u32 2102212464, %v1301
        %v1314 = vshrl.u32 920167782, %v1302
        %v1315 = vor.u32 %v1313, %v1314
        %v1316 = vshll.u32 920167782, %v1301
        %v1317 = vshrl.u32 1326507024, %v1302
        %v1318 = vor.u32 %v1316, %v1317
        %vm1319 = vcmp.lt.s32.totalorder %v1300, 1
        %vm1320 = vcmp.lt.s32.totalorder %v1300, 2
        %vm1321 = vcmp.lt.s32.totalorder %v1300, 3
        %vm1322 = vcmp.lt.s32.totalorder %v1300, 4
        %v1323 = vsel %vm1319, %v1303, %v1306
        %v1324 = vsel %vm1322, %v1312, 2102212464
        %v1325 = vsel %vm1321, %v1309, %v1324
        %v1326 = vsel %vm1320, %v1323, %v1325
        %v1327 = vsel %vm1319, %v1306, %v1309
        %v1328 = vsel %vm1322, %v1315, 920167782
        %v1329 = vsel %vm1321, %v1312, %v1328
        %v1330 = vsel %vm1320, %v1327, %v1329
        %v1331 = vsel %vm1319, %v1309, %v1312
        %v1332 = vsel %vm1322, %v1318, 1326507024
        %v1333 = vsel %vm1321, %v1315, %v1332
        %v1334 = vsel %vm1320, %v1331, %v1333
        %v1335 = vshll.u32 %v1295, 8
        %v1336 = vmul.u32.u64.compose %v1335, %v1334
        %v1337 = vextract.low.u32 %v1336
        %v1338 = vextract.high.u32 %v1336
        %v1339 = vmul.u32.u64.compose %v1335, %v1330
        %v1340 = vextract.low.u32 %v1339
        %v1341 = vextract.high.u32 %v1339
        %v1342 = vmul.u32 %v1335, %v1326
        %v1343 = vadd.s32 %v1338, %v1340
        %vm1344 = vc.u32 %v1338, %v1340
        %v1345 = vadd.s32 %v1341, 1
        %v1346 = vsel %vm1344, %v1345, %v1341
        %v1347 = vadd.s32 %v1342, %v1346
        %v1348 = vadd.s32 %v1347, 536870912
        %v1349 = vshrl.u32 %v1348, 30
        %v1350 = vshll.u32 %v1349, 30
        %v1351 = vsub.s32 %v1347, %v1350
        %vm1352 = vcmp.lt.s32.totalorder %v1351, 0
        %v1353 = vsub.s32 0, %v1351
        %v1354 = vsel %vm1352, %v1353, %v1351
        %v1355 = vclz %v1354
        %v1356 = vsub.s32 %v1355, 2
        %vm1357 = vcmp.gt.s32.totalorder 0, %v1356
        %v1358 = vsel %vm1357, 0, %v1356
        %v1359 = vsub.s32 32, %v1358
        %v1360 = vshll.u32 %v1351, %v1358
        %v1361 = vshrl.u32 %v1343, %v1359
        %v1362 = vor.u32 %v1360, %v1361
        %v1363 = vsub.s32 4294967266, %v1358
        %v1364 = vadd.s32 %v1363, 127
        %v1365 = vshll.u32 %v1364, 23
        %v1366 = vor.u32 4788187, %v1365
        %v1367 = vand.u32 2147483647, %v1366
        %v1369 = vcvt.s32.f32 %v1362
        %v1370 = vmul.f32 %v1369, %v1367
        %v1371 = vxor.u32 %v1370, 2147483648
        %v1372 = vsel %vm1289, %v1371, %v1370
        %v1373 = vsub.s32 4, %v1349
        %v1374 = vsel %vm1289, %v1373, %v1349
        %v1375 = vsel %vm1288, %v447, %v1372
        %v1376 = vsel %vm1288, 0, %v1374
        %v1377 = vcosq.f32.pop %v1375
        %v1378 = vsinq.f32.pop %v1375
        %vm1379 = vweird.f32 %v447
        %v1380 = vadd.s32 %v1376, 3
        %v1381 = vand.u32 %v1380, 3
        %vm1382 = vcmp.lt.s32.totalorder %v1381, 2
        %vm1383 = vcmp.eq.s32.totalorder %v1381, 0
        %v1384 = vxor.u32 %v1378, 2147483648
        %v1385 = vsel %vm1383, %v1377, %v1384
        %vm1386 = vcmp.eq.s32.totalorder %v1381, 2
        %v1387 = vxor.u32 %v1377, 2147483648
        %v1388 = vsel %vm1386, %v1387, %v1378
        %v1389 = vsel %vm1382, %v1385, %v1388
        %v1390 = vsel %vm1379, nan, %v1389
        %v1391 = vand.u32 2147483647, %v448
        %vm1392 = vcmp.le.f32.partialorder %v1391, 0.7853982
        %vm1393 = vcmp.lt.s32.totalorder %v448, 0
        %v1394 = vand.u32 %v448, 2139095040
        %v1395 = vshrl.u32 %v1394, 23
        %v1396 = vsub.s32 %v1395, 127
        %v1397 = vand.u32 2147483647, %v448
        %v1398 = vand.u32 %v1397, 8388607
        %v1399 = vor.u32 %v1398, 8388608
        %v1400 = vsub.s32 0, %v1399
        %v1401 = vadd.s32 %v1396, 1
        %vm1402 = vcmp.gt.s32.totalorder %v1401, 0
        %v1403 = vsel %vm1402, %v1401, 0
        %v1404 = vshrl.u32 %v1403, 5
        %v1405 = vand.u32 %v1403, 31
        %v1406 = vsub.s32 32, %v1405
        %v1407 = vshrl.u32 683565275, %v1406
        %v1408 = vshll.u32 683565275, %v1405
        %v1409 = vshrl.u32 2475754826, %v1406
        %v1410 = vor.u32 %v1408, %v1409
        %v1411 = vshll.u32 2475754826, %v1405
        %v1412 = vshrl.u32 2131351028, %v1406
        %v1413 = vor.u32 %v1411, %v1412
        %v1414 = vshll.u32 2131351028, %v1405
        %v1415 = vshrl.u32 2102212464, %v1406
        %v1416 = vor.u32 %v1414, %v1415
        %v1417 = vshll.u32 2102212464, %v1405
        %v1418 = vshrl.u32 920167782, %v1406
        %v1419 = vor.u32 %v1417, %v1418
        %v1420 = vshll.u32 920167782, %v1405
        %v1421 = vshrl.u32 1326507024, %v1406
        %v1422 = vor.u32 %v1420, %v1421
        %vm1423 = vcmp.lt.s32.totalorder %v1404, 1
        %vm1424 = vcmp.lt.s32.totalorder %v1404, 2
        %vm1425 = vcmp.lt.s32.totalorder %v1404, 3
        %vm1426 = vcmp.lt.s32.totalorder %v1404, 4
        %v1427 = vsel %vm1423, %v1407, %v1410
        %v1428 = vsel %vm1426, %v1416, 2102212464
        %v1429 = vsel %vm1425, %v1413, %v1428
        %v1430 = vsel %vm1424, %v1427, %v1429
        %v1431 = vsel %vm1423, %v1410, %v1413
        %v1432 = vsel %vm1426, %v1419, 920167782
        %v1433 = vsel %vm1425, %v1416, %v1432
        %v1434 = vsel %vm1424, %v1431, %v1433
        %v1435 = vsel %vm1423, %v1413, %v1416
        %v1436 = vsel %vm1426, %v1422, 1326507024
        %v1437 = vsel %vm1425, %v1419, %v1436
        %v1438 = vsel %vm1424, %v1435, %v1437
        %v1439 = vshll.u32 %v1399, 8
        %v1440 = vmul.u32.u64.compose %v1439, %v1438
        %v1441 = vextract.low.u32 %v1440
        %v1442 = vextract.high.u32 %v1440
        %v1443 = vmul.u32.u64.compose %v1439, %v1434
        %v1444 = vextract.low.u32 %v1443
        %v1445 = vextract.high.u32 %v1443
        %v1446 = vmul.u32 %v1439, %v1430
        %v1447 = vadd.s32 %v1442, %v1444
        %vm1448 = vc.u32 %v1442, %v1444
        %v1449 = vadd.s32 %v1445, 1
        %v1450 = vsel %vm1448, %v1449, %v1445
        %v1451 = vadd.s32 %v1446, %v1450
        %v1452 = vadd.s32 %v1451, 536870912
        %v1453 = vshrl.u32 %v1452, 30
        %v1454 = vshll.u32 %v1453, 30
        %v1455 = vsub.s32 %v1451, %v1454
        %vm1456 = vcmp.lt.s32.totalorder %v1455, 0
        %v1457 = vsub.s32 0, %v1455
        %v1458 = vsel %vm1456, %v1457, %v1455
        %v1459 = vclz %v1458
        %v1460 = vsub.s32 %v1459, 2
        %vm1461 = vcmp.gt.s32.totalorder 0, %v1460
        %v1462 = vsel %vm1461, 0, %v1460
        %v1463 = vsub.s32 32, %v1462
        %v1464 = vshll.u32 %v1455, %v1462
        %v1465 = vshrl.u32 %v1447, %v1463
        %v1466 = vor.u32 %v1464, %v1465
        %v1467 = vsub.s32 4294967266, %v1462
        %v1468 = vadd.s32 %v1467, 127
        %v1469 = vshll.u32 %v1468, 23
        %v1470 = vor.u32 4788187, %v1469
        %v1471 = vand.u32 2147483647, %v1470
        %v1473 = vcvt.s32.f32 %v1466
        %v1474 = vmul.f32 %v1473, %v1471
        %v1475 = vxor.u32 %v1474, 2147483648
        %v1476 = vsel %vm1393, %v1475, %v1474
        %v1477 = vsub.s32 4, %v1453
        %v1478 = vsel %vm1393, %v1477, %v1453
        %v1479 = vsel %vm1392, %v448, %v1476
        %v1480 = vsel %vm1392, 0, %v1478
        %v1481 = vcosq.f32.pop %v1479
        %v1482 = vsinq.f32.pop %v1479
        %vm1483 = vweird.f32 %v448
        %v1484 = vadd.s32 %v1480, 3
        %v1485 = vand.u32 %v1484, 3
        %vm1486 = vcmp.lt.s32.totalorder %v1485, 2
        %vm1487 = vcmp.eq.s32.totalorder %v1485, 0
        %v1488 = vxor.u32 %v1482, 2147483648
        %v1489 = vsel %vm1487, %v1481, %v1488
        %vm1490 = vcmp.eq.s32.totalorder %v1485, 2
        %v1491 = vxor.u32 %v1481, 2147483648
        %v1492 = vsel %vm1490, %v1491, %v1482
        %v1493 = vsel %vm1486, %v1489, %v1492
        %v1494 = vsel %vm1483, nan, %v1493
        %v1495 = vand.u32 2147483647, %v449
        %vm1496 = vcmp.le.f32.partialorder %v1495, 0.7853982
        %vm1497 = vcmp.lt.s32.totalorder %v449, 0
        %v1498 = vand.u32 %v449, 2139095040
        %v1499 = vshrl.u32 %v1498, 23
        %v1500 = vsub.s32 %v1499, 127
        %v1501 = vand.u32 2147483647, %v449
        %v1502 = vand.u32 %v1501, 8388607
        %v1503 = vor.u32 %v1502, 8388608
        %v1504 = vsub.s32 0, %v1503
        %v1505 = vadd.s32 %v1500, 1
        %vm1506 = vcmp.gt.s32.totalorder %v1505, 0
        %v1507 = vsel %vm1506, %v1505, 0
        %v1508 = vshrl.u32 %v1507, 5
        %v1509 = vand.u32 %v1507, 31
        %v1510 = vsub.s32 32, %v1509
        %v1511 = vshrl.u32 683565275, %v1510
        %v1512 = vshll.u32 683565275, %v1509
        %v1513 = vshrl.u32 2475754826, %v1510
        %v1514 = vor.u32 %v1512, %v1513
        %v1515 = vshll.u32 2475754826, %v1509
        %v1516 = vshrl.u32 2131351028, %v1510
        %v1517 = vor.u32 %v1515, %v1516
        %v1518 = vshll.u32 2131351028, %v1509
        %v1519 = vshrl.u32 2102212464, %v1510
        %v1520 = vor.u32 %v1518, %v1519
        %v1521 = vshll.u32 2102212464, %v1509
        %v1522 = vshrl.u32 920167782, %v1510
        %v1523 = vor.u32 %v1521, %v1522
        %v1524 = vshll.u32 920167782, %v1509
        %v1525 = vshrl.u32 1326507024, %v1510
        %v1526 = vor.u32 %v1524, %v1525
        %vm1527 = vcmp.lt.s32.totalorder %v1508, 1
        %vm1528 = vcmp.lt.s32.totalorder %v1508, 2
        %vm1529 = vcmp.lt.s32.totalorder %v1508, 3
        %vm1530 = vcmp.lt.s32.totalorder %v1508, 4
        %v1531 = vsel %vm1527, %v1511, %v1514
        %v1532 = vsel %vm1530, %v1520, 2102212464
        %v1533 = vsel %vm1529, %v1517, %v1532
        %v1534 = vsel %vm1528, %v1531, %v1533
        %v1535 = vsel %vm1527, %v1514, %v1517
        %v1536 = vsel %vm1530, %v1523, 920167782
        %v1537 = vsel %vm1529, %v1520, %v1536
        %v1538 = vsel %vm1528, %v1535, %v1537
        %v1539 = vsel %vm1527, %v1517, %v1520
        %v1540 = vsel %vm1530, %v1526, 1326507024
        %v1541 = vsel %vm1529, %v1523, %v1540
        %v1542 = vsel %vm1528, %v1539, %v1541
        %v1543 = vshll.u32 %v1503, 8
        %v1544 = vmul.u32.u64.compose %v1543, %v1542
        %v1545 = vextract.low.u32 %v1544
        %v1546 = vextract.high.u32 %v1544
        %v1547 = vmul.u32.u64.compose %v1543, %v1538
        %v1548 = vextract.low.u32 %v1547
        %v1549 = vextract.high.u32 %v1547
        %v1550 = vmul.u32 %v1543, %v1534
        %v1551 = vadd.s32 %v1546, %v1548
        %vm1552 = vc.u32 %v1546, %v1548
        %v1553 = vadd.s32 %v1549, 1
        %v1554 = vsel %vm1552, %v1553, %v1549
        %v1555 = vadd.s32 %v1550, %v1554
        %v1556 = vadd.s32 %v1555, 536870912
        %v1557 = vshrl.u32 %v1556, 30
        %v1558 = vshll.u32 %v1557, 30
        %v1559 = vsub.s32 %v1555, %v1558
        %vm1560 = vcmp.lt.s32.totalorder %v1559, 0
        %v1561 = vsub.s32 0, %v1559
        %v1562 = vsel %vm1560, %v1561, %v1559
        %v1563 = vclz %v1562
        %v1564 = vsub.s32 %v1563, 2
        %vm1565 = vcmp.gt.s32.totalorder 0, %v1564
        %v1566 = vsel %vm1565, 0, %v1564
        %v1567 = vsub.s32 32, %v1566
        %v1568 = vshll.u32 %v1559, %v1566
        %v1569 = vshrl.u32 %v1551, %v1567
        %v1570 = vor.u32 %v1568, %v1569
        %v1571 = vsub.s32 4294967266, %v1566
        %v1572 = vadd.s32 %v1571, 127
        %v1573 = vshll.u32 %v1572, 23
        %v1574 = vor.u32 4788187, %v1573
        %v1575 = vand.u32 2147483647, %v1574
        %v1577 = vcvt.s32.f32 %v1570
        %v1578 = vmul.f32 %v1577, %v1575
        %v1579 = vxor.u32 %v1578, 2147483648
        %v1580 = vsel %vm1497, %v1579, %v1578
        %v1581 = vsub.s32 4, %v1557
        %v1582 = vsel %vm1497, %v1581, %v1557
        %v1583 = vsel %vm1496, %v449, %v1580
        %v1584 = vsel %vm1496, 0, %v1582
        %v1585 = vcosq.f32.pop %v1583
        %v1586 = vsinq.f32.pop %v1583
        %vm1587 = vweird.f32 %v449
        %v1588 = vadd.s32 %v1584, 3
        %v1589 = vand.u32 %v1588, 3
        %vm1590 = vcmp.lt.s32.totalorder %v1589, 2
        %vm1591 = vcmp.eq.s32.totalorder %v1589, 0
        %v1592 = vxor.u32 %v1586, 2147483648
        %v1593 = vsel %vm1591, %v1585, %v1592
        %vm1594 = vcmp.eq.s32.totalorder %v1589, 2
        %v1595 = vxor.u32 %v1585, 2147483648
        %v1596 = vsel %vm1594, %v1595, %v1586
        %v1597 = vsel %vm1590, %v1593, %v1596
        %v1598 = vsel %vm1587, nan, %v1597
        %v1599 = vand.u32 2147483647, %v450
        %vm1600 = vcmp.le.f32.partialorder %v1599, 0.7853982
        %vm1601 = vcmp.lt.s32.totalorder %v450, 0
        %v1602 = vand.u32 %v450, 2139095040
        %v1603 = vshrl.u32 %v1602, 23
        %v1604 = vsub.s32 %v1603, 127
        %v1605 = vand.u32 2147483647, %v450
        %v1606 = vand.u32 %v1605, 8388607
        %v1607 = vor.u32 %v1606, 8388608
        %v1608 = vsub.s32 0, %v1607
        %v1609 = vadd.s32 %v1604, 1
        %vm1610 = vcmp.gt.s32.totalorder %v1609, 0
        %v1611 = vsel %vm1610, %v1609, 0
        %v1612 = vshrl.u32 %v1611, 5
        %v1613 = vand.u32 %v1611, 31
        %v1614 = vsub.s32 32, %v1613
        %v1615 = vshrl.u32 683565275, %v1614
        %v1616 = vshll.u32 683565275, %v1613
        %v1617 = vshrl.u32 2475754826, %v1614
        %v1618 = vor.u32 %v1616, %v1617
        %v1619 = vshll.u32 2475754826, %v1613
        %v1620 = vshrl.u32 2131351028, %v1614
        %v1621 = vor.u32 %v1619, %v1620
        %v1622 = vshll.u32 2131351028, %v1613
        %v1623 = vshrl.u32 2102212464, %v1614
        %v1624 = vor.u32 %v1622, %v1623
        %v1625 = vshll.u32 2102212464, %v1613
        %v1626 = vshrl.u32 920167782, %v1614
        %v1627 = vor.u32 %v1625, %v1626
        %v1628 = vshll.u32 920167782, %v1613
        %v1629 = vshrl.u32 1326507024, %v1614
        %v1630 = vor.u32 %v1628, %v1629
        %vm1631 = vcmp.lt.s32.totalorder %v1612, 1
        %vm1632 = vcmp.lt.s32.totalorder %v1612, 2
        %vm1633 = vcmp.lt.s32.totalorder %v1612, 3
        %vm1634 = vcmp.lt.s32.totalorder %v1612, 4
        %v1635 = vsel %vm1631, %v1615, %v1618
        %v1636 = vsel %vm1634, %v1624, 2102212464
        %v1637 = vsel %vm1633, %v1621, %v1636
        %v1638 = vsel %vm1632, %v1635, %v1637
        %v1639 = vsel %vm1631, %v1618, %v1621
        %v1640 = vsel %vm1634, %v1627, 920167782
        %v1641 = vsel %vm1633, %v1624, %v1640
        %v1642 = vsel %vm1632, %v1639, %v1641
        %v1643 = vsel %vm1631, %v1621, %v1624
        %v1644 = vsel %vm1634, %v1630, 1326507024
        %v1645 = vsel %vm1633, %v1627, %v1644
        %v1646 = vsel %vm1632, %v1643, %v1645
        %v1647 = vshll.u32 %v1607, 8
        %v1648 = vmul.u32.u64.compose %v1647, %v1646
        %v1649 = vextract.low.u32 %v1648
        %v1650 = vextract.high.u32 %v1648
        %v1651 = vmul.u32.u64.compose %v1647, %v1642
        %v1652 = vextract.low.u32 %v1651
        %v1653 = vextract.high.u32 %v1651
        %v1654 = vmul.u32 %v1647, %v1638
        %v1655 = vadd.s32 %v1650, %v1652
        %vm1656 = vc.u32 %v1650, %v1652
        %v1657 = vadd.s32 %v1653, 1
        %v1658 = vsel %vm1656, %v1657, %v1653
        %v1659 = vadd.s32 %v1654, %v1658
        %v1660 = vadd.s32 %v1659, 536870912
        %v1661 = vshrl.u32 %v1660, 30
        %v1662 = vshll.u32 %v1661, 30
        %v1663 = vsub.s32 %v1659, %v1662
        %vm1664 = vcmp.lt.s32.totalorder %v1663, 0
        %v1665 = vsub.s32 0, %v1663
        %v1666 = vsel %vm1664, %v1665, %v1663
        %v1667 = vclz %v1666
        %v1668 = vsub.s32 %v1667, 2
        %vm1669 = vcmp.gt.s32.totalorder 0, %v1668
        %v1670 = vsel %vm1669, 0, %v1668
        %v1671 = vsub.s32 32, %v1670
        %v1672 = vshll.u32 %v1663, %v1670
        %v1673 = vshrl.u32 %v1655, %v1671
        %v1674 = vor.u32 %v1672, %v1673
        %v1675 = vsub.s32 4294967266, %v1670
        %v1676 = vadd.s32 %v1675, 127
        %v1677 = vshll.u32 %v1676, 23
        %v1678 = vor.u32 4788187, %v1677
        %v1679 = vand.u32 2147483647, %v1678
        %v1681 = vcvt.s32.f32 %v1674
        %v1682 = vmul.f32 %v1681, %v1679
        %v1683 = vxor.u32 %v1682, 2147483648
        %v1684 = vsel %vm1601, %v1683, %v1682
        %v1685 = vsub.s32 4, %v1661
        %v1686 = vsel %vm1601, %v1685, %v1661
        %v1687 = vsel %vm1600, %v450, %v1684
        %v1688 = vsel %vm1600, 0, %v1686
        %v1689 = vcosq.f32.pop %v1687
        %v1690 = vsinq.f32.pop %v1687
        %vm1691 = vweird.f32 %v450
        %v1692 = vadd.s32 %v1688, 3
        %v1693 = vand.u32 %v1692, 3
        %vm1694 = vcmp.lt.s32.totalorder %v1693, 2
        %vm1695 = vcmp.eq.s32.totalorder %v1693, 0
        %v1696 = vxor.u32 %v1690, 2147483648
        %v1697 = vsel %vm1695, %v1689, %v1696
        %vm1698 = vcmp.eq.s32.totalorder %v1693, 2
        %v1699 = vxor.u32 %v1689, 2147483648
        %v1700 = vsel %vm1698, %v1699, %v1690
        %v1701 = vsel %vm1694, %v1697, %v1700
        %v1702 = vsel %vm1691, nan, %v1701
        %v1703 = vand.u32 2147483647, %v451
        %vm1704 = vcmp.le.f32.partialorder %v1703, 0.7853982
        %vm1705 = vcmp.lt.s32.totalorder %v451, 0
        %v1706 = vand.u32 %v451, 2139095040
        %v1707 = vshrl.u32 %v1706, 23
        %v1708 = vsub.s32 %v1707, 127
        %v1709 = vand.u32 2147483647, %v451
        %v1710 = vand.u32 %v1709, 8388607
        %v1711 = vor.u32 %v1710, 8388608
        %v1712 = vsub.s32 0, %v1711
        %v1713 = vadd.s32 %v1708, 1
        %vm1714 = vcmp.gt.s32.totalorder %v1713, 0
        %v1715 = vsel %vm1714, %v1713, 0
        %v1716 = vshrl.u32 %v1715, 5
        %v1717 = vand.u32 %v1715, 31
        %v1718 = vsub.s32 32, %v1717
        %v1719 = vshrl.u32 683565275, %v1718
        %v1720 = vshll.u32 683565275, %v1717
        %v1721 = vshrl.u32 2475754826, %v1718
        %v1722 = vor.u32 %v1720, %v1721
        %v1723 = vshll.u32 2475754826, %v1717
        %v1724 = vshrl.u32 2131351028, %v1718
        %v1725 = vor.u32 %v1723, %v1724
        %v1726 = vshll.u32 2131351028, %v1717
        %v1727 = vshrl.u32 2102212464, %v1718
        %v1728 = vor.u32 %v1726, %v1727
        %v1729 = vshll.u32 2102212464, %v1717
        %v1730 = vshrl.u32 920167782, %v1718
        %v1731 = vor.u32 %v1729, %v1730
        %v1732 = vshll.u32 920167782, %v1717
        %v1733 = vshrl.u32 1326507024, %v1718
        %v1734 = vor.u32 %v1732, %v1733
        %vm1735 = vcmp.lt.s32.totalorder %v1716, 1
        %vm1736 = vcmp.lt.s32.totalorder %v1716, 2
        %vm1737 = vcmp.lt.s32.totalorder %v1716, 3
        %vm1738 = vcmp.lt.s32.totalorder %v1716, 4
        %v1739 = vsel %vm1735, %v1719, %v1722
        %v1740 = vsel %vm1738, %v1728, 2102212464
        %v1741 = vsel %vm1737, %v1725, %v1740
        %v1742 = vsel %vm1736, %v1739, %v1741
        %v1743 = vsel %vm1735, %v1722, %v1725
        %v1744 = vsel %vm1738, %v1731, 920167782
        %v1745 = vsel %vm1737, %v1728, %v1744
        %v1746 = vsel %vm1736, %v1743, %v1745
        %v1747 = vsel %vm1735, %v1725, %v1728
        %v1748 = vsel %vm1738, %v1734, 1326507024
        %v1749 = vsel %vm1737, %v1731, %v1748
        %v1750 = vsel %vm1736, %v1747, %v1749
        %v1751 = vshll.u32 %v1711, 8
        %v1752 = vmul.u32.u64.compose %v1751, %v1750
        %v1753 = vextract.low.u32 %v1752
        %v1754 = vextract.high.u32 %v1752
        %v1755 = vmul.u32.u64.compose %v1751, %v1746
        %v1756 = vextract.low.u32 %v1755
        %v1757 = vextract.high.u32 %v1755
        %v1758 = vmul.u32 %v1751, %v1742
        %v1759 = vadd.s32 %v1754, %v1756
        %vm1760 = vc.u32 %v1754, %v1756
        %v1761 = vadd.s32 %v1757, 1
        %v1762 = vsel %vm1760, %v1761, %v1757
        %v1763 = vadd.s32 %v1758, %v1762
        %v1764 = vadd.s32 %v1763, 536870912
        %v1765 = vshrl.u32 %v1764, 30
        %v1766 = vshll.u32 %v1765, 30
        %v1767 = vsub.s32 %v1763, %v1766
        %vm1768 = vcmp.lt.s32.totalorder %v1767, 0
        %v1769 = vsub.s32 0, %v1767
        %v1770 = vsel %vm1768, %v1769, %v1767
        %v1771 = vclz %v1770
        %v1772 = vsub.s32 %v1771, 2
        %vm1773 = vcmp.gt.s32.totalorder 0, %v1772
        %v1774 = vsel %vm1773, 0, %v1772
        %v1775 = vsub.s32 32, %v1774
        %v1776 = vshll.u32 %v1767, %v1774
        %v1777 = vshrl.u32 %v1759, %v1775
        %v1778 = vor.u32 %v1776, %v1777
        %v1779 = vsub.s32 4294967266, %v1774
        %v1780 = vadd.s32 %v1779, 127
        %v1781 = vshll.u32 %v1780, 23
        %v1782 = vor.u32 4788187, %v1781
        %v1783 = vand.u32 2147483647, %v1782
        %v1785 = vcvt.s32.f32 %v1778
        %v1786 = vmul.f32 %v1785, %v1783
        %v1787 = vxor.u32 %v1786, 2147483648
        %v1788 = vsel %vm1705, %v1787, %v1786
        %v1789 = vsub.s32 4, %v1765
        %v1790 = vsel %vm1705, %v1789, %v1765
        %v1791 = vsel %vm1704, %v451, %v1788
        %v1792 = vsel %vm1704, 0, %v1790
        %v1793 = vcosq.f32.pop %v1791
        %v1794 = vsinq.f32.pop %v1791
        %vm1795 = vweird.f32 %v451
        %v1796 = vadd.s32 %v1792, 3
        %v1797 = vand.u32 %v1796, 3
        %vm1798 = vcmp.lt.s32.totalorder %v1797, 2
        %vm1799 = vcmp.eq.s32.totalorder %v1797, 0
        %v1800 = vxor.u32 %v1794, 2147483648
        %v1801 = vsel %vm1799, %v1793, %v1800
        %vm1802 = vcmp.eq.s32.totalorder %v1797, 2
        %v1803 = vxor.u32 %v1793, 2147483648
        %v1804 = vsel %vm1802, %v1803, %v1794
        %v1805 = vsel %vm1798, %v1801, %v1804
        %v1806 = vsel %vm1795, nan, %v1805
        %v1807 = vand.u32 2147483647, %v452
        %vm1808 = vcmp.le.f32.partialorder %v1807, 0.7853982
        %vm1809 = vcmp.lt.s32.totalorder %v452, 0
        %v1810 = vand.u32 %v452, 2139095040
        %v1811 = vshrl.u32 %v1810, 23
        %v1812 = vsub.s32 %v1811, 127
        %v1813 = vand.u32 2147483647, %v452
        %v1814 = vand.u32 %v1813, 8388607
        %v1815 = vor.u32 %v1814, 8388608
        %v1816 = vsub.s32 0, %v1815
        %v1817 = vadd.s32 %v1812, 1
        %vm1818 = vcmp.gt.s32.totalorder %v1817, 0
        %v1819 = vsel %vm1818, %v1817, 0
        %v1820 = vshrl.u32 %v1819, 5
        %v1821 = vand.u32 %v1819, 31
        %v1822 = vsub.s32 32, %v1821
        %v1823 = vshrl.u32 683565275, %v1822
        %v1824 = vshll.u32 683565275, %v1821
        %v1825 = vshrl.u32 2475754826, %v1822
        %v1826 = vor.u32 %v1824, %v1825
        %v1827 = vshll.u32 2475754826, %v1821
        %v1828 = vshrl.u32 2131351028, %v1822
        %v1829 = vor.u32 %v1827, %v1828
        %v1830 = vshll.u32 2131351028, %v1821
        %v1831 = vshrl.u32 2102212464, %v1822
        %v1832 = vor.u32 %v1830, %v1831
        %v1833 = vshll.u32 2102212464, %v1821
        %v1834 = vshrl.u32 920167782, %v1822
        %v1835 = vor.u32 %v1833, %v1834
        %v1836 = vshll.u32 920167782, %v1821
        %v1837 = vshrl.u32 1326507024, %v1822
        %v1838 = vor.u32 %v1836, %v1837
        %vm1839 = vcmp.lt.s32.totalorder %v1820, 1
        %vm1840 = vcmp.lt.s32.totalorder %v1820, 2
        %vm1841 = vcmp.lt.s32.totalorder %v1820, 3
        %vm1842 = vcmp.lt.s32.totalorder %v1820, 4
        %v1843 = vsel %vm1839, %v1823, %v1826
        %v1844 = vsel %vm1842, %v1832, 2102212464
        %v1845 = vsel %vm1841, %v1829, %v1844
        %v1846 = vsel %vm1840, %v1843, %v1845
        %v1847 = vsel %vm1839, %v1826, %v1829
        %v1848 = vsel %vm1842, %v1835, 920167782
        %v1849 = vsel %vm1841, %v1832, %v1848
        %v1850 = vsel %vm1840, %v1847, %v1849
        %v1851 = vsel %vm1839, %v1829, %v1832
        %v1852 = vsel %vm1842, %v1838, 1326507024
        %v1853 = vsel %vm1841, %v1835, %v1852
        %v1854 = vsel %vm1840, %v1851, %v1853
        %v1855 = vshll.u32 %v1815, 8
        %v1856 = vmul.u32.u64.compose %v1855, %v1854
        %v1857 = vextract.low.u32 %v1856
        %v1858 = vextract.high.u32 %v1856
        %v1859 = vmul.u32.u64.compose %v1855, %v1850
        %v1860 = vextract.low.u32 %v1859
        %v1861 = vextract.high.u32 %v1859
        %v1862 = vmul.u32 %v1855, %v1846
        %v1863 = vadd.s32 %v1858, %v1860
        %vm1864 = vc.u32 %v1858, %v1860
        %v1865 = vadd.s32 %v1861, 1
        %v1866 = vsel %vm1864, %v1865, %v1861
        %v1867 = vadd.s32 %v1862, %v1866
        %v1868 = vadd.s32 %v1867, 536870912
        %v1869 = vshrl.u32 %v1868, 30
        %v1870 = vshll.u32 %v1869, 30
        %v1871 = vsub.s32 %v1867, %v1870
        %vm1872 = vcmp.lt.s32.totalorder %v1871, 0
        %v1873 = vsub.s32 0, %v1871
        %v1874 = vsel %vm1872, %v1873, %v1871
        %v1875 = vclz %v1874
        %v1876 = vsub.s32 %v1875, 2
        %vm1877 = vcmp.gt.s32.totalorder 0, %v1876
        %v1878 = vsel %vm1877, 0, %v1876
        %v1879 = vsub.s32 32, %v1878
        %v1880 = vshll.u32 %v1871, %v1878
        %v1881 = vshrl.u32 %v1863, %v1879
        %v1882 = vor.u32 %v1880, %v1881
        %v1883 = vsub.s32 4294967266, %v1878
        %v1884 = vadd.s32 %v1883, 127
        %v1885 = vshll.u32 %v1884, 23
        %v1886 = vor.u32 4788187, %v1885
        %v1887 = vand.u32 2147483647, %v1886
        %v1889 = vcvt.s32.f32 %v1882
        %v1890 = vmul.f32 %v1889, %v1887
        %v1891 = vxor.u32 %v1890, 2147483648
        %v1892 = vsel %vm1809, %v1891, %v1890
        %v1893 = vsub.s32 4, %v1869
        %v1894 = vsel %vm1809, %v1893, %v1869
        %v1895 = vsel %vm1808, %v452, %v1892
        %v1896 = vsel %vm1808, 0, %v1894
        %v1897 = vcosq.f32.pop %v1895
        %v1898 = vsinq.f32.pop %v1895
        %vm1899 = vweird.f32 %v452
        %v1900 = vadd.s32 %v1896, 3
        %v1901 = vand.u32 %v1900, 3
        %vm1902 = vcmp.lt.s32.totalorder %v1901, 2
        %vm1903 = vcmp.eq.s32.totalorder %v1901, 0
        %v1904 = vxor.u32 %v1898, 2147483648
        %v1905 = vsel %vm1903, %v1897, %v1904
        %vm1906 = vcmp.eq.s32.totalorder %v1901, 2
        %v1907 = vxor.u32 %v1897, 2147483648
        %v1908 = vsel %vm1906, %v1907, %v1898
        %v1909 = vsel %vm1902, %v1905, %v1908
        %v1910 = vsel %vm1899, nan, %v1909
        %v1911 = vand.u32 2147483647, %v453
        %vm1912 = vcmp.le.f32.partialorder %v1911, 0.7853982
        %vm1913 = vcmp.lt.s32.totalorder %v453, 0
        %v1914 = vand.u32 %v453, 2139095040
        %v1915 = vshrl.u32 %v1914, 23
        %v1916 = vsub.s32 %v1915, 127
        %v1917 = vand.u32 2147483647, %v453
        %v1918 = vand.u32 %v1917, 8388607
        %v1919 = vor.u32 %v1918, 8388608
        %v1920 = vsub.s32 0, %v1919
        %v1921 = vadd.s32 %v1916, 1
        %vm1922 = vcmp.gt.s32.totalorder %v1921, 0
        %v1923 = vsel %vm1922, %v1921, 0
        %v1924 = vshrl.u32 %v1923, 5
        %v1925 = vand.u32 %v1923, 31
        %v1926 = vsub.s32 32, %v1925
        %v1927 = vshrl.u32 683565275, %v1926
        %v1928 = vshll.u32 683565275, %v1925
        %v1929 = vshrl.u32 2475754826, %v1926
        %v1930 = vor.u32 %v1928, %v1929
        %v1931 = vshll.u32 2475754826, %v1925
        %v1932 = vshrl.u32 2131351028, %v1926
        %v1933 = vor.u32 %v1931, %v1932
        %v1934 = vshll.u32 2131351028, %v1925
        %v1935 = vshrl.u32 2102212464, %v1926
        %v1936 = vor.u32 %v1934, %v1935
        %v1937 = vshll.u32 2102212464, %v1925
        %v1938 = vshrl.u32 920167782, %v1926
        %v1939 = vor.u32 %v1937, %v1938
        %v1940 = vshll.u32 920167782, %v1925
        %v1941 = vshrl.u32 1326507024, %v1926
        %v1942 = vor.u32 %v1940, %v1941
        %vm1943 = vcmp.lt.s32.totalorder %v1924, 1
        %vm1944 = vcmp.lt.s32.totalorder %v1924, 2
        %vm1945 = vcmp.lt.s32.totalorder %v1924, 3
        %vm1946 = vcmp.lt.s32.totalorder %v1924, 4
        %v1947 = vsel %vm1943, %v1927, %v1930
        %v1948 = vsel %vm1946, %v1936, 2102212464
        %v1949 = vsel %vm1945, %v1933, %v1948
        %v1950 = vsel %vm1944, %v1947, %v1949
        %v1951 = vsel %vm1943, %v1930, %v1933
        %v1952 = vsel %vm1946, %v1939, 920167782
        %v1953 = vsel %vm1945, %v1936, %v1952
        %v1954 = vsel %vm1944, %v1951, %v1953
        %v1955 = vsel %vm1943, %v1933, %v1936
        %v1956 = vsel %vm1946, %v1942, 1326507024
        %v1957 = vsel %vm1945, %v1939, %v1956
        %v1958 = vsel %vm1944, %v1955, %v1957
        %v1959 = vshll.u32 %v1919, 8
        %v1960 = vmul.u32.u64.compose %v1959, %v1958
        %v1961 = vextract.low.u32 %v1960
        %v1962 = vextract.high.u32 %v1960
        %v1963 = vmul.u32.u64.compose %v1959, %v1954
        %v1964 = vextract.low.u32 %v1963
        %v1965 = vextract.high.u32 %v1963
        %v1966 = vmul.u32 %v1959, %v1950
        %v1967 = vadd.s32 %v1962, %v1964
        %vm1968 = vc.u32 %v1962, %v1964
        %v1969 = vadd.s32 %v1965, 1
        %v1970 = vsel %vm1968, %v1969, %v1965
        %v1971 = vadd.s32 %v1966, %v1970
        %v1972 = vadd.s32 %v1971, 536870912
        %v1973 = vshrl.u32 %v1972, 30
        %v1974 = vshll.u32 %v1973, 30
        %v1975 = vsub.s32 %v1971, %v1974
        %vm1976 = vcmp.lt.s32.totalorder %v1975, 0
        %v1977 = vsub.s32 0, %v1975
        %v1978 = vsel %vm1976, %v1977, %v1975
        %v1979 = vclz %v1978
        %v1980 = vsub.s32 %v1979, 2
        %vm1981 = vcmp.gt.s32.totalorder 0, %v1980
        %v1982 = vsel %vm1981, 0, %v1980
        %v1983 = vsub.s32 32, %v1982
        %v1984 = vshll.u32 %v1975, %v1982
        %v1985 = vshrl.u32 %v1967, %v1983
        %v1986 = vor.u32 %v1984, %v1985
        %v1987 = vsub.s32 4294967266, %v1982
        %v1988 = vadd.s32 %v1987, 127
        %v1989 = vshll.u32 %v1988, 23
        %v1990 = vor.u32 4788187, %v1989
        %v1991 = vand.u32 2147483647, %v1990
        %v1993 = vcvt.s32.f32 %v1986
        %v1994 = vmul.f32 %v1993, %v1991
        %v1995 = vxor.u32 %v1994, 2147483648
        %v1996 = vsel %vm1913, %v1995, %v1994
        %v1997 = vsub.s32 4, %v1973
        %v1998 = vsel %vm1913, %v1997, %v1973
        %v1999 = vsel %vm1912, %v453, %v1996
        %v2000 = vsel %vm1912, 0, %v1998
        %v2001 = vcosq.f32.pop %v1999
        %v2002 = vsinq.f32.pop %v1999
        %vm2003 = vweird.f32 %v453
        %v2004 = vadd.s32 %v2000, 3
        %v2005 = vand.u32 %v2004, 3
        %vm2006 = vcmp.lt.s32.totalorder %v2005, 2
        %vm2007 = vcmp.eq.s32.totalorder %v2005, 0
        %v2008 = vxor.u32 %v2002, 2147483648
        %v2009 = vsel %vm2007, %v2001, %v2008
        %vm2010 = vcmp.eq.s32.totalorder %v2005, 2
        %v2011 = vxor.u32 %v2001, 2147483648
        %v2012 = vsel %vm2010, %v2011, %v2002
        %v2013 = vsel %vm2006, %v2009, %v2012
        %v2014 = vsel %vm2003, nan, %v2013
        %v2015 = vand.u32 2147483647, %v454
        %vm2016 = vcmp.le.f32.partialorder %v2015, 0.7853982
        %vm2017 = vcmp.lt.s32.totalorder %v454, 0
        %v2018 = vand.u32 %v454, 2139095040
        %v2019 = vshrl.u32 %v2018, 23
        %v2020 = vsub.s32 %v2019, 127
        %v2021 = vand.u32 2147483647, %v454
        %v2022 = vand.u32 %v2021, 8388607
        %v2023 = vor.u32 %v2022, 8388608
        %v2024 = vsub.s32 0, %v2023
        %v2025 = vadd.s32 %v2020, 1
        %vm2026 = vcmp.gt.s32.totalorder %v2025, 0
        %v2027 = vsel %vm2026, %v2025, 0
        %v2028 = vshrl.u32 %v2027, 5
        %v2029 = vand.u32 %v2027, 31
        %v2030 = vsub.s32 32, %v2029
        %v2031 = vshrl.u32 683565275, %v2030
        %v2032 = vshll.u32 683565275, %v2029
        %v2033 = vshrl.u32 2475754826, %v2030
        %v2034 = vor.u32 %v2032, %v2033
        %v2035 = vshll.u32 2475754826, %v2029
        %v2036 = vshrl.u32 2131351028, %v2030
        %v2037 = vor.u32 %v2035, %v2036
        %v2038 = vshll.u32 2131351028, %v2029
        %v2039 = vshrl.u32 2102212464, %v2030
        %v2040 = vor.u32 %v2038, %v2039
        %v2041 = vshll.u32 2102212464, %v2029
        %v2042 = vshrl.u32 920167782, %v2030
        %v2043 = vor.u32 %v2041, %v2042
        %v2044 = vshll.u32 920167782, %v2029
        %v2045 = vshrl.u32 1326507024, %v2030
        %v2046 = vor.u32 %v2044, %v2045
        %vm2047 = vcmp.lt.s32.totalorder %v2028, 1
        %vm2048 = vcmp.lt.s32.totalorder %v2028, 2
        %vm2049 = vcmp.lt.s32.totalorder %v2028, 3
        %vm2050 = vcmp.lt.s32.totalorder %v2028, 4
        %v2051 = vsel %vm2047, %v2031, %v2034
        %v2052 = vsel %vm2050, %v2040, 2102212464
        %v2053 = vsel %vm2049, %v2037, %v2052
        %v2054 = vsel %vm2048, %v2051, %v2053
        %v2055 = vsel %vm2047, %v2034, %v2037
        %v2056 = vsel %vm2050, %v2043, 920167782
        %v2057 = vsel %vm2049, %v2040, %v2056
        %v2058 = vsel %vm2048, %v2055, %v2057
        %v2059 = vsel %vm2047, %v2037, %v2040
        %v2060 = vsel %vm2050, %v2046, 1326507024
        %v2061 = vsel %vm2049, %v2043, %v2060
        %v2062 = vsel %vm2048, %v2059, %v2061
        %v2063 = vshll.u32 %v2023, 8
        %v2064 = vmul.u32.u64.compose %v2063, %v2062
        %v2065 = vextract.low.u32 %v2064
        %v2066 = vextract.high.u32 %v2064
        %v2067 = vmul.u32.u64.compose %v2063, %v2058
        %v2068 = vextract.low.u32 %v2067
        %v2069 = vextract.high.u32 %v2067
        %v2070 = vmul.u32 %v2063, %v2054
        %v2071 = vadd.s32 %v2066, %v2068
        %vm2072 = vc.u32 %v2066, %v2068
        %v2073 = vadd.s32 %v2069, 1
        %v2074 = vsel %vm2072, %v2073, %v2069
        %v2075 = vadd.s32 %v2070, %v2074
        %v2076 = vadd.s32 %v2075, 536870912
        %v2077 = vshrl.u32 %v2076, 30
        %v2078 = vshll.u32 %v2077, 30
        %v2079 = vsub.s32 %v2075, %v2078
        %vm2080 = vcmp.lt.s32.totalorder %v2079, 0
        %v2081 = vsub.s32 0, %v2079
        %v2082 = vsel %vm2080, %v2081, %v2079
        %v2083 = vclz %v2082
        %v2084 = vsub.s32 %v2083, 2
        %vm2085 = vcmp.gt.s32.totalorder 0, %v2084
        %v2086 = vsel %vm2085, 0, %v2084
        %v2087 = vsub.s32 32, %v2086
        %v2088 = vshll.u32 %v2079, %v2086
        %v2089 = vshrl.u32 %v2071, %v2087
        %v2090 = vor.u32 %v2088, %v2089
        %v2091 = vsub.s32 4294967266, %v2086
        %v2092 = vadd.s32 %v2091, 127
        %v2093 = vshll.u32 %v2092, 23
        %v2094 = vor.u32 4788187, %v2093
        %v2095 = vand.u32 2147483647, %v2094
        %v2097 = vcvt.s32.f32 %v2090
        %v2098 = vmul.f32 %v2097, %v2095
        %v2099 = vxor.u32 %v2098, 2147483648
        %v2100 = vsel %vm2017, %v2099, %v2098
        %v2101 = vsub.s32 4, %v2077
        %v2102 = vsel %vm2017, %v2101, %v2077
        %v2103 = vsel %vm2016, %v454, %v2100
        %v2104 = vsel %vm2016, 0, %v2102
        %v2105 = vcosq.f32.pop %v2103
        %v2106 = vsinq.f32.pop %v2103
        %vm2107 = vweird.f32 %v454
        %v2108 = vadd.s32 %v2104, 3
        %v2109 = vand.u32 %v2108, 3
        %vm2110 = vcmp.lt.s32.totalorder %v2109, 2
        %vm2111 = vcmp.eq.s32.totalorder %v2109, 0
        %v2112 = vxor.u32 %v2106, 2147483648
        %v2113 = vsel %vm2111, %v2105, %v2112
        %vm2114 = vcmp.eq.s32.totalorder %v2109, 2
        %v2115 = vxor.u32 %v2105, 2147483648
        %v2116 = vsel %vm2114, %v2115, %v2106
        %v2117 = vsel %vm2110, %v2113, %v2116
        %v2118 = vsel %vm2107, nan, %v2117
        %s2119 = scalar_lea.vmem %s5, 32
        %v2120 = vld [vmem:[%s2119] sm:$0xff]
        %v2121 = vld [vmem:[%s2119 + $0x8] sm:$0xff]
        %v2122 = vld [vmem:[%s2119 + $0x10] sm:$0xff]
        %v2123 = vld [vmem:[%s2119 + $0x18] sm:$0xff]
        %v2124 = vld [vmem:[%s2] sm:$0xff]
        %v2125 = vld [vmem:[%s2 + $0x8] sm:$0xff]
        %v2126 = vld [vmem:[%s2 + $0x10] sm:$0xff]
        %v2127 = vld [vmem:[%s2 + $0x18] sm:$0xff]
        %2129 = vset.pattern.permute.xlu0 0
        %2130 = vperm.xlu0 %2129, %v2120
        %v2131 = vpop.permute.xlu0 %2130
        %2134 = vset.pattern.permute.xlu0 0
        %2135 = vperm.xlu0 %2134, %v2121
        %v2136 = vpop.permute.xlu0 %2135
        %2139 = vset.pattern.permute.xlu0 0
        %2140 = vperm.xlu0 %2139, %v2122
        %v2141 = vpop.permute.xlu0 %2140
        %2144 = vset.pattern.permute.xlu0 0
        %2145 = vperm.xlu0 %2144, %v2123
        %v2146 = vpop.permute.xlu0 %2145
        %vm2148 = vcmask 261120
        %v2150 = vsel %vm2148, %v2124, 0
        %v2153 = vsel %vm2148, %v2125, 0
        %v2156 = vsel %vm2148, %v2126, 0
        %v2159 = vsel %vm2148, %v2127, 0
        %2161 = vmatprep.subr.mxu0 0.0
        %2162 = vmatpush1.msra.mxu0 0.0
        %2163 = vmatprep.subr.mxu0 0.0
        %2164 = vmatpush1.msra.mxu0 0.0
        %2165 = vmatprep.subr.mxu0 0.0
        %2166 = vmatpush1.msra.mxu0 0.0
        %2167 = vmatprep.subr.mxu0 0.0
        %2168 = vmatpush1.msra.mxu0 0.0
        %2169 = vmatprep.subr.mxu0 0.0
        %2170 = vmatpush1.msra.mxu0 0.0
        %2171 = vmatprep.subr.mxu0 0.0
        %2172 = vmatpush1.msra.mxu0 0.0
        %2173 = vmatprep.subr.mxu0 0.0
        %2174 = vmatpush1.msra.mxu0 0.0
        %2175 = vmatprep.subr.mxu0 0.0
        %2176 = vmatpush1.msra.mxu0 0.0
        %2177 = vmatprep.subr.mxu0 0.0
        %2178 = vmatpush1.msra.mxu0 0.0
        %2179 = vmatprep.subr.mxu0 0.0
        %2180 = vmatpush1.msra.mxu0 0.0
        %2181 = vmatprep.subr.mxu0 0.0
        %2182 = vmatpush1.msra.mxu0 0.0
        %2183 = vmatprep.subr.mxu0 0.0
        %2184 = vmatpush1.msra.mxu0 0.0
        %2185 = vmatprep.subr.mxu0 %v1910
        %2186 = vmatpush1.msra.mxu0 %v1806
        %2187 = vmatprep.subr.mxu0 %v1494
        %2188 = vmatpush1.msra.mxu0 %v1390
        %2189 = vmatprep.subr.mxu0 %v1078
        %2190 = vmatpush1.msra.mxu0 %v974
        %2191 = vmatprep.subr.mxu0 %v662
        %2192 = vmatpush1.msra.mxu0 %v558
        %2193 = vmatprep.subr.mxu0 0.0
        %2194 = vmatpush2.msra.mxu0 0.0
        %2195 = vmatprep.subr.mxu0 0.0
        %2196 = vmatpush2.msra.mxu0 0.0
        %2197 = vmatprep.subr.mxu0 0.0
        %2198 = vmatpush2.msra.mxu0 0.0
        %2199 = vmatprep.subr.mxu0 0.0
        %2200 = vmatpush2.msra.mxu0 0.0
        %2201 = vmatprep.subr.mxu0 0.0
        %2202 = vmatpush2.msra.mxu0 0.0
        %2203 = vmatprep.subr.mxu0 0.0
        %2204 = vmatpush2.msra.mxu0 0.0
        %2205 = vmatprep.subr.mxu0 0.0
        %2206 = vmatpush2.msra.mxu0 0.0
        %2207 = vmatprep.subr.mxu0 0.0
        %2208 = vmatpush2.msra.mxu0 0.0
        %2209 = vmatprep.subr.mxu0 0.0
        %2210 = vmatpush2.msra.mxu0 0.0
        %2211 = vmatprep.subr.mxu0 0.0
        %2212 = vmatpush2.msra.mxu0 0.0
        %2213 = vmatprep.subr.mxu0 0.0
        %2214 = vmatpush2.msra.mxu0 0.0
        %2215 = vmatprep.subr.mxu0 0.0
        %2216 = vmatpush2.msra.mxu0 0.0
        %2217 = vmatprep.subr.mxu0 0.0
        %2218 = vmatpush2.msra.mxu0 0.0
        %2219 = vmatprep.subr.mxu0 0.0
        %2220 = vmatpush2.msra.mxu0 0.0
        %2221 = vmatprep.subr.mxu0 0.0
        %2222 = vmatpush2.msra.mxu0 0.0
        %2223 = vmatprep.subr.mxu0 0.0
        %2224 = vmatpush2.msra.mxu0 0.0
        %2225 = vmatprep.mubr.f32.mxu0 0.0
        %2226 = vmatmul.mubr.f32.gmra.mxu0 %v2150
        %v2227 = vpop.f32.mrf.mxu0
        %v2228 = vadd.f32 %v2131, %v2227
        %v2229 = vpop.f32.mrf.mxu0
        %v2230 = vadd.f32 %v2131, %v2229
        %2231 = vmatprep.mubr.f32.mxu0 0.0
        %2232 = vmatmul.mubr.f32.gmra.mxu0 %v2153
        %v2233 = vpop.f32.mrf.mxu0
        %v2234 = vadd.f32 %v2136, %v2233
        %v2235 = vpop.f32.mrf.mxu0
        %v2236 = vadd.f32 %v2136, %v2235
        %2237 = vmatprep.mubr.f32.mxu0 0.0
        %2238 = vmatmul.mubr.f32.gmra.mxu0 %v2156
        %v2239 = vpop.f32.mrf.mxu0
        %v2240 = vadd.f32 %v2141, %v2239
        %v2241 = vpop.f32.mrf.mxu0
        %v2242 = vadd.f32 %v2141, %v2241
        %2243 = vmatprep.mubr.f32.mxu0 0.0
        %2244 = vmatmul.mubr.f32.gmra.mxu0 %v2159
        %v2245 = vpop.f32.mrf.mxu0
        %v2246 = vadd.f32 %v2146, %v2245
        %v2247 = vpop.f32.mrf.mxu0
        %v2248 = vadd.f32 %v2146, %v2247
        %2249 = vdwg.mxu0
        %2250 = vmatprep.subr.mxu0 0.0
        %2251 = vmatpush1.msra.mxu0 0.0
        %2252 = vmatprep.subr.mxu0 0.0
        %2253 = vmatpush1.msra.mxu0 0.0
        %2254 = vmatprep.subr.mxu0 0.0
        %2255 = vmatpush1.msra.mxu0 0.0
        %2256 = vmatprep.subr.mxu0 0.0
        %2257 = vmatpush1.msra.mxu0 0.0
        %2258 = vmatprep.subr.mxu0 0.0
        %2259 = vmatpush1.msra.mxu0 0.0
        %2260 = vmatprep.subr.mxu0 0.0
        %2261 = vmatpush1.msra.mxu0 0.0
        %2262 = vmatprep.subr.mxu0 0.0
        %2263 = vmatpush1.msra.mxu0 0.0
        %2264 = vmatprep.subr.mxu0 0.0
        %2265 = vmatpush1.msra.mxu0 0.0
        %2266 = vmatprep.subr.mxu0 0.0
        %2267 = vmatpush1.msra.mxu0 0.0
        %2268 = vmatprep.subr.mxu0 0.0
        %2269 = vmatpush1.msra.mxu0 0.0
        %2270 = vmatprep.subr.mxu0 0.0
        %2271 = vmatpush1.msra.mxu0 0.0
        %2272 = vmatprep.subr.mxu0 0.0
        %2273 = vmatpush1.msra.mxu0 0.0
        %2274 = vmatprep.subr.mxu0 %v2118
        %2275 = vmatpush1.msra.mxu0 %v2014
        %2276 = vmatprep.subr.mxu0 %v1702
        %2277 = vmatpush1.msra.mxu0 %v1598
        %2278 = vmatprep.subr.mxu0 %v1286
        %2279 = vmatpush1.msra.mxu0 %v1182
        %2280 = vmatprep.subr.mxu0 %v870
        %2281 = vmatpush1.msra.mxu0 %v766
        %2282 = vmatprep.subr.mxu0 0.0
        %2283 = vmatpush2.msra.mxu0 0.0
        %2284 = vmatprep.subr.mxu0 0.0
        %2285 = vmatpush2.msra.mxu0 0.0
        %2286 = vmatprep.subr.mxu0 0.0
        %2287 = vmatpush2.msra.mxu0 0.0
        %2288 = vmatprep.subr.mxu0 0.0
        %2289 = vmatpush2.msra.mxu0 0.0
        %2290 = vmatprep.subr.mxu0 0.0
        %2291 = vmatpush2.msra.mxu0 0.0
        %2292 = vmatprep.subr.mxu0 0.0
        %2293 = vmatpush2.msra.mxu0 0.0
        %2294 = vmatprep.subr.mxu0 0.0
        %2295 = vmatpush2.msra.mxu0 0.0
        %2296 = vmatprep.subr.mxu0 0.0
        %2297 = vmatpush2.msra.mxu0 0.0
        %2298 = vmatprep.subr.mxu0 0.0
        %2299 = vmatpush2.msra.mxu0 0.0
        %2300 = vmatprep.subr.mxu0 0.0
        %2301 = vmatpush2.msra.mxu0 0.0
        %2302 = vmatprep.subr.mxu0 0.0
        %2303 = vmatpush2.msra.mxu0 0.0
        %2304 = vmatprep.subr.mxu0 0.0
        %2305 = vmatpush2.msra.mxu0 0.0
        %2306 = vmatprep.subr.mxu0 0.0
        %2307 = vmatpush2.msra.mxu0 0.0
        %2308 = vmatprep.subr.mxu0 0.0
        %2309 = vmatpush2.msra.mxu0 0.0
        %2310 = vmatprep.subr.mxu0 0.0
        %2311 = vmatpush2.msra.mxu0 0.0
        %2312 = vmatprep.subr.mxu0 0.0
        %2313 = vmatpush2.msra.mxu0 0.0
        %2314 = vmatprep.mubr.f32.mxu0 0.0
        %2315 = vmatmul.mubr.f32.gmra.mxu0 %v2150
        %v2316 = vpop.f32.mrf.mxu0
        %v2317 = vadd.f32 %v2131, %v2316
        %v2318 = vpop.f32.mrf.mxu0
        %v2319 = vadd.f32 %v2131, %v2318
        %2320 = vmatprep.mubr.f32.mxu0 0.0
        %2321 = vmatmul.mubr.f32.gmra.mxu0 %v2153
        %v2322 = vpop.f32.mrf.mxu0
        %v2323 = vadd.f32 %v2136, %v2322
        %v2324 = vpop.f32.mrf.mxu0
        %v2325 = vadd.f32 %v2136, %v2324
        %2326 = vmatprep.mubr.f32.mxu0 0.0
        %2327 = vmatmul.mubr.f32.gmra.mxu0 %v2156
        %v2328 = vpop.f32.mrf.mxu0
        %v2329 = vadd.f32 %v2141, %v2328
        %v2330 = vpop.f32.mrf.mxu0
        %v2331 = vadd.f32 %v2141, %v2330
        %2332 = vmatprep.mubr.f32.mxu0 0.0
        %2333 = vmatmul.mubr.f32.gmra.mxu0 %v2159
        %v2334 = vpop.f32.mrf.mxu0
        %v2335 = vadd.f32 %v2146, %v2334
        %v2336 = vpop.f32.mrf.mxu0
        %v2337 = vadd.f32 %v2146, %v2336
        %2338 = vdwg.mxu0
        %v2339 = vand.u32 2147483647, %v2228
        %vm2340 = vcmp.le.f32.partialorder %v2339, 0.7853982
        %vm2341 = vcmp.lt.s32.totalorder %v2228, 0
        %v2342 = vand.u32 %v2228, 2139095040
        %v2343 = vshrl.u32 %v2342, 23
        %v2344 = vsub.s32 %v2343, 127
        %v2345 = vand.u32 2147483647, %v2228
        %v2346 = vand.u32 %v2345, 8388607
        %v2347 = vor.u32 %v2346, 8388608
        %v2348 = vsub.s32 0, %v2347
        %v2349 = vadd.s32 %v2344, 1
        %vm2350 = vcmp.gt.s32.totalorder %v2349, 0
        %v2351 = vsel %vm2350, %v2349, 0
        %v2352 = vshrl.u32 %v2351, 5
        %v2353 = vand.u32 %v2351, 31
        %v2354 = vsub.s32 32, %v2353
        %v2355 = vshrl.u32 683565275, %v2354
        %v2356 = vshll.u32 683565275, %v2353
        %v2357 = vshrl.u32 2475754826, %v2354
        %v2358 = vor.u32 %v2356, %v2357
        %v2359 = vshll.u32 2475754826, %v2353
        %v2360 = vshrl.u32 2131351028, %v2354
        %v2361 = vor.u32 %v2359, %v2360
        %v2362 = vshll.u32 2131351028, %v2353
        %v2363 = vshrl.u32 2102212464, %v2354
        %v2364 = vor.u32 %v2362, %v2363
        %v2365 = vshll.u32 2102212464, %v2353
        %v2366 = vshrl.u32 920167782, %v2354
        %v2367 = vor.u32 %v2365, %v2366
        %v2368 = vshll.u32 920167782, %v2353
        %v2369 = vshrl.u32 1326507024, %v2354
        %v2370 = vor.u32 %v2368, %v2369
        %vm2371 = vcmp.lt.s32.totalorder %v2352, 1
        %vm2372 = vcmp.lt.s32.totalorder %v2352, 2
        %vm2373 = vcmp.lt.s32.totalorder %v2352, 3
        %vm2374 = vcmp.lt.s32.totalorder %v2352, 4
        %v2375 = vsel %vm2371, %v2355, %v2358
        %v2376 = vsel %vm2374, %v2364, 2102212464
        %v2377 = vsel %vm2373, %v2361, %v2376
        %v2378 = vsel %vm2372, %v2375, %v2377
        %v2379 = vsel %vm2371, %v2358, %v2361
        %v2380 = vsel %vm2374, %v2367, 920167782
        %v2381 = vsel %vm2373, %v2364, %v2380
        %v2382 = vsel %vm2372, %v2379, %v2381
        %v2383 = vsel %vm2371, %v2361, %v2364
        %v2384 = vsel %vm2374, %v2370, 1326507024
        %v2385 = vsel %vm2373, %v2367, %v2384
        %v2386 = vsel %vm2372, %v2383, %v2385
        %v2387 = vshll.u32 %v2347, 8
        %v2388 = vmul.u32.u64.compose %v2387, %v2386
        %v2389 = vextract.low.u32 %v2388
        %v2390 = vextract.high.u32 %v2388
        %v2391 = vmul.u32.u64.compose %v2387, %v2382
        %v2392 = vextract.low.u32 %v2391
        %v2393 = vextract.high.u32 %v2391
        %v2394 = vmul.u32 %v2387, %v2378
        %v2395 = vadd.s32 %v2390, %v2392
        %vm2396 = vc.u32 %v2390, %v2392
        %v2397 = vadd.s32 %v2393, 1
        %v2398 = vsel %vm2396, %v2397, %v2393
        %v2399 = vadd.s32 %v2394, %v2398
        %v2400 = vadd.s32 %v2399, 536870912
        %v2401 = vshrl.u32 %v2400, 30
        %v2402 = vshll.u32 %v2401, 30
        %v2403 = vsub.s32 %v2399, %v2402
        %vm2404 = vcmp.lt.s32.totalorder %v2403, 0
        %v2405 = vsub.s32 0, %v2403
        %v2406 = vsel %vm2404, %v2405, %v2403
        %v2407 = vclz %v2406
        %v2408 = vsub.s32 %v2407, 2
        %vm2409 = vcmp.gt.s32.totalorder 0, %v2408
        %v2410 = vsel %vm2409, 0, %v2408
        %v2411 = vsub.s32 32, %v2410
        %v2412 = vshll.u32 %v2403, %v2410
        %v2413 = vshrl.u32 %v2395, %v2411
        %v2414 = vor.u32 %v2412, %v2413
        %v2415 = vsub.s32 4294967266, %v2410
        %v2416 = vadd.s32 %v2415, 127
        %v2417 = vshll.u32 %v2416, 23
        %v2418 = vor.u32 4788187, %v2417
        %v2419 = vand.u32 2147483647, %v2418
        %v2421 = vcvt.s32.f32 %v2414
        %v2422 = vmul.f32 %v2421, %v2419
        %v2423 = vxor.u32 %v2422, 2147483648
        %v2424 = vsel %vm2341, %v2423, %v2422
        %v2425 = vsub.s32 4, %v2401
        %v2426 = vsel %vm2341, %v2425, %v2401
        %v2427 = vsel %vm2340, %v2228, %v2424
        %v2428 = vsel %vm2340, 0, %v2426
        %v2429 = vcosq.f32.pop %v2427
        %v2430 = vsinq.f32.pop %v2427
        %vm2431 = vweird.f32 %v2228
        %v2432 = vadd.s32 %v2428, 3
        %v2433 = vand.u32 %v2432, 3
        %vm2434 = vcmp.lt.s32.totalorder %v2433, 2
        %vm2435 = vcmp.eq.s32.totalorder %v2433, 0
        %v2436 = vxor.u32 %v2430, 2147483648
        %v2437 = vsel %vm2435, %v2429, %v2436
        %vm2438 = vcmp.eq.s32.totalorder %v2433, 2
        %v2439 = vxor.u32 %v2429, 2147483648
        %v2440 = vsel %vm2438, %v2439, %v2430
        %v2441 = vsel %vm2434, %v2437, %v2440
        %v2442 = vsel %vm2431, nan, %v2441
        %v2443 = vand.u32 2147483647, %v2230
        %vm2444 = vcmp.le.f32.partialorder %v2443, 0.7853982
        %vm2445 = vcmp.lt.s32.totalorder %v2230, 0
        %v2446 = vand.u32 %v2230, 2139095040
        %v2447 = vshrl.u32 %v2446, 23
        %v2448 = vsub.s32 %v2447, 127
        %v2449 = vand.u32 2147483647, %v2230
        %v2450 = vand.u32 %v2449, 8388607
        %v2451 = vor.u32 %v2450, 8388608
        %v2452 = vsub.s32 0, %v2451
        %v2453 = vadd.s32 %v2448, 1
        %vm2454 = vcmp.gt.s32.totalorder %v2453, 0
        %v2455 = vsel %vm2454, %v2453, 0
        %v2456 = vshrl.u32 %v2455, 5
        %v2457 = vand.u32 %v2455, 31
        %v2458 = vsub.s32 32, %v2457
        %v2459 = vshrl.u32 683565275, %v2458
        %v2460 = vshll.u32 683565275, %v2457
        %v2461 = vshrl.u32 2475754826, %v2458
        %v2462 = vor.u32 %v2460, %v2461
        %v2463 = vshll.u32 2475754826, %v2457
        %v2464 = vshrl.u32 2131351028, %v2458
        %v2465 = vor.u32 %v2463, %v2464
        %v2466 = vshll.u32 2131351028, %v2457
        %v2467 = vshrl.u32 2102212464, %v2458
        %v2468 = vor.u32 %v2466, %v2467
        %v2469 = vshll.u32 2102212464, %v2457
        %v2470 = vshrl.u32 920167782, %v2458
        %v2471 = vor.u32 %v2469, %v2470
        %v2472 = vshll.u32 920167782, %v2457
        %v2473 = vshrl.u32 1326507024, %v2458
        %v2474 = vor.u32 %v2472, %v2473
        %vm2475 = vcmp.lt.s32.totalorder %v2456, 1
        %vm2476 = vcmp.lt.s32.totalorder %v2456, 2
        %vm2477 = vcmp.lt.s32.totalorder %v2456, 3
        %vm2478 = vcmp.lt.s32.totalorder %v2456, 4
        %v2479 = vsel %vm2475, %v2459, %v2462
        %v2480 = vsel %vm2478, %v2468, 2102212464
        %v2481 = vsel %vm2477, %v2465, %v2480
        %v2482 = vsel %vm2476, %v2479, %v2481
        %v2483 = vsel %vm2475, %v2462, %v2465
        %v2484 = vsel %vm2478, %v2471, 920167782
        %v2485 = vsel %vm2477, %v2468, %v2484
        %v2486 = vsel %vm2476, %v2483, %v2485
        %v2487 = vsel %vm2475, %v2465, %v2468
        %v2488 = vsel %vm2478, %v2474, 1326507024
        %v2489 = vsel %vm2477, %v2471, %v2488
        %v2490 = vsel %vm2476, %v2487, %v2489
        %v2491 = vshll.u32 %v2451, 8
        %v2492 = vmul.u32.u64.compose %v2491, %v2490
        %v2493 = vextract.low.u32 %v2492
        %v2494 = vextract.high.u32 %v2492
        %v2495 = vmul.u32.u64.compose %v2491, %v2486
        %v2496 = vextract.low.u32 %v2495
        %v2497 = vextract.high.u32 %v2495
        %v2498 = vmul.u32 %v2491, %v2482
        %v2499 = vadd.s32 %v2494, %v2496
        %vm2500 = vc.u32 %v2494, %v2496
        %v2501 = vadd.s32 %v2497, 1
        %v2502 = vsel %vm2500, %v2501, %v2497
        %v2503 = vadd.s32 %v2498, %v2502
        %v2504 = vadd.s32 %v2503, 536870912
        %v2505 = vshrl.u32 %v2504, 30
        %v2506 = vshll.u32 %v2505, 30
        %v2507 = vsub.s32 %v2503, %v2506
        %vm2508 = vcmp.lt.s32.totalorder %v2507, 0
        %v2509 = vsub.s32 0, %v2507
        %v2510 = vsel %vm2508, %v2509, %v2507
        %v2511 = vclz %v2510
        %v2512 = vsub.s32 %v2511, 2
        %vm2513 = vcmp.gt.s32.totalorder 0, %v2512
        %v2514 = vsel %vm2513, 0, %v2512
        %v2515 = vsub.s32 32, %v2514
        %v2516 = vshll.u32 %v2507, %v2514
        %v2517 = vshrl.u32 %v2499, %v2515
        %v2518 = vor.u32 %v2516, %v2517
        %v2519 = vsub.s32 4294967266, %v2514
        %v2520 = vadd.s32 %v2519, 127
        %v2521 = vshll.u32 %v2520, 23
        %v2522 = vor.u32 4788187, %v2521
        %v2523 = vand.u32 2147483647, %v2522
        %v2525 = vcvt.s32.f32 %v2518
        %v2526 = vmul.f32 %v2525, %v2523
        %v2527 = vxor.u32 %v2526, 2147483648
        %v2528 = vsel %vm2445, %v2527, %v2526
        %v2529 = vsub.s32 4, %v2505
        %v2530 = vsel %vm2445, %v2529, %v2505
        %v2531 = vsel %vm2444, %v2230, %v2528
        %v2532 = vsel %vm2444, 0, %v2530
        %v2533 = vcosq.f32.pop %v2531
        %v2534 = vsinq.f32.pop %v2531
        %vm2535 = vweird.f32 %v2230
        %v2536 = vadd.s32 %v2532, 3
        %v2537 = vand.u32 %v2536, 3
        %vm2538 = vcmp.lt.s32.totalorder %v2537, 2
        %vm2539 = vcmp.eq.s32.totalorder %v2537, 0
        %v2540 = vxor.u32 %v2534, 2147483648
        %v2541 = vsel %vm2539, %v2533, %v2540
        %vm2542 = vcmp.eq.s32.totalorder %v2537, 2
        %v2543 = vxor.u32 %v2533, 2147483648
        %v2544 = vsel %vm2542, %v2543, %v2534
        %v2545 = vsel %vm2538, %v2541, %v2544
        %v2546 = vsel %vm2535, nan, %v2545
        %v2547 = vand.u32 2147483647, %v2317
        %vm2548 = vcmp.le.f32.partialorder %v2547, 0.7853982
        %vm2549 = vcmp.lt.s32.totalorder %v2317, 0
        %v2550 = vand.u32 %v2317, 2139095040
        %v2551 = vshrl.u32 %v2550, 23
        %v2552 = vsub.s32 %v2551, 127
        %v2553 = vand.u32 2147483647, %v2317
        %v2554 = vand.u32 %v2553, 8388607
        %v2555 = vor.u32 %v2554, 8388608
        %v2556 = vsub.s32 0, %v2555
        %v2557 = vadd.s32 %v2552, 1
        %vm2558 = vcmp.gt.s32.totalorder %v2557, 0
        %v2559 = vsel %vm2558, %v2557, 0
        %v2560 = vshrl.u32 %v2559, 5
        %v2561 = vand.u32 %v2559, 31
        %v2562 = vsub.s32 32, %v2561
        %v2563 = vshrl.u32 683565275, %v2562
        %v2564 = vshll.u32 683565275, %v2561
        %v2565 = vshrl.u32 2475754826, %v2562
        %v2566 = vor.u32 %v2564, %v2565
        %v2567 = vshll.u32 2475754826, %v2561
        %v2568 = vshrl.u32 2131351028, %v2562
        %v2569 = vor.u32 %v2567, %v2568
        %v2570 = vshll.u32 2131351028, %v2561
        %v2571 = vshrl.u32 2102212464, %v2562
        %v2572 = vor.u32 %v2570, %v2571
        %v2573 = vshll.u32 2102212464, %v2561
        %v2574 = vshrl.u32 920167782, %v2562
        %v2575 = vor.u32 %v2573, %v2574
        %v2576 = vshll.u32 920167782, %v2561
        %v2577 = vshrl.u32 1326507024, %v2562
        %v2578 = vor.u32 %v2576, %v2577
        %vm2579 = vcmp.lt.s32.totalorder %v2560, 1
        %vm2580 = vcmp.lt.s32.totalorder %v2560, 2
        %vm2581 = vcmp.lt.s32.totalorder %v2560, 3
        %vm2582 = vcmp.lt.s32.totalorder %v2560, 4
        %v2583 = vsel %vm2579, %v2563, %v2566
        %v2584 = vsel %vm2582, %v2572, 2102212464
        %v2585 = vsel %vm2581, %v2569, %v2584
        %v2586 = vsel %vm2580, %v2583, %v2585
        %v2587 = vsel %vm2579, %v2566, %v2569
        %v2588 = vsel %vm2582, %v2575, 920167782
        %v2589 = vsel %vm2581, %v2572, %v2588
        %v2590 = vsel %vm2580, %v2587, %v2589
        %v2591 = vsel %vm2579, %v2569, %v2572
        %v2592 = vsel %vm2582, %v2578, 1326507024
        %v2593 = vsel %vm2581, %v2575, %v2592
        %v2594 = vsel %vm2580, %v2591, %v2593
        %v2595 = vshll.u32 %v2555, 8
        %v2596 = vmul.u32.u64.compose %v2595, %v2594
        %v2597 = vextract.low.u32 %v2596
        %v2598 = vextract.high.u32 %v2596
        %v2599 = vmul.u32.u64.compose %v2595, %v2590
        %v2600 = vextract.low.u32 %v2599
        %v2601 = vextract.high.u32 %v2599
        %v2602 = vmul.u32 %v2595, %v2586
        %v2603 = vadd.s32 %v2598, %v2600
        %vm2604 = vc.u32 %v2598, %v2600
        %v2605 = vadd.s32 %v2601, 1
        %v2606 = vsel %vm2604, %v2605, %v2601
        %v2607 = vadd.s32 %v2602, %v2606
        %v2608 = vadd.s32 %v2607, 536870912
        %v2609 = vshrl.u32 %v2608, 30
        %v2610 = vshll.u32 %v2609, 30
        %v2611 = vsub.s32 %v2607, %v2610
        %vm2612 = vcmp.lt.s32.totalorder %v2611, 0
        %v2613 = vsub.s32 0, %v2611
        %v2614 = vsel %vm2612, %v2613, %v2611
        %v2615 = vclz %v2614
        %v2616 = vsub.s32 %v2615, 2
        %vm2617 = vcmp.gt.s32.totalorder 0, %v2616
        %v2618 = vsel %vm2617, 0, %v2616
        %v2619 = vsub.s32 32, %v2618
        %v2620 = vshll.u32 %v2611, %v2618
        %v2621 = vshrl.u32 %v2603, %v2619
        %v2622 = vor.u32 %v2620, %v2621
        %v2623 = vsub.s32 4294967266, %v2618
        %v2624 = vadd.s32 %v2623, 127
        %v2625 = vshll.u32 %v2624, 23
        %v2626 = vor.u32 4788187, %v2625
        %v2627 = vand.u32 2147483647, %v2626
        %v2629 = vcvt.s32.f32 %v2622
        %v2630 = vmul.f32 %v2629, %v2627
        %v2631 = vxor.u32 %v2630, 2147483648
        %v2632 = vsel %vm2549, %v2631, %v2630
        %v2633 = vsub.s32 4, %v2609
        %v2634 = vsel %vm2549, %v2633, %v2609
        %v2635 = vsel %vm2548, %v2317, %v2632
        %v2636 = vsel %vm2548, 0, %v2634
        %v2637 = vcosq.f32.pop %v2635
        %v2638 = vsinq.f32.pop %v2635
        %vm2639 = vweird.f32 %v2317
        %v2640 = vadd.s32 %v2636, 3
        %v2641 = vand.u32 %v2640, 3
        %vm2642 = vcmp.lt.s32.totalorder %v2641, 2
        %vm2643 = vcmp.eq.s32.totalorder %v2641, 0
        %v2644 = vxor.u32 %v2638, 2147483648
        %v2645 = vsel %vm2643, %v2637, %v2644
        %vm2646 = vcmp.eq.s32.totalorder %v2641, 2
        %v2647 = vxor.u32 %v2637, 2147483648
        %v2648 = vsel %vm2646, %v2647, %v2638
        %v2649 = vsel %vm2642, %v2645, %v2648
        %v2650 = vsel %vm2639, nan, %v2649
        %v2651 = vand.u32 2147483647, %v2319
        %vm2652 = vcmp.le.f32.partialorder %v2651, 0.7853982
        %vm2653 = vcmp.lt.s32.totalorder %v2319, 0
        %v2654 = vand.u32 %v2319, 2139095040
        %v2655 = vshrl.u32 %v2654, 23
        %v2656 = vsub.s32 %v2655, 127
        %v2657 = vand.u32 2147483647, %v2319
        %v2658 = vand.u32 %v2657, 8388607
        %v2659 = vor.u32 %v2658, 8388608
        %v2660 = vsub.s32 0, %v2659
        %v2661 = vadd.s32 %v2656, 1
        %vm2662 = vcmp.gt.s32.totalorder %v2661, 0
        %v2663 = vsel %vm2662, %v2661, 0
        %v2664 = vshrl.u32 %v2663, 5
        %v2665 = vand.u32 %v2663, 31
        %v2666 = vsub.s32 32, %v2665
        %v2667 = vshrl.u32 683565275, %v2666
        %v2668 = vshll.u32 683565275, %v2665
        %v2669 = vshrl.u32 2475754826, %v2666
        %v2670 = vor.u32 %v2668, %v2669
        %v2671 = vshll.u32 2475754826, %v2665
        %v2672 = vshrl.u32 2131351028, %v2666
        %v2673 = vor.u32 %v2671, %v2672
        %v2674 = vshll.u32 2131351028, %v2665
        %v2675 = vshrl.u32 2102212464, %v2666
        %v2676 = vor.u32 %v2674, %v2675
        %v2677 = vshll.u32 2102212464, %v2665
        %v2678 = vshrl.u32 920167782, %v2666
        %v2679 = vor.u32 %v2677, %v2678
        %v2680 = vshll.u32 920167782, %v2665
        %v2681 = vshrl.u32 1326507024, %v2666
        %v2682 = vor.u32 %v2680, %v2681
        %vm2683 = vcmp.lt.s32.totalorder %v2664, 1
        %vm2684 = vcmp.lt.s32.totalorder %v2664, 2
        %vm2685 = vcmp.lt.s32.totalorder %v2664, 3
        %vm2686 = vcmp.lt.s32.totalorder %v2664, 4
        %v2687 = vsel %vm2683, %v2667, %v2670
        %v2688 = vsel %vm2686, %v2676, 2102212464
        %v2689 = vsel %vm2685, %v2673, %v2688
        %v2690 = vsel %vm2684, %v2687, %v2689
        %v2691 = vsel %vm2683, %v2670, %v2673
        %v2692 = vsel %vm2686, %v2679, 920167782
        %v2693 = vsel %vm2685, %v2676, %v2692
        %v2694 = vsel %vm2684, %v2691, %v2693
        %v2695 = vsel %vm2683, %v2673, %v2676
        %v2696 = vsel %vm2686, %v2682, 1326507024
        %v2697 = vsel %vm2685, %v2679, %v2696
        %v2698 = vsel %vm2684, %v2695, %v2697
        %v2699 = vshll.u32 %v2659, 8
        %v2700 = vmul.u32.u64.compose %v2699, %v2698
        %v2701 = vextract.low.u32 %v2700
        %v2702 = vextract.high.u32 %v2700
        %v2703 = vmul.u32.u64.compose %v2699, %v2694
        %v2704 = vextract.low.u32 %v2703
        %v2705 = vextract.high.u32 %v2703
        %v2706 = vmul.u32 %v2699, %v2690
        %v2707 = vadd.s32 %v2702, %v2704
        %vm2708 = vc.u32 %v2702, %v2704
        %v2709 = vadd.s32 %v2705, 1
        %v2710 = vsel %vm2708, %v2709, %v2705
        %v2711 = vadd.s32 %v2706, %v2710
        %v2712 = vadd.s32 %v2711, 536870912
        %v2713 = vshrl.u32 %v2712, 30
        %v2714 = vshll.u32 %v2713, 30
        %v2715 = vsub.s32 %v2711, %v2714
        %vm2716 = vcmp.lt.s32.totalorder %v2715, 0
        %v2717 = vsub.s32 0, %v2715
        %v2718 = vsel %vm2716, %v2717, %v2715
        %v2719 = vclz %v2718
        %v2720 = vsub.s32 %v2719, 2
        %vm2721 = vcmp.gt.s32.totalorder 0, %v2720
        %v2722 = vsel %vm2721, 0, %v2720
        %v2723 = vsub.s32 32, %v2722
        %v2724 = vshll.u32 %v2715, %v2722
        %v2725 = vshrl.u32 %v2707, %v2723
        %v2726 = vor.u32 %v2724, %v2725
        %v2727 = vsub.s32 4294967266, %v2722
        %v2728 = vadd.s32 %v2727, 127
        %v2729 = vshll.u32 %v2728, 23
        %v2730 = vor.u32 4788187, %v2729
        %v2731 = vand.u32 2147483647, %v2730
        %v2733 = vcvt.s32.f32 %v2726
        %v2734 = vmul.f32 %v2733, %v2731
        %v2735 = vxor.u32 %v2734, 2147483648
        %v2736 = vsel %vm2653, %v2735, %v2734
        %v2737 = vsub.s32 4, %v2713
        %v2738 = vsel %vm2653, %v2737, %v2713
        %v2739 = vsel %vm2652, %v2319, %v2736
        %v2740 = vsel %vm2652, 0, %v2738
        %v2741 = vcosq.f32.pop %v2739
        %v2742 = vsinq.f32.pop %v2739
        %vm2743 = vweird.f32 %v2319
        %v2744 = vadd.s32 %v2740, 3
        %v2745 = vand.u32 %v2744, 3
        %vm2746 = vcmp.lt.s32.totalorder %v2745, 2
        %vm2747 = vcmp.eq.s32.totalorder %v2745, 0
        %v2748 = vxor.u32 %v2742, 2147483648
        %v2749 = vsel %vm2747, %v2741, %v2748
        %vm2750 = vcmp.eq.s32.totalorder %v2745, 2
        %v2751 = vxor.u32 %v2741, 2147483648
        %v2752 = vsel %vm2750, %v2751, %v2742
        %v2753 = vsel %vm2746, %v2749, %v2752
        %v2754 = vsel %vm2743, nan, %v2753
        %v2755 = vand.u32 2147483647, %v2234
        %vm2756 = vcmp.le.f32.partialorder %v2755, 0.7853982
        %vm2757 = vcmp.lt.s32.totalorder %v2234, 0
        %v2758 = vand.u32 %v2234, 2139095040
        %v2759 = vshrl.u32 %v2758, 23
        %v2760 = vsub.s32 %v2759, 127
        %v2761 = vand.u32 2147483647, %v2234
        %v2762 = vand.u32 %v2761, 8388607
        %v2763 = vor.u32 %v2762, 8388608
        %v2764 = vsub.s32 0, %v2763
        %v2765 = vadd.s32 %v2760, 1
        %vm2766 = vcmp.gt.s32.totalorder %v2765, 0
        %v2767 = vsel %vm2766, %v2765, 0
        %v2768 = vshrl.u32 %v2767, 5
        %v2769 = vand.u32 %v2767, 31
        %v2770 = vsub.s32 32, %v2769
        %v2771 = vshrl.u32 683565275, %v2770
        %v2772 = vshll.u32 683565275, %v2769
        %v2773 = vshrl.u32 2475754826, %v2770
        %v2774 = vor.u32 %v2772, %v2773
        %v2775 = vshll.u32 2475754826, %v2769
        %v2776 = vshrl.u32 2131351028, %v2770
        %v2777 = vor.u32 %v2775, %v2776
        %v2778 = vshll.u32 2131351028, %v2769
        %v2779 = vshrl.u32 2102212464, %v2770
        %v2780 = vor.u32 %v2778, %v2779
        %v2781 = vshll.u32 2102212464, %v2769
        %v2782 = vshrl.u32 920167782, %v2770
        %v2783 = vor.u32 %v2781, %v2782
        %v2784 = vshll.u32 920167782, %v2769
        %v2785 = vshrl.u32 1326507024, %v2770
        %v2786 = vor.u32 %v2784, %v2785
        %vm2787 = vcmp.lt.s32.totalorder %v2768, 1
        %vm2788 = vcmp.lt.s32.totalorder %v2768, 2
        %vm2789 = vcmp.lt.s32.totalorder %v2768, 3
        %vm2790 = vcmp.lt.s32.totalorder %v2768, 4
        %v2791 = vsel %vm2787, %v2771, %v2774
        %v2792 = vsel %vm2790, %v2780, 2102212464
        %v2793 = vsel %vm2789, %v2777, %v2792
        %v2794 = vsel %vm2788, %v2791, %v2793
        %v2795 = vsel %vm2787, %v2774, %v2777
        %v2796 = vsel %vm2790, %v2783, 920167782
        %v2797 = vsel %vm2789, %v2780, %v2796
        %v2798 = vsel %vm2788, %v2795, %v2797
        %v2799 = vsel %vm2787, %v2777, %v2780
        %v2800 = vsel %vm2790, %v2786, 1326507024
        %v2801 = vsel %vm2789, %v2783, %v2800
        %v2802 = vsel %vm2788, %v2799, %v2801
        %v2803 = vshll.u32 %v2763, 8
        %v2804 = vmul.u32.u64.compose %v2803, %v2802
        %v2805 = vextract.low.u32 %v2804
        %v2806 = vextract.high.u32 %v2804
        %v2807 = vmul.u32.u64.compose %v2803, %v2798
        %v2808 = vextract.low.u32 %v2807
        %v2809 = vextract.high.u32 %v2807
        %v2810 = vmul.u32 %v2803, %v2794
        %v2811 = vadd.s32 %v2806, %v2808
        %vm2812 = vc.u32 %v2806, %v2808
        %v2813 = vadd.s32 %v2809, 1
        %v2814 = vsel %vm2812, %v2813, %v2809
        %v2815 = vadd.s32 %v2810, %v2814
        %v2816 = vadd.s32 %v2815, 536870912
        %v2817 = vshrl.u32 %v2816, 30
        %v2818 = vshll.u32 %v2817, 30
        %v2819 = vsub.s32 %v2815, %v2818
        %vm2820 = vcmp.lt.s32.totalorder %v2819, 0
        %v2821 = vsub.s32 0, %v2819
        %v2822 = vsel %vm2820, %v2821, %v2819
        %v2823 = vclz %v2822
        %v2824 = vsub.s32 %v2823, 2
        %vm2825 = vcmp.gt.s32.totalorder 0, %v2824
        %v2826 = vsel %vm2825, 0, %v2824
        %v2827 = vsub.s32 32, %v2826
        %v2828 = vshll.u32 %v2819, %v2826
        %v2829 = vshrl.u32 %v2811, %v2827
        %v2830 = vor.u32 %v2828, %v2829
        %v2831 = vsub.s32 4294967266, %v2826
        %v2832 = vadd.s32 %v2831, 127
        %v2833 = vshll.u32 %v2832, 23
        %v2834 = vor.u32 4788187, %v2833
        %v2835 = vand.u32 2147483647, %v2834
        %v2837 = vcvt.s32.f32 %v2830
        %v2838 = vmul.f32 %v2837, %v2835
        %v2839 = vxor.u32 %v2838, 2147483648
        %v2840 = vsel %vm2757, %v2839, %v2838
        %v2841 = vsub.s32 4, %v2817
        %v2842 = vsel %vm2757, %v2841, %v2817
        %v2843 = vsel %vm2756, %v2234, %v2840
        %v2844 = vsel %vm2756, 0, %v2842
        %v2845 = vcosq.f32.pop %v2843
        %v2846 = vsinq.f32.pop %v2843
        %vm2847 = vweird.f32 %v2234
        %v2848 = vadd.s32 %v2844, 3
        %v2849 = vand.u32 %v2848, 3
        %vm2850 = vcmp.lt.s32.totalorder %v2849, 2
        %vm2851 = vcmp.eq.s32.totalorder %v2849, 0
        %v2852 = vxor.u32 %v2846, 2147483648
        %v2853 = vsel %vm2851, %v2845, %v2852
        %vm2854 = vcmp.eq.s32.totalorder %v2849, 2
        %v2855 = vxor.u32 %v2845, 2147483648
        %v2856 = vsel %vm2854, %v2855, %v2846
        %v2857 = vsel %vm2850, %v2853, %v2856
        %v2858 = vsel %vm2847, nan, %v2857
        %v2859 = vand.u32 2147483647, %v2236
        %vm2860 = vcmp.le.f32.partialorder %v2859, 0.7853982
        %vm2861 = vcmp.lt.s32.totalorder %v2236, 0
        %v2862 = vand.u32 %v2236, 2139095040
        %v2863 = vshrl.u32 %v2862, 23
        %v2864 = vsub.s32 %v2863, 127
        %v2865 = vand.u32 2147483647, %v2236
        %v2866 = vand.u32 %v2865, 8388607
        %v2867 = vor.u32 %v2866, 8388608
        %v2868 = vsub.s32 0, %v2867
        %v2869 = vadd.s32 %v2864, 1
        %vm2870 = vcmp.gt.s32.totalorder %v2869, 0
        %v2871 = vsel %vm2870, %v2869, 0
        %v2872 = vshrl.u32 %v2871, 5
        %v2873 = vand.u32 %v2871, 31
        %v2874 = vsub.s32 32, %v2873
        %v2875 = vshrl.u32 683565275, %v2874
        %v2876 = vshll.u32 683565275, %v2873
        %v2877 = vshrl.u32 2475754826, %v2874
        %v2878 = vor.u32 %v2876, %v2877
        %v2879 = vshll.u32 2475754826, %v2873
        %v2880 = vshrl.u32 2131351028, %v2874
        %v2881 = vor.u32 %v2879, %v2880
        %v2882 = vshll.u32 2131351028, %v2873
        %v2883 = vshrl.u32 2102212464, %v2874
        %v2884 = vor.u32 %v2882, %v2883
        %v2885 = vshll.u32 2102212464, %v2873
        %v2886 = vshrl.u32 920167782, %v2874
        %v2887 = vor.u32 %v2885, %v2886
        %v2888 = vshll.u32 920167782, %v2873
        %v2889 = vshrl.u32 1326507024, %v2874
        %v2890 = vor.u32 %v2888, %v2889
        %vm2891 = vcmp.lt.s32.totalorder %v2872, 1
        %vm2892 = vcmp.lt.s32.totalorder %v2872, 2
        %vm2893 = vcmp.lt.s32.totalorder %v2872, 3
        %vm2894 = vcmp.lt.s32.totalorder %v2872, 4
        %v2895 = vsel %vm2891, %v2875, %v2878
        %v2896 = vsel %vm2894, %v2884, 2102212464
        %v2897 = vsel %vm2893, %v2881, %v2896
        %v2898 = vsel %vm2892, %v2895, %v2897
        %v2899 = vsel %vm2891, %v2878, %v2881
        %v2900 = vsel %vm2894, %v2887, 920167782
        %v2901 = vsel %vm2893, %v2884, %v2900
        %v2902 = vsel %vm2892, %v2899, %v2901
        %v2903 = vsel %vm2891, %v2881, %v2884
        %v2904 = vsel %vm2894, %v2890, 1326507024
        %v2905 = vsel %vm2893, %v2887, %v2904
        %v2906 = vsel %vm2892, %v2903, %v2905
        %v2907 = vshll.u32 %v2867, 8
        %v2908 = vmul.u32.u64.compose %v2907, %v2906
        %v2909 = vextract.low.u32 %v2908
        %v2910 = vextract.high.u32 %v2908
        %v2911 = vmul.u32.u64.compose %v2907, %v2902
        %v2912 = vextract.low.u32 %v2911
        %v2913 = vextract.high.u32 %v2911
        %v2914 = vmul.u32 %v2907, %v2898
        %v2915 = vadd.s32 %v2910, %v2912
        %vm2916 = vc.u32 %v2910, %v2912
        %v2917 = vadd.s32 %v2913, 1
        %v2918 = vsel %vm2916, %v2917, %v2913
        %v2919 = vadd.s32 %v2914, %v2918
        %v2920 = vadd.s32 %v2919, 536870912
        %v2921 = vshrl.u32 %v2920, 30
        %v2922 = vshll.u32 %v2921, 30
        %v2923 = vsub.s32 %v2919, %v2922
        %vm2924 = vcmp.lt.s32.totalorder %v2923, 0
        %v2925 = vsub.s32 0, %v2923
        %v2926 = vsel %vm2924, %v2925, %v2923
        %v2927 = vclz %v2926
        %v2928 = vsub.s32 %v2927, 2
        %vm2929 = vcmp.gt.s32.totalorder 0, %v2928
        %v2930 = vsel %vm2929, 0, %v2928
        %v2931 = vsub.s32 32, %v2930
        %v2932 = vshll.u32 %v2923, %v2930
        %v2933 = vshrl.u32 %v2915, %v2931
        %v2934 = vor.u32 %v2932, %v2933
        %v2935 = vsub.s32 4294967266, %v2930
        %v2936 = vadd.s32 %v2935, 127
        %v2937 = vshll.u32 %v2936, 23
        %v2938 = vor.u32 4788187, %v2937
        %v2939 = vand.u32 2147483647, %v2938
        %v2941 = vcvt.s32.f32 %v2934
        %v2942 = vmul.f32 %v2941, %v2939
        %v2943 = vxor.u32 %v2942, 2147483648
        %v2944 = vsel %vm2861, %v2943, %v2942
        %v2945 = vsub.s32 4, %v2921
        %v2946 = vsel %vm2861, %v2945, %v2921
        %v2947 = vsel %vm2860, %v2236, %v2944
        %v2948 = vsel %vm2860, 0, %v2946
        %v2949 = vcosq.f32.pop %v2947
        %v2950 = vsinq.f32.pop %v2947
        %vm2951 = vweird.f32 %v2236
        %v2952 = vadd.s32 %v2948, 3
        %v2953 = vand.u32 %v2952, 3
        %vm2954 = vcmp.lt.s32.totalorder %v2953, 2
        %vm2955 = vcmp.eq.s32.totalorder %v2953, 0
        %v2956 = vxor.u32 %v2950, 2147483648
        %v2957 = vsel %vm2955, %v2949, %v2956
        %vm2958 = vcmp.eq.s32.totalorder %v2953, 2
        %v2959 = vxor.u32 %v2949, 2147483648
        %v2960 = vsel %vm2958, %v2959, %v2950
        %v2961 = vsel %vm2954, %v2957, %v2960
        %v2962 = vsel %vm2951, nan, %v2961
        %v2963 = vand.u32 2147483647, %v2323
        %vm2964 = vcmp.le.f32.partialorder %v2963, 0.7853982
        %vm2965 = vcmp.lt.s32.totalorder %v2323, 0
        %v2966 = vand.u32 %v2323, 2139095040
        %v2967 = vshrl.u32 %v2966, 23
        %v2968 = vsub.s32 %v2967, 127
        %v2969 = vand.u32 2147483647, %v2323
        %v2970 = vand.u32 %v2969, 8388607
        %v2971 = vor.u32 %v2970, 8388608
        %v2972 = vsub.s32 0, %v2971
        %v2973 = vadd.s32 %v2968, 1
        %vm2974 = vcmp.gt.s32.totalorder %v2973, 0
        %v2975 = vsel %vm2974, %v2973, 0
        %v2976 = vshrl.u32 %v2975, 5
        %v2977 = vand.u32 %v2975, 31
        %v2978 = vsub.s32 32, %v2977
        %v2979 = vshrl.u32 683565275, %v2978
        %v2980 = vshll.u32 683565275, %v2977
        %v2981 = vshrl.u32 2475754826, %v2978
        %v2982 = vor.u32 %v2980, %v2981
        %v2983 = vshll.u32 2475754826, %v2977
        %v2984 = vshrl.u32 2131351028, %v2978
        %v2985 = vor.u32 %v2983, %v2984
        %v2986 = vshll.u32 2131351028, %v2977
        %v2987 = vshrl.u32 2102212464, %v2978
        %v2988 = vor.u32 %v2986, %v2987
        %v2989 = vshll.u32 2102212464, %v2977
        %v2990 = vshrl.u32 920167782, %v2978
        %v2991 = vor.u32 %v2989, %v2990
        %v2992 = vshll.u32 920167782, %v2977
        %v2993 = vshrl.u32 1326507024, %v2978
        %v2994 = vor.u32 %v2992, %v2993
        %vm2995 = vcmp.lt.s32.totalorder %v2976, 1
        %vm2996 = vcmp.lt.s32.totalorder %v2976, 2
        %vm2997 = vcmp.lt.s32.totalorder %v2976, 3
        %vm2998 = vcmp.lt.s32.totalorder %v2976, 4
        %v2999 = vsel %vm2995, %v2979, %v2982
        %v3000 = vsel %vm2998, %v2988, 2102212464
        %v3001 = vsel %vm2997, %v2985, %v3000
        %v3002 = vsel %vm2996, %v2999, %v3001
        %v3003 = vsel %vm2995, %v2982, %v2985
        %v3004 = vsel %vm2998, %v2991, 920167782
        %v3005 = vsel %vm2997, %v2988, %v3004
        %v3006 = vsel %vm2996, %v3003, %v3005
        %v3007 = vsel %vm2995, %v2985, %v2988
        %v3008 = vsel %vm2998, %v2994, 1326507024
        %v3009 = vsel %vm2997, %v2991, %v3008
        %v3010 = vsel %vm2996, %v3007, %v3009
        %v3011 = vshll.u32 %v2971, 8
        %v3012 = vmul.u32.u64.compose %v3011, %v3010
        %v3013 = vextract.low.u32 %v3012
        %v3014 = vextract.high.u32 %v3012
        %v3015 = vmul.u32.u64.compose %v3011, %v3006
        %v3016 = vextract.low.u32 %v3015
        %v3017 = vextract.high.u32 %v3015
        %v3018 = vmul.u32 %v3011, %v3002
        %v3019 = vadd.s32 %v3014, %v3016
        %vm3020 = vc.u32 %v3014, %v3016
        %v3021 = vadd.s32 %v3017, 1
        %v3022 = vsel %vm3020, %v3021, %v3017
        %v3023 = vadd.s32 %v3018, %v3022
        %v3024 = vadd.s32 %v3023, 536870912
        %v3025 = vshrl.u32 %v3024, 30
        %v3026 = vshll.u32 %v3025, 30
        %v3027 = vsub.s32 %v3023, %v3026
        %vm3028 = vcmp.lt.s32.totalorder %v3027, 0
        %v3029 = vsub.s32 0, %v3027
        %v3030 = vsel %vm3028, %v3029, %v3027
        %v3031 = vclz %v3030
        %v3032 = vsub.s32 %v3031, 2
        %vm3033 = vcmp.gt.s32.totalorder 0, %v3032
        %v3034 = vsel %vm3033, 0, %v3032
        %v3035 = vsub.s32 32, %v3034
        %v3036 = vshll.u32 %v3027, %v3034
        %v3037 = vshrl.u32 %v3019, %v3035
        %v3038 = vor.u32 %v3036, %v3037
        %v3039 = vsub.s32 4294967266, %v3034
        %v3040 = vadd.s32 %v3039, 127
        %v3041 = vshll.u32 %v3040, 23
        %v3042 = vor.u32 4788187, %v3041
        %v3043 = vand.u32 2147483647, %v3042
        %v3045 = vcvt.s32.f32 %v3038
        %v3046 = vmul.f32 %v3045, %v3043
        %v3047 = vxor.u32 %v3046, 2147483648
        %v3048 = vsel %vm2965, %v3047, %v3046
        %v3049 = vsub.s32 4, %v3025
        %v3050 = vsel %vm2965, %v3049, %v3025
        %v3051 = vsel %vm2964, %v2323, %v3048
        %v3052 = vsel %vm2964, 0, %v3050
        %v3053 = vcosq.f32.pop %v3051
        %v3054 = vsinq.f32.pop %v3051
        %vm3055 = vweird.f32 %v2323
        %v3056 = vadd.s32 %v3052, 3
        %v3057 = vand.u32 %v3056, 3
        %vm3058 = vcmp.lt.s32.totalorder %v3057, 2
        %vm3059 = vcmp.eq.s32.totalorder %v3057, 0
        %v3060 = vxor.u32 %v3054, 2147483648
        %v3061 = vsel %vm3059, %v3053, %v3060
        %vm3062 = vcmp.eq.s32.totalorder %v3057, 2
        %v3063 = vxor.u32 %v3053, 2147483648
        %v3064 = vsel %vm3062, %v3063, %v3054
        %v3065 = vsel %vm3058, %v3061, %v3064
        %v3066 = vsel %vm3055, nan, %v3065
        %v3067 = vand.u32 2147483647, %v2325
        %vm3068 = vcmp.le.f32.partialorder %v3067, 0.7853982
        %vm3069 = vcmp.lt.s32.totalorder %v2325, 0
        %v3070 = vand.u32 %v2325, 2139095040
        %v3071 = vshrl.u32 %v3070, 23
        %v3072 = vsub.s32 %v3071, 127
        %v3073 = vand.u32 2147483647, %v2325
        %v3074 = vand.u32 %v3073, 8388607
        %v3075 = vor.u32 %v3074, 8388608
        %v3076 = vsub.s32 0, %v3075
        %v3077 = vadd.s32 %v3072, 1
        %vm3078 = vcmp.gt.s32.totalorder %v3077, 0
        %v3079 = vsel %vm3078, %v3077, 0
        %v3080 = vshrl.u32 %v3079, 5
        %v3081 = vand.u32 %v3079, 31
        %v3082 = vsub.s32 32, %v3081
        %v3083 = vshrl.u32 683565275, %v3082
        %v3084 = vshll.u32 683565275, %v3081
        %v3085 = vshrl.u32 2475754826, %v3082
        %v3086 = vor.u32 %v3084, %v3085
        %v3087 = vshll.u32 2475754826, %v3081
        %v3088 = vshrl.u32 2131351028, %v3082
        %v3089 = vor.u32 %v3087, %v3088
        %v3090 = vshll.u32 2131351028, %v3081
        %v3091 = vshrl.u32 2102212464, %v3082
        %v3092 = vor.u32 %v3090, %v3091
        %v3093 = vshll.u32 2102212464, %v3081
        %v3094 = vshrl.u32 920167782, %v3082
        %v3095 = vor.u32 %v3093, %v3094
        %v3096 = vshll.u32 920167782, %v3081
        %v3097 = vshrl.u32 1326507024, %v3082
        %v3098 = vor.u32 %v3096, %v3097
        %vm3099 = vcmp.lt.s32.totalorder %v3080, 1
        %vm3100 = vcmp.lt.s32.totalorder %v3080, 2
        %vm3101 = vcmp.lt.s32.totalorder %v3080, 3
        %vm3102 = vcmp.lt.s32.totalorder %v3080, 4
        %v3103 = vsel %vm3099, %v3083, %v3086
        %v3104 = vsel %vm3102, %v3092, 2102212464
        %v3105 = vsel %vm3101, %v3089, %v3104
        %v3106 = vsel %vm3100, %v3103, %v3105
        %v3107 = vsel %vm3099, %v3086, %v3089
        %v3108 = vsel %vm3102, %v3095, 920167782
        %v3109 = vsel %vm3101, %v3092, %v3108
        %v3110 = vsel %vm3100, %v3107, %v3109
        %v3111 = vsel %vm3099, %v3089, %v3092
        %v3112 = vsel %vm3102, %v3098, 1326507024
        %v3113 = vsel %vm3101, %v3095, %v3112
        %v3114 = vsel %vm3100, %v3111, %v3113
        %v3115 = vshll.u32 %v3075, 8
        %v3116 = vmul.u32.u64.compose %v3115, %v3114
        %v3117 = vextract.low.u32 %v3116
        %v3118 = vextract.high.u32 %v3116
        %v3119 = vmul.u32.u64.compose %v3115, %v3110
        %v3120 = vextract.low.u32 %v3119
        %v3121 = vextract.high.u32 %v3119
        %v3122 = vmul.u32 %v3115, %v3106
        %v3123 = vadd.s32 %v3118, %v3120
        %vm3124 = vc.u32 %v3118, %v3120
        %v3125 = vadd.s32 %v3121, 1
        %v3126 = vsel %vm3124, %v3125, %v3121
        %v3127 = vadd.s32 %v3122, %v3126
        %v3128 = vadd.s32 %v3127, 536870912
        %v3129 = vshrl.u32 %v3128, 30
        %v3130 = vshll.u32 %v3129, 30
        %v3131 = vsub.s32 %v3127, %v3130
        %vm3132 = vcmp.lt.s32.totalorder %v3131, 0
        %v3133 = vsub.s32 0, %v3131
        %v3134 = vsel %vm3132, %v3133, %v3131
        %v3135 = vclz %v3134
        %v3136 = vsub.s32 %v3135, 2
        %vm3137 = vcmp.gt.s32.totalorder 0, %v3136
        %v3138 = vsel %vm3137, 0, %v3136
        %v3139 = vsub.s32 32, %v3138
        %v3140 = vshll.u32 %v3131, %v3138
        %v3141 = vshrl.u32 %v3123, %v3139
        %v3142 = vor.u32 %v3140, %v3141
        %v3143 = vsub.s32 4294967266, %v3138
        %v3144 = vadd.s32 %v3143, 127
        %v3145 = vshll.u32 %v3144, 23
        %v3146 = vor.u32 4788187, %v3145
        %v3147 = vand.u32 2147483647, %v3146
        %v3149 = vcvt.s32.f32 %v3142
        %v3150 = vmul.f32 %v3149, %v3147
        %v3151 = vxor.u32 %v3150, 2147483648
        %v3152 = vsel %vm3069, %v3151, %v3150
        %v3153 = vsub.s32 4, %v3129
        %v3154 = vsel %vm3069, %v3153, %v3129
        %v3155 = vsel %vm3068, %v2325, %v3152
        %v3156 = vsel %vm3068, 0, %v3154
        %v3157 = vcosq.f32.pop %v3155
        %v3158 = vsinq.f32.pop %v3155
        %vm3159 = vweird.f32 %v2325
        %v3160 = vadd.s32 %v3156, 3
        %v3161 = vand.u32 %v3160, 3
        %vm3162 = vcmp.lt.s32.totalorder %v3161, 2
        %vm3163 = vcmp.eq.s32.totalorder %v3161, 0
        %v3164 = vxor.u32 %v3158, 2147483648
        %v3165 = vsel %vm3163, %v3157, %v3164
        %vm3166 = vcmp.eq.s32.totalorder %v3161, 2
        %v3167 = vxor.u32 %v3157, 2147483648
        %v3168 = vsel %vm3166, %v3167, %v3158
        %v3169 = vsel %vm3162, %v3165, %v3168
        %v3170 = vsel %vm3159, nan, %v3169
        %v3171 = vand.u32 2147483647, %v2240
        %vm3172 = vcmp.le.f32.partialorder %v3171, 0.7853982
        %vm3173 = vcmp.lt.s32.totalorder %v2240, 0
        %v3174 = vand.u32 %v2240, 2139095040
        %v3175 = vshrl.u32 %v3174, 23
        %v3176 = vsub.s32 %v3175, 127
        %v3177 = vand.u32 2147483647, %v2240
        %v3178 = vand.u32 %v3177, 8388607
        %v3179 = vor.u32 %v3178, 8388608
        %v3180 = vsub.s32 0, %v3179
        %v3181 = vadd.s32 %v3176, 1
        %vm3182 = vcmp.gt.s32.totalorder %v3181, 0
        %v3183 = vsel %vm3182, %v3181, 0
        %v3184 = vshrl.u32 %v3183, 5
        %v3185 = vand.u32 %v3183, 31
        %v3186 = vsub.s32 32, %v3185
        %v3187 = vshrl.u32 683565275, %v3186
        %v3188 = vshll.u32 683565275, %v3185
        %v3189 = vshrl.u32 2475754826, %v3186
        %v3190 = vor.u32 %v3188, %v3189
        %v3191 = vshll.u32 2475754826, %v3185
        %v3192 = vshrl.u32 2131351028, %v3186
        %v3193 = vor.u32 %v3191, %v3192
        %v3194 = vshll.u32 2131351028, %v3185
        %v3195 = vshrl.u32 2102212464, %v3186
        %v3196 = vor.u32 %v3194, %v3195
        %v3197 = vshll.u32 2102212464, %v3185
        %v3198 = vshrl.u32 920167782, %v3186
        %v3199 = vor.u32 %v3197, %v3198
        %v3200 = vshll.u32 920167782, %v3185
        %v3201 = vshrl.u32 1326507024, %v3186
        %v3202 = vor.u32 %v3200, %v3201
        %vm3203 = vcmp.lt.s32.totalorder %v3184, 1
        %vm3204 = vcmp.lt.s32.totalorder %v3184, 2
        %vm3205 = vcmp.lt.s32.totalorder %v3184, 3
        %vm3206 = vcmp.lt.s32.totalorder %v3184, 4
        %v3207 = vsel %vm3203, %v3187, %v3190
        %v3208 = vsel %vm3206, %v3196, 2102212464
        %v3209 = vsel %vm3205, %v3193, %v3208
        %v3210 = vsel %vm3204, %v3207, %v3209
        %v3211 = vsel %vm3203, %v3190, %v3193
        %v3212 = vsel %vm3206, %v3199, 920167782
        %v3213 = vsel %vm3205, %v3196, %v3212
        %v3214 = vsel %vm3204, %v3211, %v3213
        %v3215 = vsel %vm3203, %v3193, %v3196
        %v3216 = vsel %vm3206, %v3202, 1326507024
        %v3217 = vsel %vm3205, %v3199, %v3216
        %v3218 = vsel %vm3204, %v3215, %v3217
        %v3219 = vshll.u32 %v3179, 8
        %v3220 = vmul.u32.u64.compose %v3219, %v3218
        %v3221 = vextract.low.u32 %v3220
        %v3222 = vextract.high.u32 %v3220
        %v3223 = vmul.u32.u64.compose %v3219, %v3214
        %v3224 = vextract.low.u32 %v3223
        %v3225 = vextract.high.u32 %v3223
        %v3226 = vmul.u32 %v3219, %v3210
        %v3227 = vadd.s32 %v3222, %v3224
        %vm3228 = vc.u32 %v3222, %v3224
        %v3229 = vadd.s32 %v3225, 1
        %v3230 = vsel %vm3228, %v3229, %v3225
        %v3231 = vadd.s32 %v3226, %v3230
        %v3232 = vadd.s32 %v3231, 536870912
        %v3233 = vshrl.u32 %v3232, 30
        %v3234 = vshll.u32 %v3233, 30
        %v3235 = vsub.s32 %v3231, %v3234
        %vm3236 = vcmp.lt.s32.totalorder %v3235, 0
        %v3237 = vsub.s32 0, %v3235
        %v3238 = vsel %vm3236, %v3237, %v3235
        %v3239 = vclz %v3238
        %v3240 = vsub.s32 %v3239, 2
        %vm3241 = vcmp.gt.s32.totalorder 0, %v3240
        %v3242 = vsel %vm3241, 0, %v3240
        %v3243 = vsub.s32 32, %v3242
        %v3244 = vshll.u32 %v3235, %v3242
        %v3245 = vshrl.u32 %v3227, %v3243
        %v3246 = vor.u32 %v3244, %v3245
        %v3247 = vsub.s32 4294967266, %v3242
        %v3248 = vadd.s32 %v3247, 127
        %v3249 = vshll.u32 %v3248, 23
        %v3250 = vor.u32 4788187, %v3249
        %v3251 = vand.u32 2147483647, %v3250
        %v3253 = vcvt.s32.f32 %v3246
        %v3254 = vmul.f32 %v3253, %v3251
        %v3255 = vxor.u32 %v3254, 2147483648
        %v3256 = vsel %vm3173, %v3255, %v3254
        %v3257 = vsub.s32 4, %v3233
        %v3258 = vsel %vm3173, %v3257, %v3233
        %v3259 = vsel %vm3172, %v2240, %v3256
        %v3260 = vsel %vm3172, 0, %v3258
        %v3261 = vcosq.f32.pop %v3259
        %v3262 = vsinq.f32.pop %v3259
        %vm3263 = vweird.f32 %v2240
        %v3264 = vadd.s32 %v3260, 3
        %v3265 = vand.u32 %v3264, 3
        %vm3266 = vcmp.lt.s32.totalorder %v3265, 2
        %vm3267 = vcmp.eq.s32.totalorder %v3265, 0
        %v3268 = vxor.u32 %v3262, 2147483648
        %v3269 = vsel %vm3267, %v3261, %v3268
        %vm3270 = vcmp.eq.s32.totalorder %v3265, 2
        %v3271 = vxor.u32 %v3261, 2147483648
        %v3272 = vsel %vm3270, %v3271, %v3262
        %v3273 = vsel %vm3266, %v3269, %v3272
        %v3274 = vsel %vm3263, nan, %v3273
        %v3275 = vand.u32 2147483647, %v2242
        %vm3276 = vcmp.le.f32.partialorder %v3275, 0.7853982
        %vm3277 = vcmp.lt.s32.totalorder %v2242, 0
        %v3278 = vand.u32 %v2242, 2139095040
        %v3279 = vshrl.u32 %v3278, 23
        %v3280 = vsub.s32 %v3279, 127
        %v3281 = vand.u32 2147483647, %v2242
        %v3282 = vand.u32 %v3281, 8388607
        %v3283 = vor.u32 %v3282, 8388608
        %v3284 = vsub.s32 0, %v3283
        %v3285 = vadd.s32 %v3280, 1
        %vm3286 = vcmp.gt.s32.totalorder %v3285, 0
        %v3287 = vsel %vm3286, %v3285, 0
        %v3288 = vshrl.u32 %v3287, 5
        %v3289 = vand.u32 %v3287, 31
        %v3290 = vsub.s32 32, %v3289
        %v3291 = vshrl.u32 683565275, %v3290
        %v3292 = vshll.u32 683565275, %v3289
        %v3293 = vshrl.u32 2475754826, %v3290
        %v3294 = vor.u32 %v3292, %v3293
        %v3295 = vshll.u32 2475754826, %v3289
        %v3296 = vshrl.u32 2131351028, %v3290
        %v3297 = vor.u32 %v3295, %v3296
        %v3298 = vshll.u32 2131351028, %v3289
        %v3299 = vshrl.u32 2102212464, %v3290
        %v3300 = vor.u32 %v3298, %v3299
        %v3301 = vshll.u32 2102212464, %v3289
        %v3302 = vshrl.u32 920167782, %v3290
        %v3303 = vor.u32 %v3301, %v3302
        %v3304 = vshll.u32 920167782, %v3289
        %v3305 = vshrl.u32 1326507024, %v3290
        %v3306 = vor.u32 %v3304, %v3305
        %vm3307 = vcmp.lt.s32.totalorder %v3288, 1
        %vm3308 = vcmp.lt.s32.totalorder %v3288, 2
        %vm3309 = vcmp.lt.s32.totalorder %v3288, 3
        %vm3310 = vcmp.lt.s32.totalorder %v3288, 4
        %v3311 = vsel %vm3307, %v3291, %v3294
        %v3312 = vsel %vm3310, %v3300, 2102212464
        %v3313 = vsel %vm3309, %v3297, %v3312
        %v3314 = vsel %vm3308, %v3311, %v3313
        %v3315 = vsel %vm3307, %v3294, %v3297
        %v3316 = vsel %vm3310, %v3303, 920167782
        %v3317 = vsel %vm3309, %v3300, %v3316
        %v3318 = vsel %vm3308, %v3315, %v3317
        %v3319 = vsel %vm3307, %v3297, %v3300
        %v3320 = vsel %vm3310, %v3306, 1326507024
        %v3321 = vsel %vm3309, %v3303, %v3320
        %v3322 = vsel %vm3308, %v3319, %v3321
        %v3323 = vshll.u32 %v3283, 8
        %v3324 = vmul.u32.u64.compose %v3323, %v3322
        %v3325 = vextract.low.u32 %v3324
        %v3326 = vextract.high.u32 %v3324
        %v3327 = vmul.u32.u64.compose %v3323, %v3318
        %v3328 = vextract.low.u32 %v3327
        %v3329 = vextract.high.u32 %v3327
        %v3330 = vmul.u32 %v3323, %v3314
        %v3331 = vadd.s32 %v3326, %v3328
        %vm3332 = vc.u32 %v3326, %v3328
        %v3333 = vadd.s32 %v3329, 1
        %v3334 = vsel %vm3332, %v3333, %v3329
        %v3335 = vadd.s32 %v3330, %v3334
        %v3336 = vadd.s32 %v3335, 536870912
        %v3337 = vshrl.u32 %v3336, 30
        %v3338 = vshll.u32 %v3337, 30
        %v3339 = vsub.s32 %v3335, %v3338
        %vm3340 = vcmp.lt.s32.totalorder %v3339, 0
        %v3341 = vsub.s32 0, %v3339
        %v3342 = vsel %vm3340, %v3341, %v3339
        %v3343 = vclz %v3342
        %v3344 = vsub.s32 %v3343, 2
        %vm3345 = vcmp.gt.s32.totalorder 0, %v3344
        %v3346 = vsel %vm3345, 0, %v3344
        %v3347 = vsub.s32 32, %v3346
        %v3348 = vshll.u32 %v3339, %v3346
        %v3349 = vshrl.u32 %v3331, %v3347
        %v3350 = vor.u32 %v3348, %v3349
        %v3351 = vsub.s32 4294967266, %v3346
        %v3352 = vadd.s32 %v3351, 127
        %v3353 = vshll.u32 %v3352, 23
        %v3354 = vor.u32 4788187, %v3353
        %v3355 = vand.u32 2147483647, %v3354
        %v3357 = vcvt.s32.f32 %v3350
        %v3358 = vmul.f32 %v3357, %v3355
        %v3359 = vxor.u32 %v3358, 2147483648
        %v3360 = vsel %vm3277, %v3359, %v3358
        %v3361 = vsub.s32 4, %v3337
        %v3362 = vsel %vm3277, %v3361, %v3337
        %v3363 = vsel %vm3276, %v2242, %v3360
        %v3364 = vsel %vm3276, 0, %v3362
        %v3365 = vcosq.f32.pop %v3363
        %v3366 = vsinq.f32.pop %v3363
        %vm3367 = vweird.f32 %v2242
        %v3368 = vadd.s32 %v3364, 3
        %v3369 = vand.u32 %v3368, 3
        %vm3370 = vcmp.lt.s32.totalorder %v3369, 2
        %vm3371 = vcmp.eq.s32.totalorder %v3369, 0
        %v3372 = vxor.u32 %v3366, 2147483648
        %v3373 = vsel %vm3371, %v3365, %v3372
        %vm3374 = vcmp.eq.s32.totalorder %v3369, 2
        %v3375 = vxor.u32 %v3365, 2147483648
        %v3376 = vsel %vm3374, %v3375, %v3366
        %v3377 = vsel %vm3370, %v3373, %v3376
        %v3378 = vsel %vm3367, nan, %v3377
        %v3379 = vand.u32 2147483647, %v2329
        %vm3380 = vcmp.le.f32.partialorder %v3379, 0.7853982
        %vm3381 = vcmp.lt.s32.totalorder %v2329, 0
        %v3382 = vand.u32 %v2329, 2139095040
        %v3383 = vshrl.u32 %v3382, 23
        %v3384 = vsub.s32 %v3383, 127
        %v3385 = vand.u32 2147483647, %v2329
        %v3386 = vand.u32 %v3385, 8388607
        %v3387 = vor.u32 %v3386, 8388608
        %v3388 = vsub.s32 0, %v3387
        %v3389 = vadd.s32 %v3384, 1
        %vm3390 = vcmp.gt.s32.totalorder %v3389, 0
        %v3391 = vsel %vm3390, %v3389, 0
        %v3392 = vshrl.u32 %v3391, 5
        %v3393 = vand.u32 %v3391, 31
        %v3394 = vsub.s32 32, %v3393
        %v3395 = vshrl.u32 683565275, %v3394
        %v3396 = vshll.u32 683565275, %v3393
        %v3397 = vshrl.u32 2475754826, %v3394
        %v3398 = vor.u32 %v3396, %v3397
        %v3399 = vshll.u32 2475754826, %v3393
        %v3400 = vshrl.u32 2131351028, %v3394
        %v3401 = vor.u32 %v3399, %v3400
        %v3402 = vshll.u32 2131351028, %v3393
        %v3403 = vshrl.u32 2102212464, %v3394
        %v3404 = vor.u32 %v3402, %v3403
        %v3405 = vshll.u32 2102212464, %v3393
        %v3406 = vshrl.u32 920167782, %v3394
        %v3407 = vor.u32 %v3405, %v3406
        %v3408 = vshll.u32 920167782, %v3393
        %v3409 = vshrl.u32 1326507024, %v3394
        %v3410 = vor.u32 %v3408, %v3409
        %vm3411 = vcmp.lt.s32.totalorder %v3392, 1
        %vm3412 = vcmp.lt.s32.totalorder %v3392, 2
        %vm3413 = vcmp.lt.s32.totalorder %v3392, 3
        %vm3414 = vcmp.lt.s32.totalorder %v3392, 4
        %v3415 = vsel %vm3411, %v3395, %v3398
        %v3416 = vsel %vm3414, %v3404, 2102212464
        %v3417 = vsel %vm3413, %v3401, %v3416
        %v3418 = vsel %vm3412, %v3415, %v3417
        %v3419 = vsel %vm3411, %v3398, %v3401
        %v3420 = vsel %vm3414, %v3407, 920167782
        %v3421 = vsel %vm3413, %v3404, %v3420
        %v3422 = vsel %vm3412, %v3419, %v3421
        %v3423 = vsel %vm3411, %v3401, %v3404
        %v3424 = vsel %vm3414, %v3410, 1326507024
        %v3425 = vsel %vm3413, %v3407, %v3424
        %v3426 = vsel %vm3412, %v3423, %v3425
        %v3427 = vshll.u32 %v3387, 8
        %v3428 = vmul.u32.u64.compose %v3427, %v3426
        %v3429 = vextract.low.u32 %v3428
        %v3430 = vextract.high.u32 %v3428
        %v3431 = vmul.u32.u64.compose %v3427, %v3422
        %v3432 = vextract.low.u32 %v3431
        %v3433 = vextract.high.u32 %v3431
        %v3434 = vmul.u32 %v3427, %v3418
        %v3435 = vadd.s32 %v3430, %v3432
        %vm3436 = vc.u32 %v3430, %v3432
        %v3437 = vadd.s32 %v3433, 1
        %v3438 = vsel %vm3436, %v3437, %v3433
        %v3439 = vadd.s32 %v3434, %v3438
        %v3440 = vadd.s32 %v3439, 536870912
        %v3441 = vshrl.u32 %v3440, 30
        %v3442 = vshll.u32 %v3441, 30
        %v3443 = vsub.s32 %v3439, %v3442
        %vm3444 = vcmp.lt.s32.totalorder %v3443, 0
        %v3445 = vsub.s32 0, %v3443
        %v3446 = vsel %vm3444, %v3445, %v3443
        %v3447 = vclz %v3446
        %v3448 = vsub.s32 %v3447, 2
        %vm3449 = vcmp.gt.s32.totalorder 0, %v3448
        %v3450 = vsel %vm3449, 0, %v3448
        %v3451 = vsub.s32 32, %v3450
        %v3452 = vshll.u32 %v3443, %v3450
        %v3453 = vshrl.u32 %v3435, %v3451
        %v3454 = vor.u32 %v3452, %v3453
        %v3455 = vsub.s32 4294967266, %v3450
        %v3456 = vadd.s32 %v3455, 127
        %v3457 = vshll.u32 %v3456, 23
        %v3458 = vor.u32 4788187, %v3457
        %v3459 = vand.u32 2147483647, %v3458
        %v3461 = vcvt.s32.f32 %v3454
        %v3462 = vmul.f32 %v3461, %v3459
        %v3463 = vxor.u32 %v3462, 2147483648
        %v3464 = vsel %vm3381, %v3463, %v3462
        %v3465 = vsub.s32 4, %v3441
        %v3466 = vsel %vm3381, %v3465, %v3441
        %v3467 = vsel %vm3380, %v2329, %v3464
        %v3468 = vsel %vm3380, 0, %v3466
        %v3469 = vcosq.f32.pop %v3467
        %v3470 = vsinq.f32.pop %v3467
        %vm3471 = vweird.f32 %v2329
        %v3472 = vadd.s32 %v3468, 3
        %v3473 = vand.u32 %v3472, 3
        %vm3474 = vcmp.lt.s32.totalorder %v3473, 2
        %vm3475 = vcmp.eq.s32.totalorder %v3473, 0
        %v3476 = vxor.u32 %v3470, 2147483648
        %v3477 = vsel %vm3475, %v3469, %v3476
        %vm3478 = vcmp.eq.s32.totalorder %v3473, 2
        %v3479 = vxor.u32 %v3469, 2147483648
        %v3480 = vsel %vm3478, %v3479, %v3470
        %v3481 = vsel %vm3474, %v3477, %v3480
        %v3482 = vsel %vm3471, nan, %v3481
        %v3483 = vand.u32 2147483647, %v2331
        %vm3484 = vcmp.le.f32.partialorder %v3483, 0.7853982
        %vm3485 = vcmp.lt.s32.totalorder %v2331, 0
        %v3486 = vand.u32 %v2331, 2139095040
        %v3487 = vshrl.u32 %v3486, 23
        %v3488 = vsub.s32 %v3487, 127
        %v3489 = vand.u32 2147483647, %v2331
        %v3490 = vand.u32 %v3489, 8388607
        %v3491 = vor.u32 %v3490, 8388608
        %v3492 = vsub.s32 0, %v3491
        %v3493 = vadd.s32 %v3488, 1
        %vm3494 = vcmp.gt.s32.totalorder %v3493, 0
        %v3495 = vsel %vm3494, %v3493, 0
        %v3496 = vshrl.u32 %v3495, 5
        %v3497 = vand.u32 %v3495, 31
        %v3498 = vsub.s32 32, %v3497
        %v3499 = vshrl.u32 683565275, %v3498
        %v3500 = vshll.u32 683565275, %v3497
        %v3501 = vshrl.u32 2475754826, %v3498
        %v3502 = vor.u32 %v3500, %v3501
        %v3503 = vshll.u32 2475754826, %v3497
        %v3504 = vshrl.u32 2131351028, %v3498
        %v3505 = vor.u32 %v3503, %v3504
        %v3506 = vshll.u32 2131351028, %v3497
        %v3507 = vshrl.u32 2102212464, %v3498
        %v3508 = vor.u32 %v3506, %v3507
        %v3509 = vshll.u32 2102212464, %v3497
        %v3510 = vshrl.u32 920167782, %v3498
        %v3511 = vor.u32 %v3509, %v3510
        %v3512 = vshll.u32 920167782, %v3497
        %v3513 = vshrl.u32 1326507024, %v3498
        %v3514 = vor.u32 %v3512, %v3513
        %vm3515 = vcmp.lt.s32.totalorder %v3496, 1
        %vm3516 = vcmp.lt.s32.totalorder %v3496, 2
        %vm3517 = vcmp.lt.s32.totalorder %v3496, 3
        %vm3518 = vcmp.lt.s32.totalorder %v3496, 4
        %v3519 = vsel %vm3515, %v3499, %v3502
        %v3520 = vsel %vm3518, %v3508, 2102212464
        %v3521 = vsel %vm3517, %v3505, %v3520
        %v3522 = vsel %vm3516, %v3519, %v3521
        %v3523 = vsel %vm3515, %v3502, %v3505
        %v3524 = vsel %vm3518, %v3511, 920167782
        %v3525 = vsel %vm3517, %v3508, %v3524
        %v3526 = vsel %vm3516, %v3523, %v3525
        %v3527 = vsel %vm3515, %v3505, %v3508
        %v3528 = vsel %vm3518, %v3514, 1326507024
        %v3529 = vsel %vm3517, %v3511, %v3528
        %v3530 = vsel %vm3516, %v3527, %v3529
        %v3531 = vshll.u32 %v3491, 8
        %v3532 = vmul.u32.u64.compose %v3531, %v3530
        %v3533 = vextract.low.u32 %v3532
        %v3534 = vextract.high.u32 %v3532
        %v3535 = vmul.u32.u64.compose %v3531, %v3526
        %v3536 = vextract.low.u32 %v3535
        %v3537 = vextract.high.u32 %v3535
        %v3538 = vmul.u32 %v3531, %v3522
        %v3539 = vadd.s32 %v3534, %v3536
        %vm3540 = vc.u32 %v3534, %v3536
        %v3541 = vadd.s32 %v3537, 1
        %v3542 = vsel %vm3540, %v3541, %v3537
        %v3543 = vadd.s32 %v3538, %v3542
        %v3544 = vadd.s32 %v3543, 536870912
        %v3545 = vshrl.u32 %v3544, 30
        %v3546 = vshll.u32 %v3545, 30
        %v3547 = vsub.s32 %v3543, %v3546
        %vm3548 = vcmp.lt.s32.totalorder %v3547, 0
        %v3549 = vsub.s32 0, %v3547
        %v3550 = vsel %vm3548, %v3549, %v3547
        %v3551 = vclz %v3550
        %v3552 = vsub.s32 %v3551, 2
        %vm3553 = vcmp.gt.s32.totalorder 0, %v3552
        %v3554 = vsel %vm3553, 0, %v3552
        %v3555 = vsub.s32 32, %v3554
        %v3556 = vshll.u32 %v3547, %v3554
        %v3557 = vshrl.u32 %v3539, %v3555
        %v3558 = vor.u32 %v3556, %v3557
        %v3559 = vsub.s32 4294967266, %v3554
        %v3560 = vadd.s32 %v3559, 127
        %v3561 = vshll.u32 %v3560, 23
        %v3562 = vor.u32 4788187, %v3561
        %v3563 = vand.u32 2147483647, %v3562
        %v3565 = vcvt.s32.f32 %v3558
        %v3566 = vmul.f32 %v3565, %v3563
        %v3567 = vxor.u32 %v3566, 2147483648
        %v3568 = vsel %vm3485, %v3567, %v3566
        %v3569 = vsub.s32 4, %v3545
        %v3570 = vsel %vm3485, %v3569, %v3545
        %v3571 = vsel %vm3484, %v2331, %v3568
        %v3572 = vsel %vm3484, 0, %v3570
        %v3573 = vcosq.f32.pop %v3571
        %v3574 = vsinq.f32.pop %v3571
        %vm3575 = vweird.f32 %v2331
        %v3576 = vadd.s32 %v3572, 3
        %v3577 = vand.u32 %v3576, 3
        %vm3578 = vcmp.lt.s32.totalorder %v3577, 2
        %vm3579 = vcmp.eq.s32.totalorder %v3577, 0
        %v3580 = vxor.u32 %v3574, 2147483648
        %v3581 = vsel %vm3579, %v3573, %v3580
        %vm3582 = vcmp.eq.s32.totalorder %v3577, 2
        %v3583 = vxor.u32 %v3573, 2147483648
        %v3584 = vsel %vm3582, %v3583, %v3574
        %v3585 = vsel %vm3578, %v3581, %v3584
        %v3586 = vsel %vm3575, nan, %v3585
        %v3587 = vand.u32 2147483647, %v2246
        %vm3588 = vcmp.le.f32.partialorder %v3587, 0.7853982
        %vm3589 = vcmp.lt.s32.totalorder %v2246, 0
        %v3590 = vand.u32 %v2246, 2139095040
        %v3591 = vshrl.u32 %v3590, 23
        %v3592 = vsub.s32 %v3591, 127
        %v3593 = vand.u32 2147483647, %v2246
        %v3594 = vand.u32 %v3593, 8388607
        %v3595 = vor.u32 %v3594, 8388608
        %v3596 = vsub.s32 0, %v3595
        %v3597 = vadd.s32 %v3592, 1
        %vm3598 = vcmp.gt.s32.totalorder %v3597, 0
        %v3599 = vsel %vm3598, %v3597, 0
        %v3600 = vshrl.u32 %v3599, 5
        %v3601 = vand.u32 %v3599, 31
        %v3602 = vsub.s32 32, %v3601
        %v3603 = vshrl.u32 683565275, %v3602
        %v3604 = vshll.u32 683565275, %v3601
        %v3605 = vshrl.u32 2475754826, %v3602
        %v3606 = vor.u32 %v3604, %v3605
        %v3607 = vshll.u32 2475754826, %v3601
        %v3608 = vshrl.u32 2131351028, %v3602
        %v3609 = vor.u32 %v3607, %v3608
        %v3610 = vshll.u32 2131351028, %v3601
        %v3611 = vshrl.u32 2102212464, %v3602
        %v3612 = vor.u32 %v3610, %v3611
        %v3613 = vshll.u32 2102212464, %v3601
        %v3614 = vshrl.u32 920167782, %v3602
        %v3615 = vor.u32 %v3613, %v3614
        %v3616 = vshll.u32 920167782, %v3601
        %v3617 = vshrl.u32 1326507024, %v3602
        %v3618 = vor.u32 %v3616, %v3617
        %vm3619 = vcmp.lt.s32.totalorder %v3600, 1
        %vm3620 = vcmp.lt.s32.totalorder %v3600, 2
        %vm3621 = vcmp.lt.s32.totalorder %v3600, 3
        %vm3622 = vcmp.lt.s32.totalorder %v3600, 4
        %v3623 = vsel %vm3619, %v3603, %v3606
        %v3624 = vsel %vm3622, %v3612, 2102212464
        %v3625 = vsel %vm3621, %v3609, %v3624
        %v3626 = vsel %vm3620, %v3623, %v3625
        %v3627 = vsel %vm3619, %v3606, %v3609
        %v3628 = vsel %vm3622, %v3615, 920167782
        %v3629 = vsel %vm3621, %v3612, %v3628
        %v3630 = vsel %vm3620, %v3627, %v3629
        %v3631 = vsel %vm3619, %v3609, %v3612
        %v3632 = vsel %vm3622, %v3618, 1326507024
        %v3633 = vsel %vm3621, %v3615, %v3632
        %v3634 = vsel %vm3620, %v3631, %v3633
        %v3635 = vshll.u32 %v3595, 8
        %v3636 = vmul.u32.u64.compose %v3635, %v3634
        %v3637 = vextract.low.u32 %v3636
        %v3638 = vextract.high.u32 %v3636
        %v3639 = vmul.u32.u64.compose %v3635, %v3630
        %v3640 = vextract.low.u32 %v3639
        %v3641 = vextract.high.u32 %v3639
        %v3642 = vmul.u32 %v3635, %v3626
        %v3643 = vadd.s32 %v3638, %v3640
        %vm3644 = vc.u32 %v3638, %v3640
        %v3645 = vadd.s32 %v3641, 1
        %v3646 = vsel %vm3644, %v3645, %v3641
        %v3647 = vadd.s32 %v3642, %v3646
        %v3648 = vadd.s32 %v3647, 536870912
        %v3649 = vshrl.u32 %v3648, 30
        %v3650 = vshll.u32 %v3649, 30
        %v3651 = vsub.s32 %v3647, %v3650
        %vm3652 = vcmp.lt.s32.totalorder %v3651, 0
        %v3653 = vsub.s32 0, %v3651
        %v3654 = vsel %vm3652, %v3653, %v3651
        %v3655 = vclz %v3654
        %v3656 = vsub.s32 %v3655, 2
        %vm3657 = vcmp.gt.s32.totalorder 0, %v3656
        %v3658 = vsel %vm3657, 0, %v3656
        %v3659 = vsub.s32 32, %v3658
        %v3660 = vshll.u32 %v3651, %v3658
        %v3661 = vshrl.u32 %v3643, %v3659
        %v3662 = vor.u32 %v3660, %v3661
        %v3663 = vsub.s32 4294967266, %v3658
        %v3664 = vadd.s32 %v3663, 127
        %v3665 = vshll.u32 %v3664, 23
        %v3666 = vor.u32 4788187, %v3665
        %v3667 = vand.u32 2147483647, %v3666
        %v3669 = vcvt.s32.f32 %v3662
        %v3670 = vmul.f32 %v3669, %v3667
        %v3671 = vxor.u32 %v3670, 2147483648
        %v3672 = vsel %vm3589, %v3671, %v3670
        %v3673 = vsub.s32 4, %v3649
        %v3674 = vsel %vm3589, %v3673, %v3649
        %v3675 = vsel %vm3588, %v2246, %v3672
        %v3676 = vsel %vm3588, 0, %v3674
        %v3677 = vcosq.f32.pop %v3675
        %v3678 = vsinq.f32.pop %v3675
        %vm3679 = vweird.f32 %v2246
        %v3680 = vadd.s32 %v3676, 3
        %v3681 = vand.u32 %v3680, 3
        %vm3682 = vcmp.lt.s32.totalorder %v3681, 2
        %vm3683 = vcmp.eq.s32.totalorder %v3681, 0
        %v3684 = vxor.u32 %v3678, 2147483648
        %v3685 = vsel %vm3683, %v3677, %v3684
        %vm3686 = vcmp.eq.s32.totalorder %v3681, 2
        %v3687 = vxor.u32 %v3677, 2147483648
        %v3688 = vsel %vm3686, %v3687, %v3678
        %v3689 = vsel %vm3682, %v3685, %v3688
        %v3690 = vsel %vm3679, nan, %v3689
        %v3691 = vand.u32 2147483647, %v2248
        %vm3692 = vcmp.le.f32.partialorder %v3691, 0.7853982
        %vm3693 = vcmp.lt.s32.totalorder %v2248, 0
        %v3694 = vand.u32 %v2248, 2139095040
        %v3695 = vshrl.u32 %v3694, 23
        %v3696 = vsub.s32 %v3695, 127
        %v3697 = vand.u32 2147483647, %v2248
        %v3698 = vand.u32 %v3697, 8388607
        %v3699 = vor.u32 %v3698, 8388608
        %v3700 = vsub.s32 0, %v3699
        %v3701 = vadd.s32 %v3696, 1
        %vm3702 = vcmp.gt.s32.totalorder %v3701, 0
        %v3703 = vsel %vm3702, %v3701, 0
        %v3704 = vshrl.u32 %v3703, 5
        %v3705 = vand.u32 %v3703, 31
        %v3706 = vsub.s32 32, %v3705
        %v3707 = vshrl.u32 683565275, %v3706
        %v3708 = vshll.u32 683565275, %v3705
        %v3709 = vshrl.u32 2475754826, %v3706
        %v3710 = vor.u32 %v3708, %v3709
        %v3711 = vshll.u32 2475754826, %v3705
        %v3712 = vshrl.u32 2131351028, %v3706
        %v3713 = vor.u32 %v3711, %v3712
        %v3714 = vshll.u32 2131351028, %v3705
        %v3715 = vshrl.u32 2102212464, %v3706
        %v3716 = vor.u32 %v3714, %v3715
        %v3717 = vshll.u32 2102212464, %v3705
        %v3718 = vshrl.u32 920167782, %v3706
        %v3719 = vor.u32 %v3717, %v3718
        %v3720 = vshll.u32 920167782, %v3705
        %v3721 = vshrl.u32 1326507024, %v3706
        %v3722 = vor.u32 %v3720, %v3721
        %vm3723 = vcmp.lt.s32.totalorder %v3704, 1
        %vm3724 = vcmp.lt.s32.totalorder %v3704, 2
        %vm3725 = vcmp.lt.s32.totalorder %v3704, 3
        %vm3726 = vcmp.lt.s32.totalorder %v3704, 4
        %v3727 = vsel %vm3723, %v3707, %v3710
        %v3728 = vsel %vm3726, %v3716, 2102212464
        %v3729 = vsel %vm3725, %v3713, %v3728
        %v3730 = vsel %vm3724, %v3727, %v3729
        %v3731 = vsel %vm3723, %v3710, %v3713
        %v3732 = vsel %vm3726, %v3719, 920167782
        %v3733 = vsel %vm3725, %v3716, %v3732
        %v3734 = vsel %vm3724, %v3731, %v3733
        %v3735 = vsel %vm3723, %v3713, %v3716
        %v3736 = vsel %vm3726, %v3722, 1326507024
        %v3737 = vsel %vm3725, %v3719, %v3736
        %v3738 = vsel %vm3724, %v3735, %v3737
        %v3739 = vshll.u32 %v3699, 8
        %v3740 = vmul.u32.u64.compose %v3739, %v3738
        %v3741 = vextract.low.u32 %v3740
        %v3742 = vextract.high.u32 %v3740
        %v3743 = vmul.u32.u64.compose %v3739, %v3734
        %v3744 = vextract.low.u32 %v3743
        %v3745 = vextract.high.u32 %v3743
        %v3746 = vmul.u32 %v3739, %v3730
        %v3747 = vadd.s32 %v3742, %v3744
        %vm3748 = vc.u32 %v3742, %v3744
        %v3749 = vadd.s32 %v3745, 1
        %v3750 = vsel %vm3748, %v3749, %v3745
        %v3751 = vadd.s32 %v3746, %v3750
        %v3752 = vadd.s32 %v3751, 536870912
        %v3753 = vshrl.u32 %v3752, 30
        %v3754 = vshll.u32 %v3753, 30
        %v3755 = vsub.s32 %v3751, %v3754
        %vm3756 = vcmp.lt.s32.totalorder %v3755, 0
        %v3757 = vsub.s32 0, %v3755
        %v3758 = vsel %vm3756, %v3757, %v3755
        %v3759 = vclz %v3758
        %v3760 = vsub.s32 %v3759, 2
        %vm3761 = vcmp.gt.s32.totalorder 0, %v3760
        %v3762 = vsel %vm3761, 0, %v3760
        %v3763 = vsub.s32 32, %v3762
        %v3764 = vshll.u32 %v3755, %v3762
        %v3765 = vshrl.u32 %v3747, %v3763
        %v3766 = vor.u32 %v3764, %v3765
        %v3767 = vsub.s32 4294967266, %v3762
        %v3768 = vadd.s32 %v3767, 127
        %v3769 = vshll.u32 %v3768, 23
        %v3770 = vor.u32 4788187, %v3769
        %v3771 = vand.u32 2147483647, %v3770
        %v3773 = vcvt.s32.f32 %v3766
        %v3774 = vmul.f32 %v3773, %v3771
        %v3775 = vxor.u32 %v3774, 2147483648
        %v3776 = vsel %vm3693, %v3775, %v3774
        %v3777 = vsub.s32 4, %v3753
        %v3778 = vsel %vm3693, %v3777, %v3753
        %v3779 = vsel %vm3692, %v2248, %v3776
        %v3780 = vsel %vm3692, 0, %v3778
        %v3781 = vcosq.f32.pop %v3779
        %v3782 = vsinq.f32.pop %v3779
        %vm3783 = vweird.f32 %v2248
        %v3784 = vadd.s32 %v3780, 3
        %v3785 = vand.u32 %v3784, 3
        %vm3786 = vcmp.lt.s32.totalorder %v3785, 2
        %vm3787 = vcmp.eq.s32.totalorder %v3785, 0
        %v3788 = vxor.u32 %v3782, 2147483648
        %v3789 = vsel %vm3787, %v3781, %v3788
        %vm3790 = vcmp.eq.s32.totalorder %v3785, 2
        %v3791 = vxor.u32 %v3781, 2147483648
        %v3792 = vsel %vm3790, %v3791, %v3782
        %v3793 = vsel %vm3786, %v3789, %v3792
        %v3794 = vsel %vm3783, nan, %v3793
        %v3795 = vand.u32 2147483647, %v2335
        %vm3796 = vcmp.le.f32.partialorder %v3795, 0.7853982
        %vm3797 = vcmp.lt.s32.totalorder %v2335, 0
        %v3798 = vand.u32 %v2335, 2139095040
        %v3799 = vshrl.u32 %v3798, 23
        %v3800 = vsub.s32 %v3799, 127
        %v3801 = vand.u32 2147483647, %v2335
        %v3802 = vand.u32 %v3801, 8388607
        %v3803 = vor.u32 %v3802, 8388608
        %v3804 = vsub.s32 0, %v3803
        %v3805 = vadd.s32 %v3800, 1
        %vm3806 = vcmp.gt.s32.totalorder %v3805, 0
        %v3807 = vsel %vm3806, %v3805, 0
        %v3808 = vshrl.u32 %v3807, 5
        %v3809 = vand.u32 %v3807, 31
        %v3810 = vsub.s32 32, %v3809
        %v3811 = vshrl.u32 683565275, %v3810
        %v3812 = vshll.u32 683565275, %v3809
        %v3813 = vshrl.u32 2475754826, %v3810
        %v3814 = vor.u32 %v3812, %v3813
        %v3815 = vshll.u32 2475754826, %v3809
        %v3816 = vshrl.u32 2131351028, %v3810
        %v3817 = vor.u32 %v3815, %v3816
        %v3818 = vshll.u32 2131351028, %v3809
        %v3819 = vshrl.u32 2102212464, %v3810
        %v3820 = vor.u32 %v3818, %v3819
        %v3821 = vshll.u32 2102212464, %v3809
        %v3822 = vshrl.u32 920167782, %v3810
        %v3823 = vor.u32 %v3821, %v3822
        %v3824 = vshll.u32 920167782, %v3809
        %v3825 = vshrl.u32 1326507024, %v3810
        %v3826 = vor.u32 %v3824, %v3825
        %vm3827 = vcmp.lt.s32.totalorder %v3808, 1
        %vm3828 = vcmp.lt.s32.totalorder %v3808, 2
        %vm3829 = vcmp.lt.s32.totalorder %v3808, 3
        %vm3830 = vcmp.lt.s32.totalorder %v3808, 4
        %v3831 = vsel %vm3827, %v3811, %v3814
        %v3832 = vsel %vm3830, %v3820, 2102212464
        %v3833 = vsel %vm3829, %v3817, %v3832
        %v3834 = vsel %vm3828, %v3831, %v3833
        %v3835 = vsel %vm3827, %v3814, %v3817
        %v3836 = vsel %vm3830, %v3823, 920167782
        %v3837 = vsel %vm3829, %v3820, %v3836
        %v3838 = vsel %vm3828, %v3835, %v3837
        %v3839 = vsel %vm3827, %v3817, %v3820
        %v3840 = vsel %vm3830, %v3826, 1326507024
        %v3841 = vsel %vm3829, %v3823, %v3840
        %v3842 = vsel %vm3828, %v3839, %v3841
        %v3843 = vshll.u32 %v3803, 8
        %v3844 = vmul.u32.u64.compose %v3843, %v3842
        %v3845 = vextract.low.u32 %v3844
        %v3846 = vextract.high.u32 %v3844
        %v3847 = vmul.u32.u64.compose %v3843, %v3838
        %v3848 = vextract.low.u32 %v3847
        %v3849 = vextract.high.u32 %v3847
        %v3850 = vmul.u32 %v3843, %v3834
        %v3851 = vadd.s32 %v3846, %v3848
        %vm3852 = vc.u32 %v3846, %v3848
        %v3853 = vadd.s32 %v3849, 1
        %v3854 = vsel %vm3852, %v3853, %v3849
        %v3855 = vadd.s32 %v3850, %v3854
        %v3856 = vadd.s32 %v3855, 536870912
        %v3857 = vshrl.u32 %v3856, 30
        %v3858 = vshll.u32 %v3857, 30
        %v3859 = vsub.s32 %v3855, %v3858
        %vm3860 = vcmp.lt.s32.totalorder %v3859, 0
        %v3861 = vsub.s32 0, %v3859
        %v3862 = vsel %vm3860, %v3861, %v3859
        %v3863 = vclz %v3862
        %v3864 = vsub.s32 %v3863, 2
        %vm3865 = vcmp.gt.s32.totalorder 0, %v3864
        %v3866 = vsel %vm3865, 0, %v3864
        %v3867 = vsub.s32 32, %v3866
        %v3868 = vshll.u32 %v3859, %v3866
        %v3869 = vshrl.u32 %v3851, %v3867
        %v3870 = vor.u32 %v3868, %v3869
        %v3871 = vsub.s32 4294967266, %v3866
        %v3872 = vadd.s32 %v3871, 127
        %v3873 = vshll.u32 %v3872, 23
        %v3874 = vor.u32 4788187, %v3873
        %v3875 = vand.u32 2147483647, %v3874
        %v3877 = vcvt.s32.f32 %v3870
        %v3878 = vmul.f32 %v3877, %v3875
        %v3879 = vxor.u32 %v3878, 2147483648
        %v3880 = vsel %vm3797, %v3879, %v3878
        %v3881 = vsub.s32 4, %v3857
        %v3882 = vsel %vm3797, %v3881, %v3857
        %v3883 = vsel %vm3796, %v2335, %v3880
        %v3884 = vsel %vm3796, 0, %v3882
        %v3885 = vcosq.f32.pop %v3883
        %v3886 = vsinq.f32.pop %v3883
        %vm3887 = vweird.f32 %v2335
        %v3888 = vadd.s32 %v3884, 3
        %v3889 = vand.u32 %v3888, 3
        %vm3890 = vcmp.lt.s32.totalorder %v3889, 2
        %vm3891 = vcmp.eq.s32.totalorder %v3889, 0
        %v3892 = vxor.u32 %v3886, 2147483648
        %v3893 = vsel %vm3891, %v3885, %v3892
        %vm3894 = vcmp.eq.s32.totalorder %v3889, 2
        %v3895 = vxor.u32 %v3885, 2147483648
        %v3896 = vsel %vm3894, %v3895, %v3886
        %v3897 = vsel %vm3890, %v3893, %v3896
        %v3898 = vsel %vm3887, nan, %v3897
        %v3899 = vand.u32 2147483647, %v2337
        %vm3900 = vcmp.le.f32.partialorder %v3899, 0.7853982
        %vm3901 = vcmp.lt.s32.totalorder %v2337, 0
        %v3902 = vand.u32 %v2337, 2139095040
        %v3903 = vshrl.u32 %v3902, 23
        %v3904 = vsub.s32 %v3903, 127
        %v3905 = vand.u32 2147483647, %v2337
        %v3906 = vand.u32 %v3905, 8388607
        %v3907 = vor.u32 %v3906, 8388608
        %v3908 = vsub.s32 0, %v3907
        %v3909 = vadd.s32 %v3904, 1
        %vm3910 = vcmp.gt.s32.totalorder %v3909, 0
        %v3911 = vsel %vm3910, %v3909, 0
        %v3912 = vshrl.u32 %v3911, 5
        %v3913 = vand.u32 %v3911, 31
        %v3914 = vsub.s32 32, %v3913
        %v3915 = vshrl.u32 683565275, %v3914
        %v3916 = vshll.u32 683565275, %v3913
        %v3917 = vshrl.u32 2475754826, %v3914
        %v3918 = vor.u32 %v3916, %v3917
        %v3919 = vshll.u32 2475754826, %v3913
        %v3920 = vshrl.u32 2131351028, %v3914
        %v3921 = vor.u32 %v3919, %v3920
        %v3922 = vshll.u32 2131351028, %v3913
        %v3923 = vshrl.u32 2102212464, %v3914
        %v3924 = vor.u32 %v3922, %v3923
        %v3925 = vshll.u32 2102212464, %v3913
        %v3926 = vshrl.u32 920167782, %v3914
        %v3927 = vor.u32 %v3925, %v3926
        %v3928 = vshll.u32 920167782, %v3913
        %v3929 = vshrl.u32 1326507024, %v3914
        %v3930 = vor.u32 %v3928, %v3929
        %vm3931 = vcmp.lt.s32.totalorder %v3912, 1
        %vm3932 = vcmp.lt.s32.totalorder %v3912, 2
        %vm3933 = vcmp.lt.s32.totalorder %v3912, 3
        %vm3934 = vcmp.lt.s32.totalorder %v3912, 4
        %v3935 = vsel %vm3931, %v3915, %v3918
        %v3936 = vsel %vm3934, %v3924, 2102212464
        %v3937 = vsel %vm3933, %v3921, %v3936
        %v3938 = vsel %vm3932, %v3935, %v3937
        %v3939 = vsel %vm3931, %v3918, %v3921
        %v3940 = vsel %vm3934, %v3927, 920167782
        %v3941 = vsel %vm3933, %v3924, %v3940
        %v3942 = vsel %vm3932, %v3939, %v3941
        %v3943 = vsel %vm3931, %v3921, %v3924
        %v3944 = vsel %vm3934, %v3930, 1326507024
        %v3945 = vsel %vm3933, %v3927, %v3944
        %v3946 = vsel %vm3932, %v3943, %v3945
        %v3947 = vshll.u32 %v3907, 8
        %v3948 = vmul.u32.u64.compose %v3947, %v3946
        %v3949 = vextract.low.u32 %v3948
        %v3950 = vextract.high.u32 %v3948
        %v3951 = vmul.u32.u64.compose %v3947, %v3942
        %v3952 = vextract.low.u32 %v3951
        %v3953 = vextract.high.u32 %v3951
        %v3954 = vmul.u32 %v3947, %v3938
        %v3955 = vadd.s32 %v3950, %v3952
        %vm3956 = vc.u32 %v3950, %v3952
        %v3957 = vadd.s32 %v3953, 1
        %v3958 = vsel %vm3956, %v3957, %v3953
        %v3959 = vadd.s32 %v3954, %v3958
        %v3960 = vadd.s32 %v3959, 536870912
        %v3961 = vshrl.u32 %v3960, 30
        %v3962 = vshll.u32 %v3961, 30
        %v3963 = vsub.s32 %v3959, %v3962
        %vm3964 = vcmp.lt.s32.totalorder %v3963, 0
        %v3965 = vsub.s32 0, %v3963
        %v3966 = vsel %vm3964, %v3965, %v3963
        %v3967 = vclz %v3966
        %v3968 = vsub.s32 %v3967, 2
        %vm3969 = vcmp.gt.s32.totalorder 0, %v3968
        %v3970 = vsel %vm3969, 0, %v3968
        %v3971 = vsub.s32 32, %v3970
        %v3972 = vshll.u32 %v3963, %v3970
        %v3973 = vshrl.u32 %v3955, %v3971
        %v3974 = vor.u32 %v3972, %v3973
        %v3975 = vsub.s32 4294967266, %v3970
        %v3976 = vadd.s32 %v3975, 127
        %v3977 = vshll.u32 %v3976, 23
        %v3978 = vor.u32 4788187, %v3977
        %v3979 = vand.u32 2147483647, %v3978
        %v3981 = vcvt.s32.f32 %v3974
        %v3982 = vmul.f32 %v3981, %v3979
        %v3983 = vxor.u32 %v3982, 2147483648
        %v3984 = vsel %vm3901, %v3983, %v3982
        %v3985 = vsub.s32 4, %v3961
        %v3986 = vsel %vm3901, %v3985, %v3961
        %v3987 = vsel %vm3900, %v2337, %v3984
        %v3988 = vsel %vm3900, 0, %v3986
        %v3989 = vcosq.f32.pop %v3987
        %v3990 = vsinq.f32.pop %v3987
        %vm3991 = vweird.f32 %v2337
        %v3992 = vadd.s32 %v3988, 3
        %v3993 = vand.u32 %v3992, 3
        %vm3994 = vcmp.lt.s32.totalorder %v3993, 2
        %vm3995 = vcmp.eq.s32.totalorder %v3993, 0
        %v3996 = vxor.u32 %v3990, 2147483648
        %v3997 = vsel %vm3995, %v3989, %v3996
        %vm3998 = vcmp.eq.s32.totalorder %v3993, 2
        %v3999 = vxor.u32 %v3989, 2147483648
        %v4000 = vsel %vm3998, %v3999, %v3990
        %v4001 = vsel %vm3994, %v3997, %v4000
        %v4002 = vsel %vm3991, nan, %v4001
        %s4003 = scalar_lea.vmem %s5, 64
        %v4004 = vld [vmem:[%s4003] sm:$0xff]
        %v4005 = vld [vmem:[%s4003 + $0x8] sm:$0xff]
        %v4006 = vld [vmem:[%s4003 + $0x10] sm:$0xff]
        %v4007 = vld [vmem:[%s4003 + $0x18] sm:$0xff]
        %v4008 = vld [vmem:[%s3] sm:$0xff]
        %v4009 = vld [vmem:[%s3 + $0x8] sm:$0xff]
        %v4010 = vld [vmem:[%s3 + $0x10] sm:$0xff]
        %v4011 = vld [vmem:[%s3 + $0x18] sm:$0xff]
        %4013 = vset.pattern.permute.xlu0 0
        %4014 = vperm.xlu0 %4013, %v4004
        %v4015 = vpop.permute.xlu0 %4014
        %4018 = vset.pattern.permute.xlu0 0
        %4019 = vperm.xlu0 %4018, %v4005
        %v4020 = vpop.permute.xlu0 %4019
        %4023 = vset.pattern.permute.xlu0 0
        %4024 = vperm.xlu0 %4023, %v4006
        %v4025 = vpop.permute.xlu0 %4024
        %4028 = vset.pattern.permute.xlu0 0
        %4029 = vperm.xlu0 %4028, %v4007
        %v4030 = vpop.permute.xlu0 %4029
        %v4033 = vsel %vm2148, %v4008, 0
        %v4036 = vsel %vm2148, %v4009, 0
        %v4039 = vsel %vm2148, %v4010, 0
        %v4042 = vsel %vm2148, %v4011, 0
        %4044 = vmatprep.subr.mxu0 0.0
        %4045 = vmatpush1.msra.mxu0 0.0
        %4046 = vmatprep.subr.mxu0 0.0
        %4047 = vmatpush1.msra.mxu0 0.0
        %4048 = vmatprep.subr.mxu0 0.0
        %4049 = vmatpush1.msra.mxu0 0.0
        %4050 = vmatprep.subr.mxu0 0.0
        %4051 = vmatpush1.msra.mxu0 0.0
        %4052 = vmatprep.subr.mxu0 0.0
        %4053 = vmatpush1.msra.mxu0 0.0
        %4054 = vmatprep.subr.mxu0 0.0
        %4055 = vmatpush1.msra.mxu0 0.0
        %4056 = vmatprep.subr.mxu0 0.0
        %4057 = vmatpush1.msra.mxu0 0.0
        %4058 = vmatprep.subr.mxu0 0.0
        %4059 = vmatpush1.msra.mxu0 0.0
        %4060 = vmatprep.subr.mxu0 0.0
        %4061 = vmatpush1.msra.mxu0 0.0
        %4062 = vmatprep.subr.mxu0 0.0
        %4063 = vmatpush1.msra.mxu0 0.0
        %4064 = vmatprep.subr.mxu0 0.0
        %4065 = vmatpush1.msra.mxu0 0.0
        %4066 = vmatprep.subr.mxu0 0.0
        %4067 = vmatpush1.msra.mxu0 0.0
        %4068 = vmatprep.subr.mxu0 %v3794
        %4069 = vmatpush1.msra.mxu0 %v3690
        %4070 = vmatprep.subr.mxu0 %v3378
        %4071 = vmatpush1.msra.mxu0 %v3274
        %4072 = vmatprep.subr.mxu0 %v2962
        %4073 = vmatpush1.msra.mxu0 %v2858
        %4074 = vmatprep.subr.mxu0 %v2546
        %4075 = vmatpush1.msra.mxu0 %v2442
        %4076 = vmatprep.subr.mxu0 0.0
        %4077 = vmatpush2.msra.mxu0 0.0
        %4078 = vmatprep.subr.mxu0 0.0
        %4079 = vmatpush2.msra.mxu0 0.0
        %4080 = vmatprep.subr.mxu0 0.0
        %4081 = vmatpush2.msra.mxu0 0.0
        %4082 = vmatprep.subr.mxu0 0.0
        %4083 = vmatpush2.msra.mxu0 0.0
        %4084 = vmatprep.subr.mxu0 0.0
        %4085 = vmatpush2.msra.mxu0 0.0
        %4086 = vmatprep.subr.mxu0 0.0
        %4087 = vmatpush2.msra.mxu0 0.0
        %4088 = vmatprep.subr.mxu0 0.0
        %4089 = vmatpush2.msra.mxu0 0.0
        %4090 = vmatprep.subr.mxu0 0.0
        %4091 = vmatpush2.msra.mxu0 0.0
        %4092 = vmatprep.subr.mxu0 0.0
        %4093 = vmatpush2.msra.mxu0 0.0
        %4094 = vmatprep.subr.mxu0 0.0
        %4095 = vmatpush2.msra.mxu0 0.0
        %4096 = vmatprep.subr.mxu0 0.0
        %4097 = vmatpush2.msra.mxu0 0.0
        %4098 = vmatprep.subr.mxu0 0.0
        %4099 = vmatpush2.msra.mxu0 0.0
        %4100 = vmatprep.subr.mxu0 0.0
        %4101 = vmatpush2.msra.mxu0 0.0
        %4102 = vmatprep.subr.mxu0 0.0
        %4103 = vmatpush2.msra.mxu0 0.0
        %4104 = vmatprep.subr.mxu0 0.0
        %4105 = vmatpush2.msra.mxu0 0.0
        %4106 = vmatprep.subr.mxu0 0.0
        %4107 = vmatpush2.msra.mxu0 0.0
        %4108 = vmatprep.mubr.f32.mxu0 0.0
        %4109 = vmatmul.mubr.f32.gmra.mxu0 %v4033
        %v4110 = vpop.f32.mrf.mxu0
        %v4111 = vadd.f32 %v4015, %v4110
        %v4112 = vpop.f32.mrf.mxu0
        %v4113 = vadd.f32 %v4015, %v4112
        %4114 = vmatprep.mubr.f32.mxu0 0.0
        %4115 = vmatmul.mubr.f32.gmra.mxu0 %v4036
        %v4116 = vpop.f32.mrf.mxu0
        %v4117 = vadd.f32 %v4020, %v4116
        %v4118 = vpop.f32.mrf.mxu0
        %v4119 = vadd.f32 %v4020, %v4118
        %4120 = vmatprep.mubr.f32.mxu0 0.0
        %4121 = vmatmul.mubr.f32.gmra.mxu0 %v4039
        %v4122 = vpop.f32.mrf.mxu0
        %v4123 = vadd.f32 %v4025, %v4122
        %v4124 = vpop.f32.mrf.mxu0
        %v4125 = vadd.f32 %v4025, %v4124
        %4126 = vmatprep.mubr.f32.mxu0 0.0
        %4127 = vmatmul.mubr.f32.gmra.mxu0 %v4042
        %v4128 = vpop.f32.mrf.mxu0
        %v4129 = vadd.f32 %v4030, %v4128
        %v4130 = vpop.f32.mrf.mxu0
        %v4131 = vadd.f32 %v4030, %v4130
        %4132 = vdwg.mxu0
        %4133 = vmatprep.subr.mxu0 0.0
        %4134 = vmatpush1.msra.mxu0 0.0
        %4135 = vmatprep.subr.mxu0 0.0
        %4136 = vmatpush1.msra.mxu0 0.0
        %4137 = vmatprep.subr.mxu0 0.0
        %4138 = vmatpush1.msra.mxu0 0.0
        %4139 = vmatprep.subr.mxu0 0.0
        %4140 = vmatpush1.msra.mxu0 0.0
        %4141 = vmatprep.subr.mxu0 0.0
        %4142 = vmatpush1.msra.mxu0 0.0
        %4143 = vmatprep.subr.mxu0 0.0
        %4144 = vmatpush1.msra.mxu0 0.0
        %4145 = vmatprep.subr.mxu0 0.0
        %4146 = vmatpush1.msra.mxu0 0.0
        %4147 = vmatprep.subr.mxu0 0.0
        %4148 = vmatpush1.msra.mxu0 0.0
        %4149 = vmatprep.subr.mxu0 0.0
        %4150 = vmatpush1.msra.mxu0 0.0
        %4151 = vmatprep.subr.mxu0 0.0
        %4152 = vmatpush1.msra.mxu0 0.0
        %4153 = vmatprep.subr.mxu0 0.0
        %4154 = vmatpush1.msra.mxu0 0.0
        %4155 = vmatprep.subr.mxu0 0.0
        %4156 = vmatpush1.msra.mxu0 0.0
        %4157 = vmatprep.subr.mxu0 %v4002
        %4158 = vmatpush1.msra.mxu0 %v3898
        %4159 = vmatprep.subr.mxu0 %v3586
        %4160 = vmatpush1.msra.mxu0 %v3482
        %4161 = vmatprep.subr.mxu0 %v3170
        %4162 = vmatpush1.msra.mxu0 %v3066
        %4163 = vmatprep.subr.mxu0 %v2754
        %4164 = vmatpush1.msra.mxu0 %v2650
        %4165 = vmatprep.subr.mxu0 0.0
        %4166 = vmatpush2.msra.mxu0 0.0
        %4167 = vmatprep.subr.mxu0 0.0
        %4168 = vmatpush2.msra.mxu0 0.0
        %4169 = vmatprep.subr.mxu0 0.0
        %4170 = vmatpush2.msra.mxu0 0.0
        %4171 = vmatprep.subr.mxu0 0.0
        %4172 = vmatpush2.msra.mxu0 0.0
        %4173 = vmatprep.subr.mxu0 0.0
        %4174 = vmatpush2.msra.mxu0 0.0
        %4175 = vmatprep.subr.mxu0 0.0
        %4176 = vmatpush2.msra.mxu0 0.0
        %4177 = vmatprep.subr.mxu0 0.0
        %4178 = vmatpush2.msra.mxu0 0.0
        %4179 = vmatprep.subr.mxu0 0.0
        %4180 = vmatpush2.msra.mxu0 0.0
        %4181 = vmatprep.subr.mxu0 0.0
        %4182 = vmatpush2.msra.mxu0 0.0
        %4183 = vmatprep.subr.mxu0 0.0
        %4184 = vmatpush2.msra.mxu0 0.0
        %4185 = vmatprep.subr.mxu0 0.0
        %4186 = vmatpush2.msra.mxu0 0.0
        %4187 = vmatprep.subr.mxu0 0.0
        %4188 = vmatpush2.msra.mxu0 0.0
        %4189 = vmatprep.subr.mxu0 0.0
        %4190 = vmatpush2.msra.mxu0 0.0
        %4191 = vmatprep.subr.mxu0 0.0
        %4192 = vmatpush2.msra.mxu0 0.0
        %4193 = vmatprep.subr.mxu0 0.0
        %4194 = vmatpush2.msra.mxu0 0.0
        %4195 = vmatprep.subr.mxu0 0.0
        %4196 = vmatpush2.msra.mxu0 0.0
        %4197 = vmatprep.mubr.f32.mxu0 0.0
        %4198 = vmatmul.mubr.f32.gmra.mxu0 %v4033
        %v4199 = vpop.f32.mrf.mxu0
        %v4200 = vadd.f32 %v4015, %v4199
        %v4201 = vpop.f32.mrf.mxu0
        %v4202 = vadd.f32 %v4015, %v4201
        %4203 = vmatprep.mubr.f32.mxu0 0.0
        %4204 = vmatmul.mubr.f32.gmra.mxu0 %v4036
        %v4205 = vpop.f32.mrf.mxu0
        %v4206 = vadd.f32 %v4020, %v4205
        %v4207 = vpop.f32.mrf.mxu0
        %v4208 = vadd.f32 %v4020, %v4207
        %4209 = vmatprep.mubr.f32.mxu0 0.0
        %4210 = vmatmul.mubr.f32.gmra.mxu0 %v4039
        %v4211 = vpop.f32.mrf.mxu0
        %v4212 = vadd.f32 %v4025, %v4211
        %v4213 = vpop.f32.mrf.mxu0
        %v4214 = vadd.f32 %v4025, %v4213
        %4215 = vmatprep.mubr.f32.mxu0 0.0
        %4216 = vmatmul.mubr.f32.gmra.mxu0 %v4042
        %v4217 = vpop.f32.mrf.mxu0
        %v4218 = vadd.f32 %v4030, %v4217
        %v4219 = vpop.f32.mrf.mxu0
        %v4220 = vadd.f32 %v4030, %v4219
        %4221 = vdwg.mxu0
        %v4222 = vand.u32 2147483647, %v4111
        %vm4223 = vcmp.le.f32.partialorder %v4222, 0.7853982
        %vm4224 = vcmp.lt.s32.totalorder %v4111, 0
        %v4225 = vand.u32 %v4111, 2139095040
        %v4226 = vshrl.u32 %v4225, 23
        %v4227 = vsub.s32 %v4226, 127
        %v4228 = vand.u32 2147483647, %v4111
        %v4229 = vand.u32 %v4228, 8388607
        %v4230 = vor.u32 %v4229, 8388608
        %v4231 = vsub.s32 0, %v4230
        %v4232 = vadd.s32 %v4227, 1
        %vm4233 = vcmp.gt.s32.totalorder %v4232, 0
        %v4234 = vsel %vm4233, %v4232, 0
        %v4235 = vshrl.u32 %v4234, 5
        %v4236 = vand.u32 %v4234, 31
        %v4237 = vsub.s32 32, %v4236
        %v4238 = vshrl.u32 683565275, %v4237
        %v4239 = vshll.u32 683565275, %v4236
        %v4240 = vshrl.u32 2475754826, %v4237
        %v4241 = vor.u32 %v4239, %v4240
        %v4242 = vshll.u32 2475754826, %v4236
        %v4243 = vshrl.u32 2131351028, %v4237
        %v4244 = vor.u32 %v4242, %v4243
        %v4245 = vshll.u32 2131351028, %v4236
        %v4246 = vshrl.u32 2102212464, %v4237
        %v4247 = vor.u32 %v4245, %v4246
        %v4248 = vshll.u32 2102212464, %v4236
        %v4249 = vshrl.u32 920167782, %v4237
        %v4250 = vor.u32 %v4248, %v4249
        %v4251 = vshll.u32 920167782, %v4236
        %v4252 = vshrl.u32 1326507024, %v4237
        %v4253 = vor.u32 %v4251, %v4252
        %vm4254 = vcmp.lt.s32.totalorder %v4235, 1
        %vm4255 = vcmp.lt.s32.totalorder %v4235, 2
        %vm4256 = vcmp.lt.s32.totalorder %v4235, 3
        %vm4257 = vcmp.lt.s32.totalorder %v4235, 4
        %v4258 = vsel %vm4254, %v4238, %v4241
        %v4259 = vsel %vm4257, %v4247, 2102212464
        %v4260 = vsel %vm4256, %v4244, %v4259
        %v4261 = vsel %vm4255, %v4258, %v4260
        %v4262 = vsel %vm4254, %v4241, %v4244
        %v4263 = vsel %vm4257, %v4250, 920167782
        %v4264 = vsel %vm4256, %v4247, %v4263
        %v4265 = vsel %vm4255, %v4262, %v4264
        %v4266 = vsel %vm4254, %v4244, %v4247
        %v4267 = vsel %vm4257, %v4253, 1326507024
        %v4268 = vsel %vm4256, %v4250, %v4267
        %v4269 = vsel %vm4255, %v4266, %v4268
        %v4270 = vshll.u32 %v4230, 8
        %v4271 = vmul.u32.u64.compose %v4270, %v4269
        %v4272 = vextract.low.u32 %v4271
        %v4273 = vextract.high.u32 %v4271
        %v4274 = vmul.u32.u64.compose %v4270, %v4265
        %v4275 = vextract.low.u32 %v4274
        %v4276 = vextract.high.u32 %v4274
        %v4277 = vmul.u32 %v4270, %v4261
        %v4278 = vadd.s32 %v4273, %v4275
        %vm4279 = vc.u32 %v4273, %v4275
        %v4280 = vadd.s32 %v4276, 1
        %v4281 = vsel %vm4279, %v4280, %v4276
        %v4282 = vadd.s32 %v4277, %v4281
        %v4283 = vadd.s32 %v4282, 536870912
        %v4284 = vshrl.u32 %v4283, 30
        %v4285 = vshll.u32 %v4284, 30
        %v4286 = vsub.s32 %v4282, %v4285
        %vm4287 = vcmp.lt.s32.totalorder %v4286, 0
        %v4288 = vsub.s32 0, %v4286
        %v4289 = vsel %vm4287, %v4288, %v4286
        %v4290 = vclz %v4289
        %v4291 = vsub.s32 %v4290, 2
        %vm4292 = vcmp.gt.s32.totalorder 0, %v4291
        %v4293 = vsel %vm4292, 0, %v4291
        %v4294 = vsub.s32 32, %v4293
        %v4295 = vshll.u32 %v4286, %v4293
        %v4296 = vshrl.u32 %v4278, %v4294
        %v4297 = vor.u32 %v4295, %v4296
        %v4298 = vsub.s32 4294967266, %v4293
        %v4299 = vadd.s32 %v4298, 127
        %v4300 = vshll.u32 %v4299, 23
        %v4301 = vor.u32 4788187, %v4300
        %v4302 = vand.u32 2147483647, %v4301
        %v4304 = vcvt.s32.f32 %v4297
        %v4305 = vmul.f32 %v4304, %v4302
        %v4306 = vxor.u32 %v4305, 2147483648
        %v4307 = vsel %vm4224, %v4306, %v4305
        %v4308 = vsub.s32 4, %v4284
        %v4309 = vsel %vm4224, %v4308, %v4284
        %v4310 = vsel %vm4223, %v4111, %v4307
        %v4311 = vsel %vm4223, 0, %v4309
        %v4312 = vcosq.f32.pop %v4310
        %v4313 = vsinq.f32.pop %v4310
        %vm4314 = vweird.f32 %v4111
        %v4315 = vadd.s32 %v4311, 3
        %v4316 = vand.u32 %v4315, 3
        %vm4317 = vcmp.lt.s32.totalorder %v4316, 2
        %vm4318 = vcmp.eq.s32.totalorder %v4316, 0
        %v4319 = vxor.u32 %v4313, 2147483648
        %v4320 = vsel %vm4318, %v4312, %v4319
        %vm4321 = vcmp.eq.s32.totalorder %v4316, 2
        %v4322 = vxor.u32 %v4312, 2147483648
        %v4323 = vsel %vm4321, %v4322, %v4313
        %v4324 = vsel %vm4317, %v4320, %v4323
        %v4325 = vsel %vm4314, nan, %v4324
        %v4326 = vand.u32 2147483647, %v4113
        %vm4327 = vcmp.le.f32.partialorder %v4326, 0.7853982
        %vm4328 = vcmp.lt.s32.totalorder %v4113, 0
        %v4329 = vand.u32 %v4113, 2139095040
        %v4330 = vshrl.u32 %v4329, 23
        %v4331 = vsub.s32 %v4330, 127
        %v4332 = vand.u32 2147483647, %v4113
        %v4333 = vand.u32 %v4332, 8388607
        %v4334 = vor.u32 %v4333, 8388608
        %v4335 = vsub.s32 0, %v4334
        %v4336 = vadd.s32 %v4331, 1
        %vm4337 = vcmp.gt.s32.totalorder %v4336, 0
        %v4338 = vsel %vm4337, %v4336, 0
        %v4339 = vshrl.u32 %v4338, 5
        %v4340 = vand.u32 %v4338, 31
        %v4341 = vsub.s32 32, %v4340
        %v4342 = vshrl.u32 683565275, %v4341
        %v4343 = vshll.u32 683565275, %v4340
        %v4344 = vshrl.u32 2475754826, %v4341
        %v4345 = vor.u32 %v4343, %v4344
        %v4346 = vshll.u32 2475754826, %v4340
        %v4347 = vshrl.u32 2131351028, %v4341
        %v4348 = vor.u32 %v4346, %v4347
        %v4349 = vshll.u32 2131351028, %v4340
        %v4350 = vshrl.u32 2102212464, %v4341
        %v4351 = vor.u32 %v4349, %v4350
        %v4352 = vshll.u32 2102212464, %v4340
        %v4353 = vshrl.u32 920167782, %v4341
        %v4354 = vor.u32 %v4352, %v4353
        %v4355 = vshll.u32 920167782, %v4340
        %v4356 = vshrl.u32 1326507024, %v4341
        %v4357 = vor.u32 %v4355, %v4356
        %vm4358 = vcmp.lt.s32.totalorder %v4339, 1
        %vm4359 = vcmp.lt.s32.totalorder %v4339, 2
        %vm4360 = vcmp.lt.s32.totalorder %v4339, 3
        %vm4361 = vcmp.lt.s32.totalorder %v4339, 4
        %v4362 = vsel %vm4358, %v4342, %v4345
        %v4363 = vsel %vm4361, %v4351, 2102212464
        %v4364 = vsel %vm4360, %v4348, %v4363
        %v4365 = vsel %vm4359, %v4362, %v4364
        %v4366 = vsel %vm4358, %v4345, %v4348
        %v4367 = vsel %vm4361, %v4354, 920167782
        %v4368 = vsel %vm4360, %v4351, %v4367
        %v4369 = vsel %vm4359, %v4366, %v4368
        %v4370 = vsel %vm4358, %v4348, %v4351
        %v4371 = vsel %vm4361, %v4357, 1326507024
        %v4372 = vsel %vm4360, %v4354, %v4371
        %v4373 = vsel %vm4359, %v4370, %v4372
        %v4374 = vshll.u32 %v4334, 8
        %v4375 = vmul.u32.u64.compose %v4374, %v4373
        %v4376 = vextract.low.u32 %v4375
        %v4377 = vextract.high.u32 %v4375
        %v4378 = vmul.u32.u64.compose %v4374, %v4369
        %v4379 = vextract.low.u32 %v4378
        %v4380 = vextract.high.u32 %v4378
        %v4381 = vmul.u32 %v4374, %v4365
        %v4382 = vadd.s32 %v4377, %v4379
        %vm4383 = vc.u32 %v4377, %v4379
        %v4384 = vadd.s32 %v4380, 1
        %v4385 = vsel %vm4383, %v4384, %v4380
        %v4386 = vadd.s32 %v4381, %v4385
        %v4387 = vadd.s32 %v4386, 536870912
        %v4388 = vshrl.u32 %v4387, 30
        %v4389 = vshll.u32 %v4388, 30
        %v4390 = vsub.s32 %v4386, %v4389
        %vm4391 = vcmp.lt.s32.totalorder %v4390, 0
        %v4392 = vsub.s32 0, %v4390
        %v4393 = vsel %vm4391, %v4392, %v4390
        %v4394 = vclz %v4393
        %v4395 = vsub.s32 %v4394, 2
        %vm4396 = vcmp.gt.s32.totalorder 0, %v4395
        %v4397 = vsel %vm4396, 0, %v4395
        %v4398 = vsub.s32 32, %v4397
        %v4399 = vshll.u32 %v4390, %v4397
        %v4400 = vshrl.u32 %v4382, %v4398
        %v4401 = vor.u32 %v4399, %v4400
        %v4402 = vsub.s32 4294967266, %v4397
        %v4403 = vadd.s32 %v4402, 127
        %v4404 = vshll.u32 %v4403, 23
        %v4405 = vor.u32 4788187, %v4404
        %v4406 = vand.u32 2147483647, %v4405
        %v4408 = vcvt.s32.f32 %v4401
        %v4409 = vmul.f32 %v4408, %v4406
        %v4410 = vxor.u32 %v4409, 2147483648
        %v4411 = vsel %vm4328, %v4410, %v4409
        %v4412 = vsub.s32 4, %v4388
        %v4413 = vsel %vm4328, %v4412, %v4388
        %v4414 = vsel %vm4327, %v4113, %v4411
        %v4415 = vsel %vm4327, 0, %v4413
        %v4416 = vcosq.f32.pop %v4414
        %v4417 = vsinq.f32.pop %v4414
        %vm4418 = vweird.f32 %v4113
        %v4419 = vadd.s32 %v4415, 3
        %v4420 = vand.u32 %v4419, 3
        %vm4421 = vcmp.lt.s32.totalorder %v4420, 2
        %vm4422 = vcmp.eq.s32.totalorder %v4420, 0
        %v4423 = vxor.u32 %v4417, 2147483648
        %v4424 = vsel %vm4422, %v4416, %v4423
        %vm4425 = vcmp.eq.s32.totalorder %v4420, 2
        %v4426 = vxor.u32 %v4416, 2147483648
        %v4427 = vsel %vm4425, %v4426, %v4417
        %v4428 = vsel %vm4421, %v4424, %v4427
        %v4429 = vsel %vm4418, nan, %v4428
        %v4430 = vand.u32 2147483647, %v4200
        %vm4431 = vcmp.le.f32.partialorder %v4430, 0.7853982
        %vm4432 = vcmp.lt.s32.totalorder %v4200, 0
        %v4433 = vand.u32 %v4200, 2139095040
        %v4434 = vshrl.u32 %v4433, 23
        %v4435 = vsub.s32 %v4434, 127
        %v4436 = vand.u32 2147483647, %v4200
        %v4437 = vand.u32 %v4436, 8388607
        %v4438 = vor.u32 %v4437, 8388608
        %v4439 = vsub.s32 0, %v4438
        %v4440 = vadd.s32 %v4435, 1
        %vm4441 = vcmp.gt.s32.totalorder %v4440, 0
        %v4442 = vsel %vm4441, %v4440, 0
        %v4443 = vshrl.u32 %v4442, 5
        %v4444 = vand.u32 %v4442, 31
        %v4445 = vsub.s32 32, %v4444
        %v4446 = vshrl.u32 683565275, %v4445
        %v4447 = vshll.u32 683565275, %v4444
        %v4448 = vshrl.u32 2475754826, %v4445
        %v4449 = vor.u32 %v4447, %v4448
        %v4450 = vshll.u32 2475754826, %v4444
        %v4451 = vshrl.u32 2131351028, %v4445
        %v4452 = vor.u32 %v4450, %v4451
        %v4453 = vshll.u32 2131351028, %v4444
        %v4454 = vshrl.u32 2102212464, %v4445
        %v4455 = vor.u32 %v4453, %v4454
        %v4456 = vshll.u32 2102212464, %v4444
        %v4457 = vshrl.u32 920167782, %v4445
        %v4458 = vor.u32 %v4456, %v4457
        %v4459 = vshll.u32 920167782, %v4444
        %v4460 = vshrl.u32 1326507024, %v4445
        %v4461 = vor.u32 %v4459, %v4460
        %vm4462 = vcmp.lt.s32.totalorder %v4443, 1
        %vm4463 = vcmp.lt.s32.totalorder %v4443, 2
        %vm4464 = vcmp.lt.s32.totalorder %v4443, 3
        %vm4465 = vcmp.lt.s32.totalorder %v4443, 4
        %v4466 = vsel %vm4462, %v4446, %v4449
        %v4467 = vsel %vm4465, %v4455, 2102212464
        %v4468 = vsel %vm4464, %v4452, %v4467
        %v4469 = vsel %vm4463, %v4466, %v4468
        %v4470 = vsel %vm4462, %v4449, %v4452
        %v4471 = vsel %vm4465, %v4458, 920167782
        %v4472 = vsel %vm4464, %v4455, %v4471
        %v4473 = vsel %vm4463, %v4470, %v4472
        %v4474 = vsel %vm4462, %v4452, %v4455
        %v4475 = vsel %vm4465, %v4461, 1326507024
        %v4476 = vsel %vm4464, %v4458, %v4475
        %v4477 = vsel %vm4463, %v4474, %v4476
        %v4478 = vshll.u32 %v4438, 8
        %v4479 = vmul.u32.u64.compose %v4478, %v4477
        %v4480 = vextract.low.u32 %v4479
        %v4481 = vextract.high.u32 %v4479
        %v4482 = vmul.u32.u64.compose %v4478, %v4473
        %v4483 = vextract.low.u32 %v4482
        %v4484 = vextract.high.u32 %v4482
        %v4485 = vmul.u32 %v4478, %v4469
        %v4486 = vadd.s32 %v4481, %v4483
        %vm4487 = vc.u32 %v4481, %v4483
        %v4488 = vadd.s32 %v4484, 1
        %v4489 = vsel %vm4487, %v4488, %v4484
        %v4490 = vadd.s32 %v4485, %v4489
        %v4491 = vadd.s32 %v4490, 536870912
        %v4492 = vshrl.u32 %v4491, 30
        %v4493 = vshll.u32 %v4492, 30
        %v4494 = vsub.s32 %v4490, %v4493
        %vm4495 = vcmp.lt.s32.totalorder %v4494, 0
        %v4496 = vsub.s32 0, %v4494
        %v4497 = vsel %vm4495, %v4496, %v4494
        %v4498 = vclz %v4497
        %v4499 = vsub.s32 %v4498, 2
        %vm4500 = vcmp.gt.s32.totalorder 0, %v4499
        %v4501 = vsel %vm4500, 0, %v4499
        %v4502 = vsub.s32 32, %v4501
        %v4503 = vshll.u32 %v4494, %v4501
        %v4504 = vshrl.u32 %v4486, %v4502
        %v4505 = vor.u32 %v4503, %v4504
        %v4506 = vsub.s32 4294967266, %v4501
        %v4507 = vadd.s32 %v4506, 127
        %v4508 = vshll.u32 %v4507, 23
        %v4509 = vor.u32 4788187, %v4508
        %v4510 = vand.u32 2147483647, %v4509
        %v4512 = vcvt.s32.f32 %v4505
        %v4513 = vmul.f32 %v4512, %v4510
        %v4514 = vxor.u32 %v4513, 2147483648
        %v4515 = vsel %vm4432, %v4514, %v4513
        %v4516 = vsub.s32 4, %v4492
        %v4517 = vsel %vm4432, %v4516, %v4492
        %v4518 = vsel %vm4431, %v4200, %v4515
        %v4519 = vsel %vm4431, 0, %v4517
        %v4520 = vcosq.f32.pop %v4518
        %v4521 = vsinq.f32.pop %v4518
        %vm4522 = vweird.f32 %v4200
        %v4523 = vadd.s32 %v4519, 3
        %v4524 = vand.u32 %v4523, 3
        %vm4525 = vcmp.lt.s32.totalorder %v4524, 2
        %vm4526 = vcmp.eq.s32.totalorder %v4524, 0
        %v4527 = vxor.u32 %v4521, 2147483648
        %v4528 = vsel %vm4526, %v4520, %v4527
        %vm4529 = vcmp.eq.s32.totalorder %v4524, 2
        %v4530 = vxor.u32 %v4520, 2147483648
        %v4531 = vsel %vm4529, %v4530, %v4521
        %v4532 = vsel %vm4525, %v4528, %v4531
        %v4533 = vsel %vm4522, nan, %v4532
        %v4534 = vand.u32 2147483647, %v4202
        %vm4535 = vcmp.le.f32.partialorder %v4534, 0.7853982
        %vm4536 = vcmp.lt.s32.totalorder %v4202, 0
        %v4537 = vand.u32 %v4202, 2139095040
        %v4538 = vshrl.u32 %v4537, 23
        %v4539 = vsub.s32 %v4538, 127
        %v4540 = vand.u32 2147483647, %v4202
        %v4541 = vand.u32 %v4540, 8388607
        %v4542 = vor.u32 %v4541, 8388608
        %v4543 = vsub.s32 0, %v4542
        %v4544 = vadd.s32 %v4539, 1
        %vm4545 = vcmp.gt.s32.totalorder %v4544, 0
        %v4546 = vsel %vm4545, %v4544, 0
        %v4547 = vshrl.u32 %v4546, 5
        %v4548 = vand.u32 %v4546, 31
        %v4549 = vsub.s32 32, %v4548
        %v4550 = vshrl.u32 683565275, %v4549
        %v4551 = vshll.u32 683565275, %v4548
        %v4552 = vshrl.u32 2475754826, %v4549
        %v4553 = vor.u32 %v4551, %v4552
        %v4554 = vshll.u32 2475754826, %v4548
        %v4555 = vshrl.u32 2131351028, %v4549
        %v4556 = vor.u32 %v4554, %v4555
        %v4557 = vshll.u32 2131351028, %v4548
        %v4558 = vshrl.u32 2102212464, %v4549
        %v4559 = vor.u32 %v4557, %v4558
        %v4560 = vshll.u32 2102212464, %v4548
        %v4561 = vshrl.u32 920167782, %v4549
        %v4562 = vor.u32 %v4560, %v4561
        %v4563 = vshll.u32 920167782, %v4548
        %v4564 = vshrl.u32 1326507024, %v4549
        %v4565 = vor.u32 %v4563, %v4564
        %vm4566 = vcmp.lt.s32.totalorder %v4547, 1
        %vm4567 = vcmp.lt.s32.totalorder %v4547, 2
        %vm4568 = vcmp.lt.s32.totalorder %v4547, 3
        %vm4569 = vcmp.lt.s32.totalorder %v4547, 4
        %v4570 = vsel %vm4566, %v4550, %v4553
        %v4571 = vsel %vm4569, %v4559, 2102212464
        %v4572 = vsel %vm4568, %v4556, %v4571
        %v4573 = vsel %vm4567, %v4570, %v4572
        %v4574 = vsel %vm4566, %v4553, %v4556
        %v4575 = vsel %vm4569, %v4562, 920167782
        %v4576 = vsel %vm4568, %v4559, %v4575
        %v4577 = vsel %vm4567, %v4574, %v4576
        %v4578 = vsel %vm4566, %v4556, %v4559
        %v4579 = vsel %vm4569, %v4565, 1326507024
        %v4580 = vsel %vm4568, %v4562, %v4579
        %v4581 = vsel %vm4567, %v4578, %v4580
        %v4582 = vshll.u32 %v4542, 8
        %v4583 = vmul.u32.u64.compose %v4582, %v4581
        %v4584 = vextract.low.u32 %v4583
        %v4585 = vextract.high.u32 %v4583
        %v4586 = vmul.u32.u64.compose %v4582, %v4577
        %v4587 = vextract.low.u32 %v4586
        %v4588 = vextract.high.u32 %v4586
        %v4589 = vmul.u32 %v4582, %v4573
        %v4590 = vadd.s32 %v4585, %v4587
        %vm4591 = vc.u32 %v4585, %v4587
        %v4592 = vadd.s32 %v4588, 1
        %v4593 = vsel %vm4591, %v4592, %v4588
        %v4594 = vadd.s32 %v4589, %v4593
        %v4595 = vadd.s32 %v4594, 536870912
        %v4596 = vshrl.u32 %v4595, 30
        %v4597 = vshll.u32 %v4596, 30
        %v4598 = vsub.s32 %v4594, %v4597
        %vm4599 = vcmp.lt.s32.totalorder %v4598, 0
        %v4600 = vsub.s32 0, %v4598
        %v4601 = vsel %vm4599, %v4600, %v4598
        %v4602 = vclz %v4601
        %v4603 = vsub.s32 %v4602, 2
        %vm4604 = vcmp.gt.s32.totalorder 0, %v4603
        %v4605 = vsel %vm4604, 0, %v4603
        %v4606 = vsub.s32 32, %v4605
        %v4607 = vshll.u32 %v4598, %v4605
        %v4608 = vshrl.u32 %v4590, %v4606
        %v4609 = vor.u32 %v4607, %v4608
        %v4610 = vsub.s32 4294967266, %v4605
        %v4611 = vadd.s32 %v4610, 127
        %v4612 = vshll.u32 %v4611, 23
        %v4613 = vor.u32 4788187, %v4612
        %v4614 = vand.u32 2147483647, %v4613
        %v4616 = vcvt.s32.f32 %v4609
        %v4617 = vmul.f32 %v4616, %v4614
        %v4618 = vxor.u32 %v4617, 2147483648
        %v4619 = vsel %vm4536, %v4618, %v4617
        %v4620 = vsub.s32 4, %v4596
        %v4621 = vsel %vm4536, %v4620, %v4596
        %v4622 = vsel %vm4535, %v4202, %v4619
        %v4623 = vsel %vm4535, 0, %v4621
        %v4624 = vcosq.f32.pop %v4622
        %v4625 = vsinq.f32.pop %v4622
        %vm4626 = vweird.f32 %v4202
        %v4627 = vadd.s32 %v4623, 3
        %v4628 = vand.u32 %v4627, 3
        %vm4629 = vcmp.lt.s32.totalorder %v4628, 2
        %vm4630 = vcmp.eq.s32.totalorder %v4628, 0
        %v4631 = vxor.u32 %v4625, 2147483648
        %v4632 = vsel %vm4630, %v4624, %v4631
        %vm4633 = vcmp.eq.s32.totalorder %v4628, 2
        %v4634 = vxor.u32 %v4624, 2147483648
        %v4635 = vsel %vm4633, %v4634, %v4625
        %v4636 = vsel %vm4629, %v4632, %v4635
        %v4637 = vsel %vm4626, nan, %v4636
        %v4638 = vand.u32 2147483647, %v4117
        %vm4639 = vcmp.le.f32.partialorder %v4638, 0.7853982
        %vm4640 = vcmp.lt.s32.totalorder %v4117, 0
        %v4641 = vand.u32 %v4117, 2139095040
        %v4642 = vshrl.u32 %v4641, 23
        %v4643 = vsub.s32 %v4642, 127
        %v4644 = vand.u32 2147483647, %v4117
        %v4645 = vand.u32 %v4644, 8388607
        %v4646 = vor.u32 %v4645, 8388608
        %v4647 = vsub.s32 0, %v4646
        %v4648 = vadd.s32 %v4643, 1
        %vm4649 = vcmp.gt.s32.totalorder %v4648, 0
        %v4650 = vsel %vm4649, %v4648, 0
        %v4651 = vshrl.u32 %v4650, 5
        %v4652 = vand.u32 %v4650, 31
        %v4653 = vsub.s32 32, %v4652
        %v4654 = vshrl.u32 683565275, %v4653
        %v4655 = vshll.u32 683565275, %v4652
        %v4656 = vshrl.u32 2475754826, %v4653
        %v4657 = vor.u32 %v4655, %v4656
        %v4658 = vshll.u32 2475754826, %v4652
        %v4659 = vshrl.u32 2131351028, %v4653
        %v4660 = vor.u32 %v4658, %v4659
        %v4661 = vshll.u32 2131351028, %v4652
        %v4662 = vshrl.u32 2102212464, %v4653
        %v4663 = vor.u32 %v4661, %v4662
        %v4664 = vshll.u32 2102212464, %v4652
        %v4665 = vshrl.u32 920167782, %v4653
        %v4666 = vor.u32 %v4664, %v4665
        %v4667 = vshll.u32 920167782, %v4652
        %v4668 = vshrl.u32 1326507024, %v4653
        %v4669 = vor.u32 %v4667, %v4668
        %vm4670 = vcmp.lt.s32.totalorder %v4651, 1
        %vm4671 = vcmp.lt.s32.totalorder %v4651, 2
        %vm4672 = vcmp.lt.s32.totalorder %v4651, 3
        %vm4673 = vcmp.lt.s32.totalorder %v4651, 4
        %v4674 = vsel %vm4670, %v4654, %v4657
        %v4675 = vsel %vm4673, %v4663, 2102212464
        %v4676 = vsel %vm4672, %v4660, %v4675
        %v4677 = vsel %vm4671, %v4674, %v4676
        %v4678 = vsel %vm4670, %v4657, %v4660
        %v4679 = vsel %vm4673, %v4666, 920167782
        %v4680 = vsel %vm4672, %v4663, %v4679
        %v4681 = vsel %vm4671, %v4678, %v4680
        %v4682 = vsel %vm4670, %v4660, %v4663
        %v4683 = vsel %vm4673, %v4669, 1326507024
        %v4684 = vsel %vm4672, %v4666, %v4683
        %v4685 = vsel %vm4671, %v4682, %v4684
        %v4686 = vshll.u32 %v4646, 8
        %v4687 = vmul.u32.u64.compose %v4686, %v4685
        %v4688 = vextract.low.u32 %v4687
        %v4689 = vextract.high.u32 %v4687
        %v4690 = vmul.u32.u64.compose %v4686, %v4681
        %v4691 = vextract.low.u32 %v4690
        %v4692 = vextract.high.u32 %v4690
        %v4693 = vmul.u32 %v4686, %v4677
        %v4694 = vadd.s32 %v4689, %v4691
        %vm4695 = vc.u32 %v4689, %v4691
        %v4696 = vadd.s32 %v4692, 1
        %v4697 = vsel %vm4695, %v4696, %v4692
        %v4698 = vadd.s32 %v4693, %v4697
        %v4699 = vadd.s32 %v4698, 536870912
        %v4700 = vshrl.u32 %v4699, 30
        %v4701 = vshll.u32 %v4700, 30
        %v4702 = vsub.s32 %v4698, %v4701
        %vm4703 = vcmp.lt.s32.totalorder %v4702, 0
        %v4704 = vsub.s32 0, %v4702
        %v4705 = vsel %vm4703, %v4704, %v4702
        %v4706 = vclz %v4705
        %v4707 = vsub.s32 %v4706, 2
        %vm4708 = vcmp.gt.s32.totalorder 0, %v4707
        %v4709 = vsel %vm4708, 0, %v4707
        %v4710 = vsub.s32 32, %v4709
        %v4711 = vshll.u32 %v4702, %v4709
        %v4712 = vshrl.u32 %v4694, %v4710
        %v4713 = vor.u32 %v4711, %v4712
        %v4714 = vsub.s32 4294967266, %v4709
        %v4715 = vadd.s32 %v4714, 127
        %v4716 = vshll.u32 %v4715, 23
        %v4717 = vor.u32 4788187, %v4716
        %v4718 = vand.u32 2147483647, %v4717
        %v4720 = vcvt.s32.f32 %v4713
        %v4721 = vmul.f32 %v4720, %v4718
        %v4722 = vxor.u32 %v4721, 2147483648
        %v4723 = vsel %vm4640, %v4722, %v4721
        %v4724 = vsub.s32 4, %v4700
        %v4725 = vsel %vm4640, %v4724, %v4700
        %v4726 = vsel %vm4639, %v4117, %v4723
        %v4727 = vsel %vm4639, 0, %v4725
        %v4728 = vcosq.f32.pop %v4726
        %v4729 = vsinq.f32.pop %v4726
        %vm4730 = vweird.f32 %v4117
        %v4731 = vadd.s32 %v4727, 3
        %v4732 = vand.u32 %v4731, 3
        %vm4733 = vcmp.lt.s32.totalorder %v4732, 2
        %vm4734 = vcmp.eq.s32.totalorder %v4732, 0
        %v4735 = vxor.u32 %v4729, 2147483648
        %v4736 = vsel %vm4734, %v4728, %v4735
        %vm4737 = vcmp.eq.s32.totalorder %v4732, 2
        %v4738 = vxor.u32 %v4728, 2147483648
        %v4739 = vsel %vm4737, %v4738, %v4729
        %v4740 = vsel %vm4733, %v4736, %v4739
        %v4741 = vsel %vm4730, nan, %v4740
        %v4742 = vand.u32 2147483647, %v4119
        %vm4743 = vcmp.le.f32.partialorder %v4742, 0.7853982
        %vm4744 = vcmp.lt.s32.totalorder %v4119, 0
        %v4745 = vand.u32 %v4119, 2139095040
        %v4746 = vshrl.u32 %v4745, 23
        %v4747 = vsub.s32 %v4746, 127
        %v4748 = vand.u32 2147483647, %v4119
        %v4749 = vand.u32 %v4748, 8388607
        %v4750 = vor.u32 %v4749, 8388608
        %v4751 = vsub.s32 0, %v4750
        %v4752 = vadd.s32 %v4747, 1
        %vm4753 = vcmp.gt.s32.totalorder %v4752, 0
        %v4754 = vsel %vm4753, %v4752, 0
        %v4755 = vshrl.u32 %v4754, 5
        %v4756 = vand.u32 %v4754, 31
        %v4757 = vsub.s32 32, %v4756
        %v4758 = vshrl.u32 683565275, %v4757
        %v4759 = vshll.u32 683565275, %v4756
        %v4760 = vshrl.u32 2475754826, %v4757
        %v4761 = vor.u32 %v4759, %v4760
        %v4762 = vshll.u32 2475754826, %v4756
        %v4763 = vshrl.u32 2131351028, %v4757
        %v4764 = vor.u32 %v4762, %v4763
        %v4765 = vshll.u32 2131351028, %v4756
        %v4766 = vshrl.u32 2102212464, %v4757
        %v4767 = vor.u32 %v4765, %v4766
        %v4768 = vshll.u32 2102212464, %v4756
        %v4769 = vshrl.u32 920167782, %v4757
        %v4770 = vor.u32 %v4768, %v4769
        %v4771 = vshll.u32 920167782, %v4756
        %v4772 = vshrl.u32 1326507024, %v4757
        %v4773 = vor.u32 %v4771, %v4772
        %vm4774 = vcmp.lt.s32.totalorder %v4755, 1
        %vm4775 = vcmp.lt.s32.totalorder %v4755, 2
        %vm4776 = vcmp.lt.s32.totalorder %v4755, 3
        %vm4777 = vcmp.lt.s32.totalorder %v4755, 4
        %v4778 = vsel %vm4774, %v4758, %v4761
        %v4779 = vsel %vm4777, %v4767, 2102212464
        %v4780 = vsel %vm4776, %v4764, %v4779
        %v4781 = vsel %vm4775, %v4778, %v4780
        %v4782 = vsel %vm4774, %v4761, %v4764
        %v4783 = vsel %vm4777, %v4770, 920167782
        %v4784 = vsel %vm4776, %v4767, %v4783
        %v4785 = vsel %vm4775, %v4782, %v4784
        %v4786 = vsel %vm4774, %v4764, %v4767
        %v4787 = vsel %vm4777, %v4773, 1326507024
        %v4788 = vsel %vm4776, %v4770, %v4787
        %v4789 = vsel %vm4775, %v4786, %v4788
        %v4790 = vshll.u32 %v4750, 8
        %v4791 = vmul.u32.u64.compose %v4790, %v4789
        %v4792 = vextract.low.u32 %v4791
        %v4793 = vextract.high.u32 %v4791
        %v4794 = vmul.u32.u64.compose %v4790, %v4785
        %v4795 = vextract.low.u32 %v4794
        %v4796 = vextract.high.u32 %v4794
        %v4797 = vmul.u32 %v4790, %v4781
        %v4798 = vadd.s32 %v4793, %v4795
        %vm4799 = vc.u32 %v4793, %v4795
        %v4800 = vadd.s32 %v4796, 1
        %v4801 = vsel %vm4799, %v4800, %v4796
        %v4802 = vadd.s32 %v4797, %v4801
        %v4803 = vadd.s32 %v4802, 536870912
        %v4804 = vshrl.u32 %v4803, 30
        %v4805 = vshll.u32 %v4804, 30
        %v4806 = vsub.s32 %v4802, %v4805
        %vm4807 = vcmp.lt.s32.totalorder %v4806, 0
        %v4808 = vsub.s32 0, %v4806
        %v4809 = vsel %vm4807, %v4808, %v4806
        %v4810 = vclz %v4809
        %v4811 = vsub.s32 %v4810, 2
        %vm4812 = vcmp.gt.s32.totalorder 0, %v4811
        %v4813 = vsel %vm4812, 0, %v4811
        %v4814 = vsub.s32 32, %v4813
        %v4815 = vshll.u32 %v4806, %v4813
        %v4816 = vshrl.u32 %v4798, %v4814
        %v4817 = vor.u32 %v4815, %v4816
        %v4818 = vsub.s32 4294967266, %v4813
        %v4819 = vadd.s32 %v4818, 127
        %v4820 = vshll.u32 %v4819, 23
        %v4821 = vor.u32 4788187, %v4820
        %v4822 = vand.u32 2147483647, %v4821
        %v4824 = vcvt.s32.f32 %v4817
        %v4825 = vmul.f32 %v4824, %v4822
        %v4826 = vxor.u32 %v4825, 2147483648
        %v4827 = vsel %vm4744, %v4826, %v4825
        %v4828 = vsub.s32 4, %v4804
        %v4829 = vsel %vm4744, %v4828, %v4804
        %v4830 = vsel %vm4743, %v4119, %v4827
        %v4831 = vsel %vm4743, 0, %v4829
        %v4832 = vcosq.f32.pop %v4830
        %v4833 = vsinq.f32.pop %v4830
        %vm4834 = vweird.f32 %v4119
        %v4835 = vadd.s32 %v4831, 3
        %v4836 = vand.u32 %v4835, 3
        %vm4837 = vcmp.lt.s32.totalorder %v4836, 2
        %vm4838 = vcmp.eq.s32.totalorder %v4836, 0
        %v4839 = vxor.u32 %v4833, 2147483648
        %v4840 = vsel %vm4838, %v4832, %v4839
        %vm4841 = vcmp.eq.s32.totalorder %v4836, 2
        %v4842 = vxor.u32 %v4832, 2147483648
        %v4843 = vsel %vm4841, %v4842, %v4833
        %v4844 = vsel %vm4837, %v4840, %v4843
        %v4845 = vsel %vm4834, nan, %v4844
        %v4846 = vand.u32 2147483647, %v4206
        %vm4847 = vcmp.le.f32.partialorder %v4846, 0.7853982
        %vm4848 = vcmp.lt.s32.totalorder %v4206, 0
        %v4849 = vand.u32 %v4206, 2139095040
        %v4850 = vshrl.u32 %v4849, 23
        %v4851 = vsub.s32 %v4850, 127
        %v4852 = vand.u32 2147483647, %v4206
        %v4853 = vand.u32 %v4852, 8388607
        %v4854 = vor.u32 %v4853, 8388608
        %v4855 = vsub.s32 0, %v4854
        %v4856 = vadd.s32 %v4851, 1
        %vm4857 = vcmp.gt.s32.totalorder %v4856, 0
        %v4858 = vsel %vm4857, %v4856, 0
        %v4859 = vshrl.u32 %v4858, 5
        %v4860 = vand.u32 %v4858, 31
        %v4861 = vsub.s32 32, %v4860
        %v4862 = vshrl.u32 683565275, %v4861
        %v4863 = vshll.u32 683565275, %v4860
        %v4864 = vshrl.u32 2475754826, %v4861
        %v4865 = vor.u32 %v4863, %v4864
        %v4866 = vshll.u32 2475754826, %v4860
        %v4867 = vshrl.u32 2131351028, %v4861
        %v4868 = vor.u32 %v4866, %v4867
        %v4869 = vshll.u32 2131351028, %v4860
        %v4870 = vshrl.u32 2102212464, %v4861
        %v4871 = vor.u32 %v4869, %v4870
        %v4872 = vshll.u32 2102212464, %v4860
        %v4873 = vshrl.u32 920167782, %v4861
        %v4874 = vor.u32 %v4872, %v4873
        %v4875 = vshll.u32 920167782, %v4860
        %v4876 = vshrl.u32 1326507024, %v4861
        %v4877 = vor.u32 %v4875, %v4876
        %vm4878 = vcmp.lt.s32.totalorder %v4859, 1
        %vm4879 = vcmp.lt.s32.totalorder %v4859, 2
        %vm4880 = vcmp.lt.s32.totalorder %v4859, 3
        %vm4881 = vcmp.lt.s32.totalorder %v4859, 4
        %v4882 = vsel %vm4878, %v4862, %v4865
        %v4883 = vsel %vm4881, %v4871, 2102212464
        %v4884 = vsel %vm4880, %v4868, %v4883
        %v4885 = vsel %vm4879, %v4882, %v4884
        %v4886 = vsel %vm4878, %v4865, %v4868
        %v4887 = vsel %vm4881, %v4874, 920167782
        %v4888 = vsel %vm4880, %v4871, %v4887
        %v4889 = vsel %vm4879, %v4886, %v4888
        %v4890 = vsel %vm4878, %v4868, %v4871
        %v4891 = vsel %vm4881, %v4877, 1326507024
        %v4892 = vsel %vm4880, %v4874, %v4891
        %v4893 = vsel %vm4879, %v4890, %v4892
        %v4894 = vshll.u32 %v4854, 8
        %v4895 = vmul.u32.u64.compose %v4894, %v4893
        %v4896 = vextract.low.u32 %v4895
        %v4897 = vextract.high.u32 %v4895
        %v4898 = vmul.u32.u64.compose %v4894, %v4889
        %v4899 = vextract.low.u32 %v4898
        %v4900 = vextract.high.u32 %v4898
        %v4901 = vmul.u32 %v4894, %v4885
        %v4902 = vadd.s32 %v4897, %v4899
        %vm4903 = vc.u32 %v4897, %v4899
        %v4904 = vadd.s32 %v4900, 1
        %v4905 = vsel %vm4903, %v4904, %v4900
        %v4906 = vadd.s32 %v4901, %v4905
        %v4907 = vadd.s32 %v4906, 536870912
        %v4908 = vshrl.u32 %v4907, 30
        %v4909 = vshll.u32 %v4908, 30
        %v4910 = vsub.s32 %v4906, %v4909
        %vm4911 = vcmp.lt.s32.totalorder %v4910, 0
        %v4912 = vsub.s32 0, %v4910
        %v4913 = vsel %vm4911, %v4912, %v4910
        %v4914 = vclz %v4913
        %v4915 = vsub.s32 %v4914, 2
        %vm4916 = vcmp.gt.s32.totalorder 0, %v4915
        %v4917 = vsel %vm4916, 0, %v4915
        %v4918 = vsub.s32 32, %v4917
        %v4919 = vshll.u32 %v4910, %v4917
        %v4920 = vshrl.u32 %v4902, %v4918
        %v4921 = vor.u32 %v4919, %v4920
        %v4922 = vsub.s32 4294967266, %v4917
        %v4923 = vadd.s32 %v4922, 127
        %v4924 = vshll.u32 %v4923, 23
        %v4925 = vor.u32 4788187, %v4924
        %v4926 = vand.u32 2147483647, %v4925
        %v4928 = vcvt.s32.f32 %v4921
        %v4929 = vmul.f32 %v4928, %v4926
        %v4930 = vxor.u32 %v4929, 2147483648
        %v4931 = vsel %vm4848, %v4930, %v4929
        %v4932 = vsub.s32 4, %v4908
        %v4933 = vsel %vm4848, %v4932, %v4908
        %v4934 = vsel %vm4847, %v4206, %v4931
        %v4935 = vsel %vm4847, 0, %v4933
        %v4936 = vcosq.f32.pop %v4934
        %v4937 = vsinq.f32.pop %v4934
        %vm4938 = vweird.f32 %v4206
        %v4939 = vadd.s32 %v4935, 3
        %v4940 = vand.u32 %v4939, 3
        %vm4941 = vcmp.lt.s32.totalorder %v4940, 2
        %vm4942 = vcmp.eq.s32.totalorder %v4940, 0
        %v4943 = vxor.u32 %v4937, 2147483648
        %v4944 = vsel %vm4942, %v4936, %v4943
        %vm4945 = vcmp.eq.s32.totalorder %v4940, 2
        %v4946 = vxor.u32 %v4936, 2147483648
        %v4947 = vsel %vm4945, %v4946, %v4937
        %v4948 = vsel %vm4941, %v4944, %v4947
        %v4949 = vsel %vm4938, nan, %v4948
        %v4950 = vand.u32 2147483647, %v4208
        %vm4951 = vcmp.le.f32.partialorder %v4950, 0.7853982
        %vm4952 = vcmp.lt.s32.totalorder %v4208, 0
        %v4953 = vand.u32 %v4208, 2139095040
        %v4954 = vshrl.u32 %v4953, 23
        %v4955 = vsub.s32 %v4954, 127
        %v4956 = vand.u32 2147483647, %v4208
        %v4957 = vand.u32 %v4956, 8388607
        %v4958 = vor.u32 %v4957, 8388608
        %v4959 = vsub.s32 0, %v4958
        %v4960 = vadd.s32 %v4955, 1
        %vm4961 = vcmp.gt.s32.totalorder %v4960, 0
        %v4962 = vsel %vm4961, %v4960, 0
        %v4963 = vshrl.u32 %v4962, 5
        %v4964 = vand.u32 %v4962, 31
        %v4965 = vsub.s32 32, %v4964
        %v4966 = vshrl.u32 683565275, %v4965
        %v4967 = vshll.u32 683565275, %v4964
        %v4968 = vshrl.u32 2475754826, %v4965
        %v4969 = vor.u32 %v4967, %v4968
        %v4970 = vshll.u32 2475754826, %v4964
        %v4971 = vshrl.u32 2131351028, %v4965
        %v4972 = vor.u32 %v4970, %v4971
        %v4973 = vshll.u32 2131351028, %v4964
        %v4974 = vshrl.u32 2102212464, %v4965
        %v4975 = vor.u32 %v4973, %v4974
        %v4976 = vshll.u32 2102212464, %v4964
        %v4977 = vshrl.u32 920167782, %v4965
        %v4978 = vor.u32 %v4976, %v4977
        %v4979 = vshll.u32 920167782, %v4964
        %v4980 = vshrl.u32 1326507024, %v4965
        %v4981 = vor.u32 %v4979, %v4980
        %vm4982 = vcmp.lt.s32.totalorder %v4963, 1
        %vm4983 = vcmp.lt.s32.totalorder %v4963, 2
        %vm4984 = vcmp.lt.s32.totalorder %v4963, 3
        %vm4985 = vcmp.lt.s32.totalorder %v4963, 4
        %v4986 = vsel %vm4982, %v4966, %v4969
        %v4987 = vsel %vm4985, %v4975, 2102212464
        %v4988 = vsel %vm4984, %v4972, %v4987
        %v4989 = vsel %vm4983, %v4986, %v4988
        %v4990 = vsel %vm4982, %v4969, %v4972
        %v4991 = vsel %vm4985, %v4978, 920167782
        %v4992 = vsel %vm4984, %v4975, %v4991
        %v4993 = vsel %vm4983, %v4990, %v4992
        %v4994 = vsel %vm4982, %v4972, %v4975
        %v4995 = vsel %vm4985, %v4981, 1326507024
        %v4996 = vsel %vm4984, %v4978, %v4995
        %v4997 = vsel %vm4983, %v4994, %v4996
        %v4998 = vshll.u32 %v4958, 8
        %v4999 = vmul.u32.u64.compose %v4998, %v4997
        %v5000 = vextract.low.u32 %v4999
        %v5001 = vextract.high.u32 %v4999
        %v5002 = vmul.u32.u64.compose %v4998, %v4993
        %v5003 = vextract.low.u32 %v5002
        %v5004 = vextract.high.u32 %v5002
        %v5005 = vmul.u32 %v4998, %v4989
        %v5006 = vadd.s32 %v5001, %v5003
        %vm5007 = vc.u32 %v5001, %v5003
        %v5008 = vadd.s32 %v5004, 1
        %v5009 = vsel %vm5007, %v5008, %v5004
        %v5010 = vadd.s32 %v5005, %v5009
        %v5011 = vadd.s32 %v5010, 536870912
        %v5012 = vshrl.u32 %v5011, 30
        %v5013 = vshll.u32 %v5012, 30
        %v5014 = vsub.s32 %v5010, %v5013
        %vm5015 = vcmp.lt.s32.totalorder %v5014, 0
        %v5016 = vsub.s32 0, %v5014
        %v5017 = vsel %vm5015, %v5016, %v5014
        %v5018 = vclz %v5017
        %v5019 = vsub.s32 %v5018, 2
        %vm5020 = vcmp.gt.s32.totalorder 0, %v5019
        %v5021 = vsel %vm5020, 0, %v5019
        %v5022 = vsub.s32 32, %v5021
        %v5023 = vshll.u32 %v5014, %v5021
        %v5024 = vshrl.u32 %v5006, %v5022
        %v5025 = vor.u32 %v5023, %v5024
        %v5026 = vsub.s32 4294967266, %v5021
        %v5027 = vadd.s32 %v5026, 127
        %v5028 = vshll.u32 %v5027, 23
        %v5029 = vor.u32 4788187, %v5028
        %v5030 = vand.u32 2147483647, %v5029
        %v5032 = vcvt.s32.f32 %v5025
        %v5033 = vmul.f32 %v5032, %v5030
        %v5034 = vxor.u32 %v5033, 2147483648
        %v5035 = vsel %vm4952, %v5034, %v5033
        %v5036 = vsub.s32 4, %v5012
        %v5037 = vsel %vm4952, %v5036, %v5012
        %v5038 = vsel %vm4951, %v4208, %v5035
        %v5039 = vsel %vm4951, 0, %v5037
        %v5040 = vcosq.f32.pop %v5038
        %v5041 = vsinq.f32.pop %v5038
        %vm5042 = vweird.f32 %v4208
        %v5043 = vadd.s32 %v5039, 3
        %v5044 = vand.u32 %v5043, 3
        %vm5045 = vcmp.lt.s32.totalorder %v5044, 2
        %vm5046 = vcmp.eq.s32.totalorder %v5044, 0
        %v5047 = vxor.u32 %v5041, 2147483648
        %v5048 = vsel %vm5046, %v5040, %v5047
        %vm5049 = vcmp.eq.s32.totalorder %v5044, 2
        %v5050 = vxor.u32 %v5040, 2147483648
        %v5051 = vsel %vm5049, %v5050, %v5041
        %v5052 = vsel %vm5045, %v5048, %v5051
        %v5053 = vsel %vm5042, nan, %v5052
        %v5054 = vand.u32 2147483647, %v4123
        %vm5055 = vcmp.le.f32.partialorder %v5054, 0.7853982
        %vm5056 = vcmp.lt.s32.totalorder %v4123, 0
        %v5057 = vand.u32 %v4123, 2139095040
        %v5058 = vshrl.u32 %v5057, 23
        %v5059 = vsub.s32 %v5058, 127
        %v5060 = vand.u32 2147483647, %v4123
        %v5061 = vand.u32 %v5060, 8388607
        %v5062 = vor.u32 %v5061, 8388608
        %v5063 = vsub.s32 0, %v5062
        %v5064 = vadd.s32 %v5059, 1
        %vm5065 = vcmp.gt.s32.totalorder %v5064, 0
        %v5066 = vsel %vm5065, %v5064, 0
        %v5067 = vshrl.u32 %v5066, 5
        %v5068 = vand.u32 %v5066, 31
        %v5069 = vsub.s32 32, %v5068
        %v5070 = vshrl.u32 683565275, %v5069
        %v5071 = vshll.u32 683565275, %v5068
        %v5072 = vshrl.u32 2475754826, %v5069
        %v5073 = vor.u32 %v5071, %v5072
        %v5074 = vshll.u32 2475754826, %v5068
        %v5075 = vshrl.u32 2131351028, %v5069
        %v5076 = vor.u32 %v5074, %v5075
        %v5077 = vshll.u32 2131351028, %v5068
        %v5078 = vshrl.u32 2102212464, %v5069
        %v5079 = vor.u32 %v5077, %v5078
        %v5080 = vshll.u32 2102212464, %v5068
        %v5081 = vshrl.u32 920167782, %v5069
        %v5082 = vor.u32 %v5080, %v5081
        %v5083 = vshll.u32 920167782, %v5068
        %v5084 = vshrl.u32 1326507024, %v5069
        %v5085 = vor.u32 %v5083, %v5084
        %vm5086 = vcmp.lt.s32.totalorder %v5067, 1
        %vm5087 = vcmp.lt.s32.totalorder %v5067, 2
        %vm5088 = vcmp.lt.s32.totalorder %v5067, 3
        %vm5089 = vcmp.lt.s32.totalorder %v5067, 4
        %v5090 = vsel %vm5086, %v5070, %v5073
        %v5091 = vsel %vm5089, %v5079, 2102212464
        %v5092 = vsel %vm5088, %v5076, %v5091
        %v5093 = vsel %vm5087, %v5090, %v5092
        %v5094 = vsel %vm5086, %v5073, %v5076
        %v5095 = vsel %vm5089, %v5082, 920167782
        %v5096 = vsel %vm5088, %v5079, %v5095
        %v5097 = vsel %vm5087, %v5094, %v5096
        %v5098 = vsel %vm5086, %v5076, %v5079
        %v5099 = vsel %vm5089, %v5085, 1326507024
        %v5100 = vsel %vm5088, %v5082, %v5099
        %v5101 = vsel %vm5087, %v5098, %v5100
        %v5102 = vshll.u32 %v5062, 8
        %v5103 = vmul.u32.u64.compose %v5102, %v5101
        %v5104 = vextract.low.u32 %v5103
        %v5105 = vextract.high.u32 %v5103
        %v5106 = vmul.u32.u64.compose %v5102, %v5097
        %v5107 = vextract.low.u32 %v5106
        %v5108 = vextract.high.u32 %v5106
        %v5109 = vmul.u32 %v5102, %v5093
        %v5110 = vadd.s32 %v5105, %v5107
        %vm5111 = vc.u32 %v5105, %v5107
        %v5112 = vadd.s32 %v5108, 1
        %v5113 = vsel %vm5111, %v5112, %v5108
        %v5114 = vadd.s32 %v5109, %v5113
        %v5115 = vadd.s32 %v5114, 536870912
        %v5116 = vshrl.u32 %v5115, 30
        %v5117 = vshll.u32 %v5116, 30
        %v5118 = vsub.s32 %v5114, %v5117
        %vm5119 = vcmp.lt.s32.totalorder %v5118, 0
        %v5120 = vsub.s32 0, %v5118
        %v5121 = vsel %vm5119, %v5120, %v5118
        %v5122 = vclz %v5121
        %v5123 = vsub.s32 %v5122, 2
        %vm5124 = vcmp.gt.s32.totalorder 0, %v5123
        %v5125 = vsel %vm5124, 0, %v5123
        %v5126 = vsub.s32 32, %v5125
        %v5127 = vshll.u32 %v5118, %v5125
        %v5128 = vshrl.u32 %v5110, %v5126
        %v5129 = vor.u32 %v5127, %v5128
        %v5130 = vsub.s32 4294967266, %v5125
        %v5131 = vadd.s32 %v5130, 127
        %v5132 = vshll.u32 %v5131, 23
        %v5133 = vor.u32 4788187, %v5132
        %v5134 = vand.u32 2147483647, %v5133
        %v5136 = vcvt.s32.f32 %v5129
        %v5137 = vmul.f32 %v5136, %v5134
        %v5138 = vxor.u32 %v5137, 2147483648
        %v5139 = vsel %vm5056, %v5138, %v5137
        %v5140 = vsub.s32 4, %v5116
        %v5141 = vsel %vm5056, %v5140, %v5116
        %v5142 = vsel %vm5055, %v4123, %v5139
        %v5143 = vsel %vm5055, 0, %v5141
        %v5144 = vcosq.f32.pop %v5142
        %v5145 = vsinq.f32.pop %v5142
        %vm5146 = vweird.f32 %v4123
        %v5147 = vadd.s32 %v5143, 3
        %v5148 = vand.u32 %v5147, 3
        %vm5149 = vcmp.lt.s32.totalorder %v5148, 2
        %vm5150 = vcmp.eq.s32.totalorder %v5148, 0
        %v5151 = vxor.u32 %v5145, 2147483648
        %v5152 = vsel %vm5150, %v5144, %v5151
        %vm5153 = vcmp.eq.s32.totalorder %v5148, 2
        %v5154 = vxor.u32 %v5144, 2147483648
        %v5155 = vsel %vm5153, %v5154, %v5145
        %v5156 = vsel %vm5149, %v5152, %v5155
        %v5157 = vsel %vm5146, nan, %v5156
        %v5158 = vand.u32 2147483647, %v4125
        %vm5159 = vcmp.le.f32.partialorder %v5158, 0.7853982
        %vm5160 = vcmp.lt.s32.totalorder %v4125, 0
        %v5161 = vand.u32 %v4125, 2139095040
        %v5162 = vshrl.u32 %v5161, 23
        %v5163 = vsub.s32 %v5162, 127
        %v5164 = vand.u32 2147483647, %v4125
        %v5165 = vand.u32 %v5164, 8388607
        %v5166 = vor.u32 %v5165, 8388608
        %v5167 = vsub.s32 0, %v5166
        %v5168 = vadd.s32 %v5163, 1
        %vm5169 = vcmp.gt.s32.totalorder %v5168, 0
        %v5170 = vsel %vm5169, %v5168, 0
        %v5171 = vshrl.u32 %v5170, 5
        %v5172 = vand.u32 %v5170, 31
        %v5173 = vsub.s32 32, %v5172
        %v5174 = vshrl.u32 683565275, %v5173
        %v5175 = vshll.u32 683565275, %v5172
        %v5176 = vshrl.u32 2475754826, %v5173
        %v5177 = vor.u32 %v5175, %v5176
        %v5178 = vshll.u32 2475754826, %v5172
        %v5179 = vshrl.u32 2131351028, %v5173
        %v5180 = vor.u32 %v5178, %v5179
        %v5181 = vshll.u32 2131351028, %v5172
        %v5182 = vshrl.u32 2102212464, %v5173
        %v5183 = vor.u32 %v5181, %v5182
        %v5184 = vshll.u32 2102212464, %v5172
        %v5185 = vshrl.u32 920167782, %v5173
        %v5186 = vor.u32 %v5184, %v5185
        %v5187 = vshll.u32 920167782, %v5172
        %v5188 = vshrl.u32 1326507024, %v5173
        %v5189 = vor.u32 %v5187, %v5188
        %vm5190 = vcmp.lt.s32.totalorder %v5171, 1
        %vm5191 = vcmp.lt.s32.totalorder %v5171, 2
        %vm5192 = vcmp.lt.s32.totalorder %v5171, 3
        %vm5193 = vcmp.lt.s32.totalorder %v5171, 4
        %v5194 = vsel %vm5190, %v5174, %v5177
        %v5195 = vsel %vm5193, %v5183, 2102212464
        %v5196 = vsel %vm5192, %v5180, %v5195
        %v5197 = vsel %vm5191, %v5194, %v5196
        %v5198 = vsel %vm5190, %v5177, %v5180
        %v5199 = vsel %vm5193, %v5186, 920167782
        %v5200 = vsel %vm5192, %v5183, %v5199
        %v5201 = vsel %vm5191, %v5198, %v5200
        %v5202 = vsel %vm5190, %v5180, %v5183
        %v5203 = vsel %vm5193, %v5189, 1326507024
        %v5204 = vsel %vm5192, %v5186, %v5203
        %v5205 = vsel %vm5191, %v5202, %v5204
        %v5206 = vshll.u32 %v5166, 8
        %v5207 = vmul.u32.u64.compose %v5206, %v5205
        %v5208 = vextract.low.u32 %v5207
        %v5209 = vextract.high.u32 %v5207
        %v5210 = vmul.u32.u64.compose %v5206, %v5201
        %v5211 = vextract.low.u32 %v5210
        %v5212 = vextract.high.u32 %v5210
        %v5213 = vmul.u32 %v5206, %v5197
        %v5214 = vadd.s32 %v5209, %v5211
        %vm5215 = vc.u32 %v5209, %v5211
        %v5216 = vadd.s32 %v5212, 1
        %v5217 = vsel %vm5215, %v5216, %v5212
        %v5218 = vadd.s32 %v5213, %v5217
        %v5219 = vadd.s32 %v5218, 536870912
        %v5220 = vshrl.u32 %v5219, 30
        %v5221 = vshll.u32 %v5220, 30
        %v5222 = vsub.s32 %v5218, %v5221
        %vm5223 = vcmp.lt.s32.totalorder %v5222, 0
        %v5224 = vsub.s32 0, %v5222
        %v5225 = vsel %vm5223, %v5224, %v5222
        %v5226 = vclz %v5225
        %v5227 = vsub.s32 %v5226, 2
        %vm5228 = vcmp.gt.s32.totalorder 0, %v5227
        %v5229 = vsel %vm5228, 0, %v5227
        %v5230 = vsub.s32 32, %v5229
        %v5231 = vshll.u32 %v5222, %v5229
        %v5232 = vshrl.u32 %v5214, %v5230
        %v5233 = vor.u32 %v5231, %v5232
        %v5234 = vsub.s32 4294967266, %v5229
        %v5235 = vadd.s32 %v5234, 127
        %v5236 = vshll.u32 %v5235, 23
        %v5237 = vor.u32 4788187, %v5236
        %v5238 = vand.u32 2147483647, %v5237
        %v5240 = vcvt.s32.f32 %v5233
        %v5241 = vmul.f32 %v5240, %v5238
        %v5242 = vxor.u32 %v5241, 2147483648
        %v5243 = vsel %vm5160, %v5242, %v5241
        %v5244 = vsub.s32 4, %v5220
        %v5245 = vsel %vm5160, %v5244, %v5220
        %v5246 = vsel %vm5159, %v4125, %v5243
        %v5247 = vsel %vm5159, 0, %v5245
        %v5248 = vcosq.f32.pop %v5246
        %v5249 = vsinq.f32.pop %v5246
        %vm5250 = vweird.f32 %v4125
        %v5251 = vadd.s32 %v5247, 3
        %v5252 = vand.u32 %v5251, 3
        %vm5253 = vcmp.lt.s32.totalorder %v5252, 2
        %vm5254 = vcmp.eq.s32.totalorder %v5252, 0
        %v5255 = vxor.u32 %v5249, 2147483648
        %v5256 = vsel %vm5254, %v5248, %v5255
        %vm5257 = vcmp.eq.s32.totalorder %v5252, 2
        %v5258 = vxor.u32 %v5248, 2147483648
        %v5259 = vsel %vm5257, %v5258, %v5249
        %v5260 = vsel %vm5253, %v5256, %v5259
        %v5261 = vsel %vm5250, nan, %v5260
        %v5262 = vand.u32 2147483647, %v4212
        %vm5263 = vcmp.le.f32.partialorder %v5262, 0.7853982
        %vm5264 = vcmp.lt.s32.totalorder %v4212, 0
        %v5265 = vand.u32 %v4212, 2139095040
        %v5266 = vshrl.u32 %v5265, 23
        %v5267 = vsub.s32 %v5266, 127
        %v5268 = vand.u32 2147483647, %v4212
        %v5269 = vand.u32 %v5268, 8388607
        %v5270 = vor.u32 %v5269, 8388608
        %v5271 = vsub.s32 0, %v5270
        %v5272 = vadd.s32 %v5267, 1
        %vm5273 = vcmp.gt.s32.totalorder %v5272, 0
        %v5274 = vsel %vm5273, %v5272, 0
        %v5275 = vshrl.u32 %v5274, 5
        %v5276 = vand.u32 %v5274, 31
        %v5277 = vsub.s32 32, %v5276
        %v5278 = vshrl.u32 683565275, %v5277
        %v5279 = vshll.u32 683565275, %v5276
        %v5280 = vshrl.u32 2475754826, %v5277
        %v5281 = vor.u32 %v5279, %v5280
        %v5282 = vshll.u32 2475754826, %v5276
        %v5283 = vshrl.u32 2131351028, %v5277
        %v5284 = vor.u32 %v5282, %v5283
        %v5285 = vshll.u32 2131351028, %v5276
        %v5286 = vshrl.u32 2102212464, %v5277
        %v5287 = vor.u32 %v5285, %v5286
        %v5288 = vshll.u32 2102212464, %v5276
        %v5289 = vshrl.u32 920167782, %v5277
        %v5290 = vor.u32 %v5288, %v5289
        %v5291 = vshll.u32 920167782, %v5276
        %v5292 = vshrl.u32 1326507024, %v5277
        %v5293 = vor.u32 %v5291, %v5292
        %vm5294 = vcmp.lt.s32.totalorder %v5275, 1
        %vm5295 = vcmp.lt.s32.totalorder %v5275, 2
        %vm5296 = vcmp.lt.s32.totalorder %v5275, 3
        %vm5297 = vcmp.lt.s32.totalorder %v5275, 4
        %v5298 = vsel %vm5294, %v5278, %v5281
        %v5299 = vsel %vm5297, %v5287, 2102212464
        %v5300 = vsel %vm5296, %v5284, %v5299
        %v5301 = vsel %vm5295, %v5298, %v5300
        %v5302 = vsel %vm5294, %v5281, %v5284
        %v5303 = vsel %vm5297, %v5290, 920167782
        %v5304 = vsel %vm5296, %v5287, %v5303
        %v5305 = vsel %vm5295, %v5302, %v5304
        %v5306 = vsel %vm5294, %v5284, %v5287
        %v5307 = vsel %vm5297, %v5293, 1326507024
        %v5308 = vsel %vm5296, %v5290, %v5307
        %v5309 = vsel %vm5295, %v5306, %v5308
        %v5310 = vshll.u32 %v5270, 8
        %v5311 = vmul.u32.u64.compose %v5310, %v5309
        %v5312 = vextract.low.u32 %v5311
        %v5313 = vextract.high.u32 %v5311
        %v5314 = vmul.u32.u64.compose %v5310, %v5305
        %v5315 = vextract.low.u32 %v5314
        %v5316 = vextract.high.u32 %v5314
        %v5317 = vmul.u32 %v5310, %v5301
        %v5318 = vadd.s32 %v5313, %v5315
        %vm5319 = vc.u32 %v5313, %v5315
        %v5320 = vadd.s32 %v5316, 1
        %v5321 = vsel %vm5319, %v5320, %v5316
        %v5322 = vadd.s32 %v5317, %v5321
        %v5323 = vadd.s32 %v5322, 536870912
        %v5324 = vshrl.u32 %v5323, 30
        %v5325 = vshll.u32 %v5324, 30
        %v5326 = vsub.s32 %v5322, %v5325
        %vm5327 = vcmp.lt.s32.totalorder %v5326, 0
        %v5328 = vsub.s32 0, %v5326
        %v5329 = vsel %vm5327, %v5328, %v5326
        %v5330 = vclz %v5329
        %v5331 = vsub.s32 %v5330, 2
        %vm5332 = vcmp.gt.s32.totalorder 0, %v5331
        %v5333 = vsel %vm5332, 0, %v5331
        %v5334 = vsub.s32 32, %v5333
        %v5335 = vshll.u32 %v5326, %v5333
        %v5336 = vshrl.u32 %v5318, %v5334
        %v5337 = vor.u32 %v5335, %v5336
        %v5338 = vsub.s32 4294967266, %v5333
        %v5339 = vadd.s32 %v5338, 127
        %v5340 = vshll.u32 %v5339, 23
        %v5341 = vor.u32 4788187, %v5340
        %v5342 = vand.u32 2147483647, %v5341
        %v5344 = vcvt.s32.f32 %v5337
        %v5345 = vmul.f32 %v5344, %v5342
        %v5346 = vxor.u32 %v5345, 2147483648
        %v5347 = vsel %vm5264, %v5346, %v5345
        %v5348 = vsub.s32 4, %v5324
        %v5349 = vsel %vm5264, %v5348, %v5324
        %v5350 = vsel %vm5263, %v4212, %v5347
        %v5351 = vsel %vm5263, 0, %v5349
        %v5352 = vcosq.f32.pop %v5350
        %v5353 = vsinq.f32.pop %v5350
        %vm5354 = vweird.f32 %v4212
        %v5355 = vadd.s32 %v5351, 3
        %v5356 = vand.u32 %v5355, 3
        %vm5357 = vcmp.lt.s32.totalorder %v5356, 2
        %vm5358 = vcmp.eq.s32.totalorder %v5356, 0
        %v5359 = vxor.u32 %v5353, 2147483648
        %v5360 = vsel %vm5358, %v5352, %v5359
        %vm5361 = vcmp.eq.s32.totalorder %v5356, 2
        %v5362 = vxor.u32 %v5352, 2147483648
        %v5363 = vsel %vm5361, %v5362, %v5353
        %v5364 = vsel %vm5357, %v5360, %v5363
        %v5365 = vsel %vm5354, nan, %v5364
        %v5366 = vand.u32 2147483647, %v4214
        %vm5367 = vcmp.le.f32.partialorder %v5366, 0.7853982
        %vm5368 = vcmp.lt.s32.totalorder %v4214, 0
        %v5369 = vand.u32 %v4214, 2139095040
        %v5370 = vshrl.u32 %v5369, 23
        %v5371 = vsub.s32 %v5370, 127
        %v5372 = vand.u32 2147483647, %v4214
        %v5373 = vand.u32 %v5372, 8388607
        %v5374 = vor.u32 %v5373, 8388608
        %v5375 = vsub.s32 0, %v5374
        %v5376 = vadd.s32 %v5371, 1
        %vm5377 = vcmp.gt.s32.totalorder %v5376, 0
        %v5378 = vsel %vm5377, %v5376, 0
        %v5379 = vshrl.u32 %v5378, 5
        %v5380 = vand.u32 %v5378, 31
        %v5381 = vsub.s32 32, %v5380
        %v5382 = vshrl.u32 683565275, %v5381
        %v5383 = vshll.u32 683565275, %v5380
        %v5384 = vshrl.u32 2475754826, %v5381
        %v5385 = vor.u32 %v5383, %v5384
        %v5386 = vshll.u32 2475754826, %v5380
        %v5387 = vshrl.u32 2131351028, %v5381
        %v5388 = vor.u32 %v5386, %v5387
        %v5389 = vshll.u32 2131351028, %v5380
        %v5390 = vshrl.u32 2102212464, %v5381
        %v5391 = vor.u32 %v5389, %v5390
        %v5392 = vshll.u32 2102212464, %v5380
        %v5393 = vshrl.u32 920167782, %v5381
        %v5394 = vor.u32 %v5392, %v5393
        %v5395 = vshll.u32 920167782, %v5380
        %v5396 = vshrl.u32 1326507024, %v5381
        %v5397 = vor.u32 %v5395, %v5396
        %vm5398 = vcmp.lt.s32.totalorder %v5379, 1
        %vm5399 = vcmp.lt.s32.totalorder %v5379, 2
        %vm5400 = vcmp.lt.s32.totalorder %v5379, 3
        %vm5401 = vcmp.lt.s32.totalorder %v5379, 4
        %v5402 = vsel %vm5398, %v5382, %v5385
        %v5403 = vsel %vm5401, %v5391, 2102212464
        %v5404 = vsel %vm5400, %v5388, %v5403
        %v5405 = vsel %vm5399, %v5402, %v5404
        %v5406 = vsel %vm5398, %v5385, %v5388
        %v5407 = vsel %vm5401, %v5394, 920167782
        %v5408 = vsel %vm5400, %v5391, %v5407
        %v5409 = vsel %vm5399, %v5406, %v5408
        %v5410 = vsel %vm5398, %v5388, %v5391
        %v5411 = vsel %vm5401, %v5397, 1326507024
        %v5412 = vsel %vm5400, %v5394, %v5411
        %v5413 = vsel %vm5399, %v5410, %v5412
        %v5414 = vshll.u32 %v5374, 8
        %v5415 = vmul.u32.u64.compose %v5414, %v5413
        %v5416 = vextract.low.u32 %v5415
        %v5417 = vextract.high.u32 %v5415
        %v5418 = vmul.u32.u64.compose %v5414, %v5409
        %v5419 = vextract.low.u32 %v5418
        %v5420 = vextract.high.u32 %v5418
        %v5421 = vmul.u32 %v5414, %v5405
        %v5422 = vadd.s32 %v5417, %v5419
        %vm5423 = vc.u32 %v5417, %v5419
        %v5424 = vadd.s32 %v5420, 1
        %v5425 = vsel %vm5423, %v5424, %v5420
        %v5426 = vadd.s32 %v5421, %v5425
        %v5427 = vadd.s32 %v5426, 536870912
        %v5428 = vshrl.u32 %v5427, 30
        %v5429 = vshll.u32 %v5428, 30
        %v5430 = vsub.s32 %v5426, %v5429
        %vm5431 = vcmp.lt.s32.totalorder %v5430, 0
        %v5432 = vsub.s32 0, %v5430
        %v5433 = vsel %vm5431, %v5432, %v5430
        %v5434 = vclz %v5433
        %v5435 = vsub.s32 %v5434, 2
        %vm5436 = vcmp.gt.s32.totalorder 0, %v5435
        %v5437 = vsel %vm5436, 0, %v5435
        %v5438 = vsub.s32 32, %v5437
        %v5439 = vshll.u32 %v5430, %v5437
        %v5440 = vshrl.u32 %v5422, %v5438
        %v5441 = vor.u32 %v5439, %v5440
        %v5442 = vsub.s32 4294967266, %v5437
        %v5443 = vadd.s32 %v5442, 127
        %v5444 = vshll.u32 %v5443, 23
        %v5445 = vor.u32 4788187, %v5444
        %v5446 = vand.u32 2147483647, %v5445
        %v5448 = vcvt.s32.f32 %v5441
        %v5449 = vmul.f32 %v5448, %v5446
        %v5450 = vxor.u32 %v5449, 2147483648
        %v5451 = vsel %vm5368, %v5450, %v5449
        %v5452 = vsub.s32 4, %v5428
        %v5453 = vsel %vm5368, %v5452, %v5428
        %v5454 = vsel %vm5367, %v4214, %v5451
        %v5455 = vsel %vm5367, 0, %v5453
        %v5456 = vcosq.f32.pop %v5454
        %v5457 = vsinq.f32.pop %v5454
        %vm5458 = vweird.f32 %v4214
        %v5459 = vadd.s32 %v5455, 3
        %v5460 = vand.u32 %v5459, 3
        %vm5461 = vcmp.lt.s32.totalorder %v5460, 2
        %vm5462 = vcmp.eq.s32.totalorder %v5460, 0
        %v5463 = vxor.u32 %v5457, 2147483648
        %v5464 = vsel %vm5462, %v5456, %v5463
        %vm5465 = vcmp.eq.s32.totalorder %v5460, 2
        %v5466 = vxor.u32 %v5456, 2147483648
        %v5467 = vsel %vm5465, %v5466, %v5457
        %v5468 = vsel %vm5461, %v5464, %v5467
        %v5469 = vsel %vm5458, nan, %v5468
        %v5470 = vand.u32 2147483647, %v4129
        %vm5471 = vcmp.le.f32.partialorder %v5470, 0.7853982
        %vm5472 = vcmp.lt.s32.totalorder %v4129, 0
        %v5473 = vand.u32 %v4129, 2139095040
        %v5474 = vshrl.u32 %v5473, 23
        %v5475 = vsub.s32 %v5474, 127
        %v5476 = vand.u32 2147483647, %v4129
        %v5477 = vand.u32 %v5476, 8388607
        %v5478 = vor.u32 %v5477, 8388608
        %v5479 = vsub.s32 0, %v5478
        %v5480 = vadd.s32 %v5475, 1
        %vm5481 = vcmp.gt.s32.totalorder %v5480, 0
        %v5482 = vsel %vm5481, %v5480, 0
        %v5483 = vshrl.u32 %v5482, 5
        %v5484 = vand.u32 %v5482, 31
        %v5485 = vsub.s32 32, %v5484
        %v5486 = vshrl.u32 683565275, %v5485
        %v5487 = vshll.u32 683565275, %v5484
        %v5488 = vshrl.u32 2475754826, %v5485
        %v5489 = vor.u32 %v5487, %v5488
        %v5490 = vshll.u32 2475754826, %v5484
        %v5491 = vshrl.u32 2131351028, %v5485
        %v5492 = vor.u32 %v5490, %v5491
        %v5493 = vshll.u32 2131351028, %v5484
        %v5494 = vshrl.u32 2102212464, %v5485
        %v5495 = vor.u32 %v5493, %v5494
        %v5496 = vshll.u32 2102212464, %v5484
        %v5497 = vshrl.u32 920167782, %v5485
        %v5498 = vor.u32 %v5496, %v5497
        %v5499 = vshll.u32 920167782, %v5484
        %v5500 = vshrl.u32 1326507024, %v5485
        %v5501 = vor.u32 %v5499, %v5500
        %vm5502 = vcmp.lt.s32.totalorder %v5483, 1
        %vm5503 = vcmp.lt.s32.totalorder %v5483, 2
        %vm5504 = vcmp.lt.s32.totalorder %v5483, 3
        %vm5505 = vcmp.lt.s32.totalorder %v5483, 4
        %v5506 = vsel %vm5502, %v5486, %v5489
        %v5507 = vsel %vm5505, %v5495, 2102212464
        %v5508 = vsel %vm5504, %v5492, %v5507
        %v5509 = vsel %vm5503, %v5506, %v5508
        %v5510 = vsel %vm5502, %v5489, %v5492
        %v5511 = vsel %vm5505, %v5498, 920167782
        %v5512 = vsel %vm5504, %v5495, %v5511
        %v5513 = vsel %vm5503, %v5510, %v5512
        %v5514 = vsel %vm5502, %v5492, %v5495
        %v5515 = vsel %vm5505, %v5501, 1326507024
        %v5516 = vsel %vm5504, %v5498, %v5515
        %v5517 = vsel %vm5503, %v5514, %v5516
        %v5518 = vshll.u32 %v5478, 8
        %v5519 = vmul.u32.u64.compose %v5518, %v5517
        %v5520 = vextract.low.u32 %v5519
        %v5521 = vextract.high.u32 %v5519
        %v5522 = vmul.u32.u64.compose %v5518, %v5513
        %v5523 = vextract.low.u32 %v5522
        %v5524 = vextract.high.u32 %v5522
        %v5525 = vmul.u32 %v5518, %v5509
        %v5526 = vadd.s32 %v5521, %v5523
        %vm5527 = vc.u32 %v5521, %v5523
        %v5528 = vadd.s32 %v5524, 1
        %v5529 = vsel %vm5527, %v5528, %v5524
        %v5530 = vadd.s32 %v5525, %v5529
        %v5531 = vadd.s32 %v5530, 536870912
        %v5532 = vshrl.u32 %v5531, 30
        %v5533 = vshll.u32 %v5532, 30
        %v5534 = vsub.s32 %v5530, %v5533
        %vm5535 = vcmp.lt.s32.totalorder %v5534, 0
        %v5536 = vsub.s32 0, %v5534
        %v5537 = vsel %vm5535, %v5536, %v5534
        %v5538 = vclz %v5537
        %v5539 = vsub.s32 %v5538, 2
        %vm5540 = vcmp.gt.s32.totalorder 0, %v5539
        %v5541 = vsel %vm5540, 0, %v5539
        %v5542 = vsub.s32 32, %v5541
        %v5543 = vshll.u32 %v5534, %v5541
        %v5544 = vshrl.u32 %v5526, %v5542
        %v5545 = vor.u32 %v5543, %v5544
        %v5546 = vsub.s32 4294967266, %v5541
        %v5547 = vadd.s32 %v5546, 127
        %v5548 = vshll.u32 %v5547, 23
        %v5549 = vor.u32 4788187, %v5548
        %v5550 = vand.u32 2147483647, %v5549
        %v5552 = vcvt.s32.f32 %v5545
        %v5553 = vmul.f32 %v5552, %v5550
        %v5554 = vxor.u32 %v5553, 2147483648
        %v5555 = vsel %vm5472, %v5554, %v5553
        %v5556 = vsub.s32 4, %v5532
        %v5557 = vsel %vm5472, %v5556, %v5532
        %v5558 = vsel %vm5471, %v4129, %v5555
        %v5559 = vsel %vm5471, 0, %v5557
        %v5560 = vcosq.f32.pop %v5558
        %v5561 = vsinq.f32.pop %v5558
        %vm5562 = vweird.f32 %v4129
        %v5563 = vadd.s32 %v5559, 3
        %v5564 = vand.u32 %v5563, 3
        %vm5565 = vcmp.lt.s32.totalorder %v5564, 2
        %vm5566 = vcmp.eq.s32.totalorder %v5564, 0
        %v5567 = vxor.u32 %v5561, 2147483648
        %v5568 = vsel %vm5566, %v5560, %v5567
        %vm5569 = vcmp.eq.s32.totalorder %v5564, 2
        %v5570 = vxor.u32 %v5560, 2147483648
        %v5571 = vsel %vm5569, %v5570, %v5561
        %v5572 = vsel %vm5565, %v5568, %v5571
        %v5573 = vsel %vm5562, nan, %v5572
        %v5574 = vand.u32 2147483647, %v4131
        %vm5575 = vcmp.le.f32.partialorder %v5574, 0.7853982
        %vm5576 = vcmp.lt.s32.totalorder %v4131, 0
        %v5577 = vand.u32 %v4131, 2139095040
        %v5578 = vshrl.u32 %v5577, 23
        %v5579 = vsub.s32 %v5578, 127
        %v5580 = vand.u32 2147483647, %v4131
        %v5581 = vand.u32 %v5580, 8388607
        %v5582 = vor.u32 %v5581, 8388608
        %v5583 = vsub.s32 0, %v5582
        %v5584 = vadd.s32 %v5579, 1
        %vm5585 = vcmp.gt.s32.totalorder %v5584, 0
        %v5586 = vsel %vm5585, %v5584, 0
        %v5587 = vshrl.u32 %v5586, 5
        %v5588 = vand.u32 %v5586, 31
        %v5589 = vsub.s32 32, %v5588
        %v5590 = vshrl.u32 683565275, %v5589
        %v5591 = vshll.u32 683565275, %v5588
        %v5592 = vshrl.u32 2475754826, %v5589
        %v5593 = vor.u32 %v5591, %v5592
        %v5594 = vshll.u32 2475754826, %v5588
        %v5595 = vshrl.u32 2131351028, %v5589
        %v5596 = vor.u32 %v5594, %v5595
        %v5597 = vshll.u32 2131351028, %v5588
        %v5598 = vshrl.u32 2102212464, %v5589
        %v5599 = vor.u32 %v5597, %v5598
        %v5600 = vshll.u32 2102212464, %v5588
        %v5601 = vshrl.u32 920167782, %v5589
        %v5602 = vor.u32 %v5600, %v5601
        %v5603 = vshll.u32 920167782, %v5588
        %v5604 = vshrl.u32 1326507024, %v5589
        %v5605 = vor.u32 %v5603, %v5604
        %vm5606 = vcmp.lt.s32.totalorder %v5587, 1
        %vm5607 = vcmp.lt.s32.totalorder %v5587, 2
        %vm5608 = vcmp.lt.s32.totalorder %v5587, 3
        %vm5609 = vcmp.lt.s32.totalorder %v5587, 4
        %v5610 = vsel %vm5606, %v5590, %v5593
        %v5611 = vsel %vm5609, %v5599, 2102212464
        %v5612 = vsel %vm5608, %v5596, %v5611
        %v5613 = vsel %vm5607, %v5610, %v5612
        %v5614 = vsel %vm5606, %v5593, %v5596
        %v5615 = vsel %vm5609, %v5602, 920167782
        %v5616 = vsel %vm5608, %v5599, %v5615
        %v5617 = vsel %vm5607, %v5614, %v5616
        %v5618 = vsel %vm5606, %v5596, %v5599
        %v5619 = vsel %vm5609, %v5605, 1326507024
        %v5620 = vsel %vm5608, %v5602, %v5619
        %v5621 = vsel %vm5607, %v5618, %v5620
        %v5622 = vshll.u32 %v5582, 8
        %v5623 = vmul.u32.u64.compose %v5622, %v5621
        %v5624 = vextract.low.u32 %v5623
        %v5625 = vextract.high.u32 %v5623
        %v5626 = vmul.u32.u64.compose %v5622, %v5617
        %v5627 = vextract.low.u32 %v5626
        %v5628 = vextract.high.u32 %v5626
        %v5629 = vmul.u32 %v5622, %v5613
        %v5630 = vadd.s32 %v5625, %v5627
        %vm5631 = vc.u32 %v5625, %v5627
        %v5632 = vadd.s32 %v5628, 1
        %v5633 = vsel %vm5631, %v5632, %v5628
        %v5634 = vadd.s32 %v5629, %v5633
        %v5635 = vadd.s32 %v5634, 536870912
        %v5636 = vshrl.u32 %v5635, 30
        %v5637 = vshll.u32 %v5636, 30
        %v5638 = vsub.s32 %v5634, %v5637
        %vm5639 = vcmp.lt.s32.totalorder %v5638, 0
        %v5640 = vsub.s32 0, %v5638
        %v5641 = vsel %vm5639, %v5640, %v5638
        %v5642 = vclz %v5641
        %v5643 = vsub.s32 %v5642, 2
        %vm5644 = vcmp.gt.s32.totalorder 0, %v5643
        %v5645 = vsel %vm5644, 0, %v5643
        %v5646 = vsub.s32 32, %v5645
        %v5647 = vshll.u32 %v5638, %v5645
        %v5648 = vshrl.u32 %v5630, %v5646
        %v5649 = vor.u32 %v5647, %v5648
        %v5650 = vsub.s32 4294967266, %v5645
        %v5651 = vadd.s32 %v5650, 127
        %v5652 = vshll.u32 %v5651, 23
        %v5653 = vor.u32 4788187, %v5652
        %v5654 = vand.u32 2147483647, %v5653
        %v5656 = vcvt.s32.f32 %v5649
        %v5657 = vmul.f32 %v5656, %v5654
        %v5658 = vxor.u32 %v5657, 2147483648
        %v5659 = vsel %vm5576, %v5658, %v5657
        %v5660 = vsub.s32 4, %v5636
        %v5661 = vsel %vm5576, %v5660, %v5636
        %v5662 = vsel %vm5575, %v4131, %v5659
        %v5663 = vsel %vm5575, 0, %v5661
        %v5664 = vcosq.f32.pop %v5662
        %v5665 = vsinq.f32.pop %v5662
        %vm5666 = vweird.f32 %v4131
        %v5667 = vadd.s32 %v5663, 3
        %v5668 = vand.u32 %v5667, 3
        %vm5669 = vcmp.lt.s32.totalorder %v5668, 2
        %vm5670 = vcmp.eq.s32.totalorder %v5668, 0
        %v5671 = vxor.u32 %v5665, 2147483648
        %v5672 = vsel %vm5670, %v5664, %v5671
        %vm5673 = vcmp.eq.s32.totalorder %v5668, 2
        %v5674 = vxor.u32 %v5664, 2147483648
        %v5675 = vsel %vm5673, %v5674, %v5665
        %v5676 = vsel %vm5669, %v5672, %v5675
        %v5677 = vsel %vm5666, nan, %v5676
        %v5678 = vand.u32 2147483647, %v4218
        %vm5679 = vcmp.le.f32.partialorder %v5678, 0.7853982
        %vm5680 = vcmp.lt.s32.totalorder %v4218, 0
        %v5681 = vand.u32 %v4218, 2139095040
        %v5682 = vshrl.u32 %v5681, 23
        %v5683 = vsub.s32 %v5682, 127
        %v5684 = vand.u32 2147483647, %v4218
        %v5685 = vand.u32 %v5684, 8388607
        %v5686 = vor.u32 %v5685, 8388608
        %v5687 = vsub.s32 0, %v5686
        %v5688 = vadd.s32 %v5683, 1
        %vm5689 = vcmp.gt.s32.totalorder %v5688, 0
        %v5690 = vsel %vm5689, %v5688, 0
        %v5691 = vshrl.u32 %v5690, 5
        %v5692 = vand.u32 %v5690, 31
        %v5693 = vsub.s32 32, %v5692
        %v5694 = vshrl.u32 683565275, %v5693
        %v5695 = vshll.u32 683565275, %v5692
        %v5696 = vshrl.u32 2475754826, %v5693
        %v5697 = vor.u32 %v5695, %v5696
        %v5698 = vshll.u32 2475754826, %v5692
        %v5699 = vshrl.u32 2131351028, %v5693
        %v5700 = vor.u32 %v5698, %v5699
        %v5701 = vshll.u32 2131351028, %v5692
        %v5702 = vshrl.u32 2102212464, %v5693
        %v5703 = vor.u32 %v5701, %v5702
        %v5704 = vshll.u32 2102212464, %v5692
        %v5705 = vshrl.u32 920167782, %v5693
        %v5706 = vor.u32 %v5704, %v5705
        %v5707 = vshll.u32 920167782, %v5692
        %v5708 = vshrl.u32 1326507024, %v5693
        %v5709 = vor.u32 %v5707, %v5708
        %vm5710 = vcmp.lt.s32.totalorder %v5691, 1
        %vm5711 = vcmp.lt.s32.totalorder %v5691, 2
        %vm5712 = vcmp.lt.s32.totalorder %v5691, 3
        %vm5713 = vcmp.lt.s32.totalorder %v5691, 4
        %v5714 = vsel %vm5710, %v5694, %v5697
        %v5715 = vsel %vm5713, %v5703, 2102212464
        %v5716 = vsel %vm5712, %v5700, %v5715
        %v5717 = vsel %vm5711, %v5714, %v5716
        %v5718 = vsel %vm5710, %v5697, %v5700
        %v5719 = vsel %vm5713, %v5706, 920167782
        %v5720 = vsel %vm5712, %v5703, %v5719
        %v5721 = vsel %vm5711, %v5718, %v5720
        %v5722 = vsel %vm5710, %v5700, %v5703
        %v5723 = vsel %vm5713, %v5709, 1326507024
        %v5724 = vsel %vm5712, %v5706, %v5723
        %v5725 = vsel %vm5711, %v5722, %v5724
        %v5726 = vshll.u32 %v5686, 8
        %v5727 = vmul.u32.u64.compose %v5726, %v5725
        %v5728 = vextract.low.u32 %v5727
        %v5729 = vextract.high.u32 %v5727
        %v5730 = vmul.u32.u64.compose %v5726, %v5721
        %v5731 = vextract.low.u32 %v5730
        %v5732 = vextract.high.u32 %v5730
        %v5733 = vmul.u32 %v5726, %v5717
        %v5734 = vadd.s32 %v5729, %v5731
        %vm5735 = vc.u32 %v5729, %v5731
        %v5736 = vadd.s32 %v5732, 1
        %v5737 = vsel %vm5735, %v5736, %v5732
        %v5738 = vadd.s32 %v5733, %v5737
        %v5739 = vadd.s32 %v5738, 536870912
        %v5740 = vshrl.u32 %v5739, 30
        %v5741 = vshll.u32 %v5740, 30
        %v5742 = vsub.s32 %v5738, %v5741
        %vm5743 = vcmp.lt.s32.totalorder %v5742, 0
        %v5744 = vsub.s32 0, %v5742
        %v5745 = vsel %vm5743, %v5744, %v5742
        %v5746 = vclz %v5745
        %v5747 = vsub.s32 %v5746, 2
        %vm5748 = vcmp.gt.s32.totalorder 0, %v5747
        %v5749 = vsel %vm5748, 0, %v5747
        %v5750 = vsub.s32 32, %v5749
        %v5751 = vshll.u32 %v5742, %v5749
        %v5752 = vshrl.u32 %v5734, %v5750
        %v5753 = vor.u32 %v5751, %v5752
        %v5754 = vsub.s32 4294967266, %v5749
        %v5755 = vadd.s32 %v5754, 127
        %v5756 = vshll.u32 %v5755, 23
        %v5757 = vor.u32 4788187, %v5756
        %v5758 = vand.u32 2147483647, %v5757
        %v5760 = vcvt.s32.f32 %v5753
        %v5761 = vmul.f32 %v5760, %v5758
        %v5762 = vxor.u32 %v5761, 2147483648
        %v5763 = vsel %vm5680, %v5762, %v5761
        %v5764 = vsub.s32 4, %v5740
        %v5765 = vsel %vm5680, %v5764, %v5740
        %v5766 = vsel %vm5679, %v4218, %v5763
        %v5767 = vsel %vm5679, 0, %v5765
        %v5768 = vcosq.f32.pop %v5766
        %v5769 = vsinq.f32.pop %v5766
        %vm5770 = vweird.f32 %v4218
        %v5771 = vadd.s32 %v5767, 3
        %v5772 = vand.u32 %v5771, 3
        %vm5773 = vcmp.lt.s32.totalorder %v5772, 2
        %vm5774 = vcmp.eq.s32.totalorder %v5772, 0
        %v5775 = vxor.u32 %v5769, 2147483648
        %v5776 = vsel %vm5774, %v5768, %v5775
        %vm5777 = vcmp.eq.s32.totalorder %v5772, 2
        %v5778 = vxor.u32 %v5768, 2147483648
        %v5779 = vsel %vm5777, %v5778, %v5769
        %v5780 = vsel %vm5773, %v5776, %v5779
        %v5781 = vsel %vm5770, nan, %v5780
        %v5782 = vand.u32 2147483647, %v4220
        %vm5783 = vcmp.le.f32.partialorder %v5782, 0.7853982
        %vm5784 = vcmp.lt.s32.totalorder %v4220, 0
        %v5785 = vand.u32 %v4220, 2139095040
        %v5786 = vshrl.u32 %v5785, 23
        %v5787 = vsub.s32 %v5786, 127
        %v5788 = vand.u32 2147483647, %v4220
        %v5789 = vand.u32 %v5788, 8388607
        %v5790 = vor.u32 %v5789, 8388608
        %v5791 = vsub.s32 0, %v5790
        %v5792 = vadd.s32 %v5787, 1
        %vm5793 = vcmp.gt.s32.totalorder %v5792, 0
        %v5794 = vsel %vm5793, %v5792, 0
        %v5795 = vshrl.u32 %v5794, 5
        %v5796 = vand.u32 %v5794, 31
        %v5797 = vsub.s32 32, %v5796
        %v5798 = vshrl.u32 683565275, %v5797
        %v5799 = vshll.u32 683565275, %v5796
        %v5800 = vshrl.u32 2475754826, %v5797
        %v5801 = vor.u32 %v5799, %v5800
        %v5802 = vshll.u32 2475754826, %v5796
        %v5803 = vshrl.u32 2131351028, %v5797
        %v5804 = vor.u32 %v5802, %v5803
        %v5805 = vshll.u32 2131351028, %v5796
        %v5806 = vshrl.u32 2102212464, %v5797
        %v5807 = vor.u32 %v5805, %v5806
        %v5808 = vshll.u32 2102212464, %v5796
        %v5809 = vshrl.u32 920167782, %v5797
        %v5810 = vor.u32 %v5808, %v5809
        %v5811 = vshll.u32 920167782, %v5796
        %v5812 = vshrl.u32 1326507024, %v5797
        %v5813 = vor.u32 %v5811, %v5812
        %vm5814 = vcmp.lt.s32.totalorder %v5795, 1
        %vm5815 = vcmp.lt.s32.totalorder %v5795, 2
        %vm5816 = vcmp.lt.s32.totalorder %v5795, 3
        %vm5817 = vcmp.lt.s32.totalorder %v5795, 4
        %v5818 = vsel %vm5814, %v5798, %v5801
        %v5819 = vsel %vm5817, %v5807, 2102212464
        %v5820 = vsel %vm5816, %v5804, %v5819
        %v5821 = vsel %vm5815, %v5818, %v5820
        %v5822 = vsel %vm5814, %v5801, %v5804
        %v5823 = vsel %vm5817, %v5810, 920167782
        %v5824 = vsel %vm5816, %v5807, %v5823
        %v5825 = vsel %vm5815, %v5822, %v5824
        %v5826 = vsel %vm5814, %v5804, %v5807
        %v5827 = vsel %vm5817, %v5813, 1326507024
        %v5828 = vsel %vm5816, %v5810, %v5827
        %v5829 = vsel %vm5815, %v5826, %v5828
        %v5830 = vshll.u32 %v5790, 8
        %v5831 = vmul.u32.u64.compose %v5830, %v5829
        %v5832 = vextract.low.u32 %v5831
        %v5833 = vextract.high.u32 %v5831
        %v5834 = vmul.u32.u64.compose %v5830, %v5825
        %v5835 = vextract.low.u32 %v5834
        %v5836 = vextract.high.u32 %v5834
        %v5837 = vmul.u32 %v5830, %v5821
        %v5838 = vadd.s32 %v5833, %v5835
        %vm5839 = vc.u32 %v5833, %v5835
        %v5840 = vadd.s32 %v5836, 1
        %v5841 = vsel %vm5839, %v5840, %v5836
        %v5842 = vadd.s32 %v5837, %v5841
        %v5843 = vadd.s32 %v5842, 536870912
        %v5844 = vshrl.u32 %v5843, 30
        %v5845 = vshll.u32 %v5844, 30
        %v5846 = vsub.s32 %v5842, %v5845
        %vm5847 = vcmp.lt.s32.totalorder %v5846, 0
        %v5848 = vsub.s32 0, %v5846
        %v5849 = vsel %vm5847, %v5848, %v5846
        %v5850 = vclz %v5849
        %v5851 = vsub.s32 %v5850, 2
        %vm5852 = vcmp.gt.s32.totalorder 0, %v5851
        %v5853 = vsel %vm5852, 0, %v5851
        %v5854 = vsub.s32 32, %v5853
        %v5855 = vshll.u32 %v5846, %v5853
        %v5856 = vshrl.u32 %v5838, %v5854
        %v5857 = vor.u32 %v5855, %v5856
        %v5858 = vsub.s32 4294967266, %v5853
        %v5859 = vadd.s32 %v5858, 127
        %v5860 = vshll.u32 %v5859, 23
        %v5861 = vor.u32 4788187, %v5860
        %v5862 = vand.u32 2147483647, %v5861
        %v5864 = vcvt.s32.f32 %v5857
        %v5865 = vmul.f32 %v5864, %v5862
        %v5866 = vxor.u32 %v5865, 2147483648
        %v5867 = vsel %vm5784, %v5866, %v5865
        %v5868 = vsub.s32 4, %v5844
        %v5869 = vsel %vm5784, %v5868, %v5844
        %v5870 = vsel %vm5783, %v4220, %v5867
        %v5871 = vsel %vm5783, 0, %v5869
        %v5872 = vcosq.f32.pop %v5870
        %v5873 = vsinq.f32.pop %v5870
        %vm5874 = vweird.f32 %v4220
        %v5875 = vadd.s32 %v5871, 3
        %v5876 = vand.u32 %v5875, 3
        %vm5877 = vcmp.lt.s32.totalorder %v5876, 2
        %vm5878 = vcmp.eq.s32.totalorder %v5876, 0
        %v5879 = vxor.u32 %v5873, 2147483648
        %v5880 = vsel %vm5878, %v5872, %v5879
        %vm5881 = vcmp.eq.s32.totalorder %v5876, 2
        %v5882 = vxor.u32 %v5872, 2147483648
        %v5883 = vsel %vm5881, %v5882, %v5873
        %v5884 = vsel %vm5877, %v5880, %v5883
        %v5885 = vsel %vm5874, nan, %v5884
        %s5886 = scalar_lea.vmem %s5, 96
        %v5887 = vld [vmem:[%s5886] sm:$0xff]
        %v5888 = vld [vmem:[%s4] sm:$0x7]
        %5890 = vset.pattern.permute.xlu0 0
        %5891 = vperm.xlu0 %5890, %v5887
        %v5892 = vpop.permute.xlu0 %5891
        %v5895 = vsel %vm2148, %v5888, 0
        %5897 = vmatprep.subr.mxu0 0.0
        %5898 = vmatpush1.msra.mxu0 0.0
        %5899 = vmatprep.subr.mxu0 0.0
        %5900 = vmatpush1.msra.mxu0 0.0
        %5901 = vmatprep.subr.mxu0 0.0
        %5902 = vmatpush1.msra.mxu0 0.0
        %5903 = vmatprep.subr.mxu0 0.0
        %5904 = vmatpush1.msra.mxu0 0.0
        %5905 = vmatprep.subr.mxu0 0.0
        %5906 = vmatpush1.msra.mxu0 0.0
        %5907 = vmatprep.subr.mxu0 0.0
        %5908 = vmatpush1.msra.mxu0 0.0
        %5909 = vmatprep.subr.mxu0 0.0
        %5910 = vmatpush1.msra.mxu0 0.0
        %5911 = vmatprep.subr.mxu0 0.0
        %5912 = vmatpush1.msra.mxu0 0.0
        %5913 = vmatprep.subr.mxu0 0.0
        %5914 = vmatpush1.msra.mxu0 0.0
        %5915 = vmatprep.subr.mxu0 0.0
        %5916 = vmatpush1.msra.mxu0 0.0
        %5917 = vmatprep.subr.mxu0 0.0
        %5918 = vmatpush1.msra.mxu0 0.0
        %5919 = vmatprep.subr.mxu0 0.0
        %5920 = vmatpush1.msra.mxu0 0.0
        %5921 = vmatprep.subr.mxu0 %v5677
        %5922 = vmatpush1.msra.mxu0 %v5573
        %5923 = vmatprep.subr.mxu0 %v5261
        %5924 = vmatpush1.msra.mxu0 %v5157
        %5925 = vmatprep.subr.mxu0 %v4845
        %5926 = vmatpush1.msra.mxu0 %v4741
        %5927 = vmatprep.subr.mxu0 %v4429
        %5928 = vmatpush1.msra.mxu0 %v4325
        %5929 = vmatprep.subr.mxu0 0.0
        %5930 = vmatpush2.msra.mxu0 0.0
        %5931 = vmatprep.subr.mxu0 0.0
        %5932 = vmatpush2.msra.mxu0 0.0
        %5933 = vmatprep.subr.mxu0 0.0
        %5934 = vmatpush2.msra.mxu0 0.0
        %5935 = vmatprep.subr.mxu0 0.0
        %5936 = vmatpush2.msra.mxu0 0.0
        %5937 = vmatprep.subr.mxu0 0.0
        %5938 = vmatpush2.msra.mxu0 0.0
        %5939 = vmatprep.subr.mxu0 0.0
        %5940 = vmatpush2.msra.mxu0 0.0
        %5941 = vmatprep.subr.mxu0 0.0
        %5942 = vmatpush2.msra.mxu0 0.0
        %5943 = vmatprep.subr.mxu0 0.0
        %5944 = vmatpush2.msra.mxu0 0.0
        %5945 = vmatprep.subr.mxu0 0.0
        %5946 = vmatpush2.msra.mxu0 0.0
        %5947 = vmatprep.subr.mxu0 0.0
        %5948 = vmatpush2.msra.mxu0 0.0
        %5949 = vmatprep.subr.mxu0 0.0
        %5950 = vmatpush2.msra.mxu0 0.0
        %5951 = vmatprep.subr.mxu0 0.0
        %5952 = vmatpush2.msra.mxu0 0.0
        %5953 = vmatprep.subr.mxu0 0.0
        %5954 = vmatpush2.msra.mxu0 0.0
        %5955 = vmatprep.subr.mxu0 0.0
        %5956 = vmatpush2.msra.mxu0 0.0
        %5957 = vmatprep.subr.mxu0 0.0
        %5958 = vmatpush2.msra.mxu0 0.0
        %5959 = vmatprep.subr.mxu0 0.0
        %5960 = vmatpush2.msra.mxu0 0.0
        %5961 = vmatprep.mubr.f32.mxu0 0.0
        %5962 = vmatmul.mubr.f32.gmra.mxu0 %v5895
        %v5963 = vpop.f32.mrf.mxu0
        %v5964 = vadd.f32 %v5892, %v5963
        %v5965 = vpop.f32.mrf.mxu0
        %v5966 = vadd.f32 %v5892, %v5965
        %5967 = vdwg.mxu0
        %5968 = vmatprep.subr.mxu0 0.0
        %5969 = vmatpush1.msra.mxu0 0.0
        %5970 = vmatprep.subr.mxu0 0.0
        %5971 = vmatpush1.msra.mxu0 0.0
        %5972 = vmatprep.subr.mxu0 0.0
        %5973 = vmatpush1.msra.mxu0 0.0
        %5974 = vmatprep.subr.mxu0 0.0
        %5975 = vmatpush1.msra.mxu0 0.0
        %5976 = vmatprep.subr.mxu0 0.0
        %5977 = vmatpush1.msra.mxu0 0.0
        %5978 = vmatprep.subr.mxu0 0.0
        %5979 = vmatpush1.msra.mxu0 0.0
        %5980 = vmatprep.subr.mxu0 0.0
        %5981 = vmatpush1.msra.mxu0 0.0
        %5982 = vmatprep.subr.mxu0 0.0
        %5983 = vmatpush1.msra.mxu0 0.0
        %5984 = vmatprep.subr.mxu0 0.0
        %5985 = vmatpush1.msra.mxu0 0.0
        %5986 = vmatprep.subr.mxu0 0.0
        %5987 = vmatpush1.msra.mxu0 0.0
        %5988 = vmatprep.subr.mxu0 0.0
        %5989 = vmatpush1.msra.mxu0 0.0
        %5990 = vmatprep.subr.mxu0 0.0
        %5991 = vmatpush1.msra.mxu0 0.0
        %5992 = vmatprep.subr.mxu0 %v5885
        %5993 = vmatpush1.msra.mxu0 %v5781
        %5994 = vmatprep.subr.mxu0 %v5469
        %5995 = vmatpush1.msra.mxu0 %v5365
        %5996 = vmatprep.subr.mxu0 %v5053
        %5997 = vmatpush1.msra.mxu0 %v4949
        %5998 = vmatprep.subr.mxu0 %v4637
        %5999 = vmatpush1.msra.mxu0 %v4533
        %6000 = vmatprep.subr.mxu0 0.0
        %6001 = vmatpush2.msra.mxu0 0.0
        %6002 = vmatprep.subr.mxu0 0.0
        %6003 = vmatpush2.msra.mxu0 0.0
        %6004 = vmatprep.subr.mxu0 0.0
        %6005 = vmatpush2.msra.mxu0 0.0
        %6006 = vmatprep.subr.mxu0 0.0
        %6007 = vmatpush2.msra.mxu0 0.0
        %6008 = vmatprep.subr.mxu0 0.0
        %6009 = vmatpush2.msra.mxu0 0.0
        %6010 = vmatprep.subr.mxu0 0.0
        %6011 = vmatpush2.msra.mxu0 0.0
        %6012 = vmatprep.subr.mxu0 0.0
        %6013 = vmatpush2.msra.mxu0 0.0
        %6014 = vmatprep.subr.mxu0 0.0
        %6015 = vmatpush2.msra.mxu0 0.0
        %6016 = vmatprep.subr.mxu0 0.0
        %6017 = vmatpush2.msra.mxu0 0.0
        %6018 = vmatprep.subr.mxu0 0.0
        %6019 = vmatpush2.msra.mxu0 0.0
        %6020 = vmatprep.subr.mxu0 0.0
        %6021 = vmatpush2.msra.mxu0 0.0
        %6022 = vmatprep.subr.mxu0 0.0
        %6023 = vmatpush2.msra.mxu0 0.0
        %6024 = vmatprep.subr.mxu0 0.0
        %6025 = vmatpush2.msra.mxu0 0.0
        %6026 = vmatprep.subr.mxu0 0.0
        %6027 = vmatpush2.msra.mxu0 0.0
        %6028 = vmatprep.subr.mxu0 0.0
        %6029 = vmatpush2.msra.mxu0 0.0
        %6030 = vmatprep.subr.mxu0 0.0
        %6031 = vmatpush2.msra.mxu0 0.0
        %6032 = vmatprep.mubr.f32.mxu0 0.0
        %6033 = vmatmul.mubr.f32.gmra.mxu0 %v5895
        %v6034 = vpop.f32.mrf.mxu0
        %v6035 = vadd.f32 %v5892, %v6034
        %v6036 = vpop.f32.mrf.mxu0
        %v6037 = vadd.f32 %v5892, %v6036
        %6038 = vdwg.mxu0
        %v6043 = vcombine.low %v5964, %v5966
        %v6044 = vcombine.low %v6035, %v6037
        %6047 = vst [vmem:[%s245] sm:$0x77] %v6043
        %6048 = vst [vmem:[%s245 + $0x8] sm:$0x77] %v6044
        %s6049 = sand.u32 %s159, 1
        %s6050 = scalar_lea.sflag [#allocation3], %s6049
        %s6051 = sand.u32 %s159, 1
        %s6052 = smul.addr %s6051, 16
        %s6053 = scalar_lea.vmem [#allocation2], %s6052
        // Predicated region
        $region45: #{tpu_custom_call.1} parent=43 // pred_check
          %p6054 = pneg %p169
        $region46: #{tpu_custom_call.1} parent=43 // pred_check_branch
          %6056 = sbr.rel (%p6054) target = $region48
        $region47: #{tpu_custom_call.1} parent=43 // pred_region
          %s6057 = smul.u32 4, %s20
          %s6059 = ssub.s32 256, 256
          %6060 = vsyncadd %s6050, %s6059
          %s6061 = smul.addr %s6057, 64
          %s6062 = scalar_lea.hbm %s6, %s6061
          %s6064 = sshll.u32 %s6053, 4
          %s6065 = int_to_ptr.vmem [resolvable:$true] %s6064
          %6067 = dma.vmem_to_hbm [thread:$0]  %s6065, 256, %s6062, %s6050
        $region48: #{tpu_custom_call.1} parent=43 // pred_fallthru
          _
      $region44: #{tpu_custom_call.1} parent=5 // pred_fallthru
        _
      %p6068 = scmp.le.s32.totalorder 2, %s15
      // Predicated region
      $region49: #{tpu_custom_call.1} parent=5 // pred_check
        %p6069 = pneg %p6068
      $region50: #{tpu_custom_call.1} parent=5 // pred_check_branch
        %6071 = sbr.rel (%p6069) target = $region52
      $region51: #{tpu_custom_call.1} parent=5 // pred_region
        %s6072 = ssub.s32 %s15, 2
        // Predicated region
        $region53: #{tpu_custom_call.1} parent=51 // pred_check
          %p6073 = pneg %p175
        $region54: #{tpu_custom_call.1} parent=51 // pred_check_branch
          %6075 = sbr.rel (%p6073) target = $region56
        $region55: #{tpu_custom_call.1} parent=51 // pred_region
          %s6076 = sand.u32 %s160, 1
          %s6077 = scalar_lea.sflag [#allocation3], %s6076
          %s6078 = sand.u32 %s160, 1
          %s6079 = smul.addr %s6078, 16
          %s6080 = scalar_lea.vmem [#allocation2], %s6079
          %6081 = dma.done %s6077, 256
        $region56: #{tpu_custom_call.1} parent=51 // pred_fallthru
          _
      $region52: #{tpu_custom_call.1} parent=5 // pred_fallthru
        _
    $region6: #{tpu_custom_call.1} parent=1 // loop_footer
      %s19 = sadd.s32 1, %s15
    $region7: #{tpu_custom_call.1} parent=1 // loop_footer_branch
      %14 = sbr.rel target = $region3
    $region8: #{tpu_custom_call.1} parent=1 // loop_exit
      _
    %6082 = vsyncpa [#allocation3], 1
    %s6083 = scalar_lea.sflag [#allocation3], 1
    %6084 = vsyncpa %s6083, 1

</llo_original>
